<compile_context>
chip_gen: v7x
topology: tpu7x:2x2x1
jax: 0.10.0
libtpu: 0.0.40
codegen_flags: <defaults>
</compile_context>

<pallas_src>
import jax
import jax.numpy as jnp
import numpy as np
from jax.experimental import pallas as pl
from jax.experimental.pallas import tpu as pltpu

# ----------------------------- static config ---------------------------------
B, C, L, T = 2, 4, 32, 8            # batch, channels (c_in), sequence_length, predict_length
STRIDE = 4
PATCH_LEN = int((L - T) / STRIDE + 2)                  # 8
PATCH_NUM = int((L - PATCH_LEN) / STRIDE + 1) + 1      # 7 + 1 (padding_patch='end') = 8
D_MODEL, N_HEADS, D_FF, N_LAYERS = 16, 4, 32, 2
D_K = D_MODEL // N_HEADS
HEAD_NF = D_MODEL * PATCH_NUM                          # 128
BN = B * C                                             # 8 channel-independent sequences
EPS_REVIN = 1e-5
EPS_LN = 1e-5
SCALE = 1.0 / (D_K ** 0.5)
NEG_INF = -1e9                                         # finite (avoid inf-inf NaNs)


def _detect_nstep():
    """2 'parallel' grid steps only on dual-TensorCore v7x; 1 step elsewhere
    (on single-TC v5e/v6e a second step is just serial-loop overhead)."""
    try:
        kind = jax.devices()[0].device_kind.lower()
    except Exception:
        return 1
    return 2 if "7" in kind else 1


# ------------------------------ Pallas kernel --------------------------------
def make_pallas_fn(nstep):
    g = BN // nstep                 # sequences per grid step
    gp = g * PATCH_NUM              # activation rows per step (row = p*g + seq)
    hk = N_HEADS * gp               # block-diagonal key/value rows

    def kernel(xs_ref, wp_ref, ebias_ref, wqkv_ref, wo_ref, w1_ref, w2_ref,
               vec_ref, wh_ref, bh_ref, smask_ref, hmask_ref, out_ref):

        def mm(a, b):
            return jnp.dot(a, b, preferred_element_type=jnp.float32)

        def mm_t(a, b):             # a @ b.T (contraction over last dim of both)
            return jax.lax.dot_general(a, b, (((1,), (1,)), ((), ())),
                                       preferred_element_type=jnp.float32)

        def layer_norm(v, gamma, beta):
            mu = jnp.mean(v, axis=-1, keepdims=True)
            var = jnp.mean((v - mu) ** 2, axis=-1, keepdims=True)
            return (v - mu) * jax.lax.rsqrt(var + EPS_LN) * gamma + beta

        # ---- RevIN normalize + end replication pad + unfold (fused) -----------
        xs = xs_ref[0]                                            # (g, L)
        mean = jnp.mean(xs, axis=-1, keepdims=True)               # (g, 1)
        var = jnp.mean((xs - mean) ** 2, axis=-1, keepdims=True)
        stdev = jnp.sqrt(var + EPS_REVIN)
        z = (xs - mean) * jax.lax.rsqrt(var + EPS_REVIN)          # (g, L)
        zpad = jnp.concatenate(
            [z, jnp.broadcast_to(z[:, L - 1:L], (g, STRIDE))], axis=1)  # (g, L+4)
        # activation rows ordered (patch p, sequence s): row = p*g + s
        x0 = jnp.concatenate(
            [zpad[:, p * STRIDE:p * STRIDE + PATCH_LEN] for p in range(PATCH_NUM)],
            axis=0)                                               # (gp, PATCH_LEN)

        # ---- patch embedding + (bias + positional encoding), pre-tiled --------
        u = mm(x0, wp_ref[...]) + ebias_ref[...]                  # (gp, D_MODEL)

        smask = smask_ref[...]                                    # (gp, hk) additive
        hmask = hmask_ref[...]                                    # (hk, D_MODEL) 0/1

        for l in range(N_LAYERS):                                 # unrolled layers
            vec = vec_ref[l]                                      # (8, 3*D_MODEL)
            qkv = mm(u, wqkv_ref[l]) + vec[0:1, :]                # (gp, 3*D_MODEL)
            q = qkv[:, 0:D_MODEL]
            k = qkv[:, D_MODEL:2 * D_MODEL]
            v = qkv[:, 2 * D_MODEL:3 * D_MODEL]

            # Block-diagonal multi-head attention: 2 MXU pushes + 1 exp total.
            kbd = jnp.concatenate([k] * N_HEADS, axis=0) * hmask  # (hk, D_MODEL)
            vbd = jnp.concatenate([v] * N_HEADS, axis=0) * hmask  # (hk, D_MODEL)
            s = mm_t(q, kbd) * SCALE + smask                      # (gp, hk)
            pr = jnp.exp(s - jnp.max(s, axis=-1, keepdims=True))  # unnormalized
            # one matmul gives both the context and the per-head denominators
            po = mm(pr, jnp.concatenate([vbd, hmask], axis=1))    # (gp, 2*D_MODEL)
            o = po[:, 0:D_MODEL] * pl.reciprocal(po[:, D_MODEL:2 * D_MODEL],
                                                 approx=True)     # concat-heads ctx
            attn = mm(o, wo_ref[l]) + vec[1:2, :D_MODEL]
            u = layer_norm(u + attn, vec[2:3, :D_MODEL], vec[3:4, :D_MODEL])

            # TODO(synk): PyTorch nn.GELU() is exact-erf GELU; tanh-approx used here.
            ff = jax.nn.gelu(mm(u, w1_ref[l]) + vec[4:5, :D_FF])
            ff = mm(ff, w2_ref[l]) + vec[5:6, :D_MODEL]
            u = layer_norm(u + ff, vec[6:7, :D_MODEL], vec[7:8, :D_MODEL])

        # ---- flatten head (single (g,128)@(128,T) matmul) + RevIN denorm -------
        u_flat = jnp.concatenate(
            [u[p * g:(p + 1) * g, :] for p in range(PATCH_NUM)], axis=1)  # (g, 128)
        y = mm(u_flat, wh_ref[...]) + bh_ref[...]                 # (g, T)
        out_ref[0] = y * stdev + mean                             # denorm folded in

    c2 = lambda i: (0, 0)
    c3 = lambda i: (0, 0, 0)
    return pl.pallas_call(
        kernel,
        out_shape=jax.ShapeDtypeStruct((nstep, g, T), jnp.float32),
        grid=(nstep,),
        in_specs=[
            pl.BlockSpec((1, g, L), lambda i: (i, 0, 0)),                 # raw sequences
            pl.BlockSpec((PATCH_LEN, D_MODEL), c2),                       # W_P
            pl.BlockSpec((gp, D_MODEL), c2),                              # b_P + W_pos (tiled)
            pl.BlockSpec((N_LAYERS, D_MODEL, 3 * D_MODEL), c3),           # fused W_QKV
            pl.BlockSpec((N_LAYERS, D_MODEL, D_MODEL), c3),               # W_O
            pl.BlockSpec((N_LAYERS, D_MODEL, D_FF), c3),                  # FF W1
            pl.BlockSpec((N_LAYERS, D_FF, D_MODEL), c3),                  # FF W2
            pl.BlockSpec((N_LAYERS, 8, 3 * D_MODEL), c3),                 # packed biases / LN
            pl.BlockSpec((HEAD_NF, T), c2),                               # head weight (perm)
            pl.BlockSpec((1, T), c2),                                     # head bias
            pl.BlockSpec((gp, N_HEADS * gp), c2),                         # additive seq mask
            pl.BlockSpec((N_HEADS * gp, D_MODEL), c2),                    # 0/1 head mask
        ],
        out_specs=pl.BlockSpec((1, g, T), lambda i: (i, 0, 0)),
        compiler_params=pltpu.CompilerParams(dimension_semantics=("parallel",)),
    )


# ------------------------------ one-time packing ------------------------------
def pack_params(params, nstep):
    """Pack the 22 module parameters into lane-dense arrays + static masks.
    Runs ONCE at init (outside the per-call path)."""
    g = BN // nstep
    gp = g * PATCH_NUM
    w3 = 3 * D_MODEL
    wqkv = jnp.concatenate([params['wq'], params['wk'], params['wv']], axis=-1)
    pad = lambda a: jnp.pad(a, ((0, 0), (0, 0), (0, w3 - a.shape[-1])))
    vec = jnp.concatenate(
        [jnp.concatenate([params['bq'], params['bk'], params['bv']], axis=-1),
         pad(params['bo']), pad(params['g1']), pad(params['be1']),
         pad(params['b1']), pad(params['b2']), pad(params['g2']), pad(params['be2'])],
        axis=1)                                                   # (N_LAYERS, 8, 48)
    ebias = jnp.repeat(params['wpos'] + params['bp'], g, axis=0)  # (gp, D), (p, seq) rows
    # head weight rows are d*PATCH_NUM + p (Flatten(start_dim=-2)); permute to p*D + d
    wh = (params['wh'].reshape(D_MODEL, PATCH_NUM, T)
          .transpose(1, 0, 2).reshape(HEAD_NF, T))
    # Static masks baked once: sequence block-diag additive mask over (gp, H*gp)
    # score lanes, and 0/1 head mask for the block-diagonal K/V construction.
    rows = np.arange(gp)
    cols = np.arange(N_HEADS * gp)
    smask = np.where((rows[:, None] % g) == (cols[None, :] % g),
                     0.0, NEG_INF).astype(np.float32)
    hmask = (np.arange(N_HEADS * gp)[:, None] // gp
             == np.arange(D_MODEL)[None, :] // D_K).astype(np.float32)
    return dict(wp=params['wp'], ebias=ebias, wqkv=wqkv, wo=params['wo'],
                w1=params['w1'], w2=params['w2'], vec=vec, wh=wh, bh=params['bh'],
                smask=jnp.asarray(smask), hmask=jnp.asarray(hmask))


def make_forward(nstep):
    g = BN // nstep
    run = make_pallas_fn(nstep)

    @jax.jit
    def forward(x, packed):
        # (B, L, C) -> per-channel sequences (nstep, g, L); RevIN, padding,
        # unfold, encoder, head and denorm all run inside the kernel.
        xs = jnp.transpose(x, (0, 2, 1)).reshape(nstep, g, L)
        y = run(xs, packed['wp'], packed['ebias'], packed['wqkv'], packed['wo'],
                packed['w1'], packed['w2'], packed['vec'], packed['wh'],
                packed['bh'], packed['smask'], packed['hmask'])
        return jnp.transpose(y.reshape(B, C, T), (0, 2, 1))       # (B, T, C)

    return forward


# ------------------------------ pure-JAX reference ----------------------------
def _preprocess_ref(x):
    mean = jnp.mean(x, axis=1, keepdims=True)                      # (B, 1, C)
    var = jnp.mean((x - mean) ** 2, axis=1, keepdims=True)         # unbiased=False
    stdev = jnp.sqrt(var + EPS_REVIN)
    z = (x - mean) / stdev                                         # (B, L, C)
    z = jnp.transpose(z, (0, 2, 1))                                # (B, C, L)
    z = jnp.concatenate([z, jnp.repeat(z[:, :, -1:], STRIDE, axis=-1)], axis=-1)
    idx = jnp.arange(PATCH_NUM)[:, None] * STRIDE + jnp.arange(PATCH_LEN)[None, :]
    patches = z[:, :, idx]                                         # (B, C, P, PL)
    return patches.reshape(BN, PATCH_NUM, PATCH_LEN), mean, stdev


def _ln_ref(v, gamma, beta):
    mu = jnp.mean(v, axis=-1, keepdims=True)
    var = jnp.mean((v - mu) ** 2, axis=-1, keepdims=True)
    return (v - mu) / jnp.sqrt(var + EPS_LN) * gamma + beta


def _ref_encode_one(seq, p):
    hp = jax.lax.Precision.HIGHEST
    mm = lambda a, b: jnp.dot(a, b, precision=hp)
    u = mm(seq, p['wp']) + p['bp'][0] + p['wpos']
    for l in range(N_LAYERS):
        q = mm(u, p['wq'][l]) + p['bq'][l, 0]
        k = mm(u, p['wk'][l]) + p['bk'][l, 0]
        v = mm(u, p['wv'][l]) + p['bv'][l, 0]
        heads = []
        for h in range(N_HEADS):
            sl = slice(h * D_K, (h + 1) * D_K)
            s = mm(q[:, sl], k[:, sl].T) * SCALE
            heads.append(mm(jax.nn.softmax(s, axis=-1), v[:, sl]))
        attn = mm(jnp.concatenate(heads, axis=-1), p['wo'][l]) + p['bo'][l, 0]
        u = _ln_ref(u + attn, p['g1'][l, 0], p['be1'][l, 0])
        ff = jax.nn.gelu(mm(u, p['w1'][l]) + p['b1'][l, 0])
        ff = mm(ff, p['w2'][l]) + p['b2'][l, 0]
        u = _ln_ref(u + ff, p['g2'][l, 0], p['be2'][l, 0])
    z = u.T.reshape(-1)                     # Flatten(start_dim=-2): index = d*P + p
    return mm(z[None, :], p['wh'])[0] + p['bh'][0]


def reference_forward(x, params):
    patches, mean, stdev = _preprocess_ref(x)
    y = jax.vmap(lambda s: _ref_encode_one(s, params))(patches)
    y = jnp.transpose(y.reshape(B, C, T), (0, 2, 1))               # (B, T, C)
    return y * stdev + mean                                        # RevIN denorm


# ------------------------------ parameters ------------------------------------
def init_params(key):
    keys = iter(jax.random.split(key, 24))

    def w(shape, s=0.1):
        return jax.random.normal(next(keys), shape, jnp.float32) * s

    ones = lambda shape: jnp.ones(shape, jnp.float32)
    zeros = lambda shape: jnp.zeros(shape, jnp.float32)
    return dict(
        wp=w((PATCH_LEN, D_MODEL)), bp=w((1, D_MODEL), 0.02),
        wpos=jax.random.uniform(next(keys), (PATCH_NUM, D_MODEL), jnp.float32, -0.02, 0.02),
        wq=w((N_LAYERS, D_MODEL, D_MODEL)), bq=w((N_LAYERS, 1, D_MODEL), 0.02),
        wk=w((N_LAYERS, D_MODEL, D_MODEL)), bk=w((N_LAYERS, 1, D_MODEL), 0.02),
        wv=w((N_LAYERS, D_MODEL, D_MODEL)), bv=w((N_LAYERS, 1, D_MODEL), 0.02),
        wo=w((N_LAYERS, D_MODEL, D_MODEL)), bo=w((N_LAYERS, 1, D_MODEL), 0.02),
        g1=ones((N_LAYERS, 1, D_MODEL)), be1=zeros((N_LAYERS, 1, D_MODEL)),
        w1=w((N_LAYERS, D_MODEL, D_FF)), b1=w((N_LAYERS, 1, D_FF), 0.02),
        w2=w((N_LAYERS, D_FF, D_MODEL)), b2=w((N_LAYERS, 1, D_MODEL), 0.02),
        g2=ones((N_LAYERS, 1, D_MODEL)), be2=zeros((N_LAYERS, 1, D_MODEL)),
        wh=w((HEAD_NF, T), 0.05), bh=w((1, T), 0.02),
    )


# ------------------------------ main -------------------------------------------
if __name__ == "__main__":
    root = jax.random.PRNGKey(0)
    pkey, xkey = jax.random.split(root)
    params = init_params(pkey)
    x = jax.random.normal(xkey, (B, L, C), jnp.float32)   # (batch, seq_len, channels)

    nstep = _detect_nstep()                 # 2 only on dual-TC v7x, else 1
    packed = pack_params(params, nstep)     # one-time packing, off the hot path
    forward = make_forward(nstep)

    out = forward(x, packed)
    out = jax.block_until_ready(out)

    assert out.shape == (B, T, C), out.shape
    ref = reference_forward(x, params)
    err = float(jnp.max(jnp.abs(out - ref)))
    # tolerance covers default-precision (bf16-truncated) MXU matmuls + approx recip
    assert bool(jnp.all(jnp.isfinite(out))) and err < 5e-2, f"mismatch: max abs err {err}"
    print("KERNEL_OK")
</pallas_src>

<mosaic_0001>
module attributes {stable_mosaic.version = 11 : i64} {
  func.func @kernel(%arg0: i32, %arg1: memref<1x8x32xf32, #tpu.memory_space<vmem>>, %arg2: memref<8x16xf32, #tpu.memory_space<vmem>>, %arg3: memref<64x16xf32, #tpu.memory_space<vmem>>, %arg4: memref<2x16x48xf32, #tpu.memory_space<vmem>>, %arg5: memref<2x16x16xf32, #tpu.memory_space<vmem>>, %arg6: memref<2x16x32xf32, #tpu.memory_space<vmem>>, %arg7: memref<2x32x16xf32, #tpu.memory_space<vmem>>, %arg8: memref<2x8x48xf32, #tpu.memory_space<vmem>>, %arg9: memref<128x8xf32, #tpu.memory_space<vmem>>, %arg10: memref<1x8xf32, #tpu.memory_space<vmem>>, %arg11: memref<64x256xf32, #tpu.memory_space<vmem>>, %arg12: memref<256x16xf32, #tpu.memory_space<vmem>>, %arg13: memref<1x8x8xf32, #tpu.memory_space<vmem>>) attributes {dimension_semantics = [#tpu.dimension_semantics<parallel>], iteration_bounds = array<i64: 1>, scalar_prefetch = 0 : i64, scratch_operands = 0 : i64, tpu.core_type = #tpu.core_type<tc>, window_params = [{transform_indices = @transform_0, window_bounds = array<i64: 1, 8, 32>}, {pipeline_mode = #tpu.pipeline_mode<synchronous>, transform_indices = @transform_1, window_bounds = array<i64: 8, 16>}, {pipeline_mode = #tpu.pipeline_mode<synchronous>, transform_indices = @transform_2, window_bounds = array<i64: 64, 16>}, {pipeline_mode = #tpu.pipeline_mode<synchronous>, transform_indices = @transform_3, window_bounds = array<i64: 2, 16, 48>}, {pipeline_mode = #tpu.pipeline_mode<synchronous>, transform_indices = @transform_4, window_bounds = array<i64: 2, 16, 16>}, {pipeline_mode = #tpu.pipeline_mode<synchronous>, transform_indices = @transform_5, window_bounds = array<i64: 2, 16, 32>}, {pipeline_mode = #tpu.pipeline_mode<synchronous>, transform_indices = @transform_6, window_bounds = array<i64: 2, 32, 16>}, {pipeline_mode = #tpu.pipeline_mode<synchronous>, transform_indices = @transform_7, window_bounds = array<i64: 2, 8, 48>}, {pipeline_mode = #tpu.pipeline_mode<synchronous>, transform_indices = @transform_8, window_bounds = array<i64: 128, 8>}, {pipeline_mode = #tpu.pipeline_mode<synchronous>, transform_indices = @transform_9, window_bounds = array<i64: 1, 8>}, {pipeline_mode = #tpu.pipeline_mode<synchronous>, transform_indices = @transform_10, window_bounds = array<i64: 64, 256>}, {pipeline_mode = #tpu.pipeline_mode<synchronous>, transform_indices = @transform_11, window_bounds = array<i64: 256, 16>}, {transform_indices = @transform_12, window_bounds = array<i64: 1, 8, 8>}]} {
    %c0 = arith.constant 0 : index
    %c0_0 = arith.constant 0 : index
    %c0_1 = arith.constant 0 : index
    %0 = vector.load %arg1[%c0, %c0_0, %c0_1] : memref<1x8x32xf32, #tpu.memory_space<vmem>>, vector<1x8x32xf32>
    %1 = vector.shape_cast %0 : vector<1x8x32xf32> to vector<8x32xf32>
    %cst = arith.constant dense<0.000000e+00> : vector<8xf32>
    %2 = vector.multi_reduction <add>, %1, %cst [1] : vector<8x32xf32> to vector<8xf32>
    %3 = vector.shape_cast %2 : vector<8xf32> to vector<8x1xf32>
    %cst_2 = arith.constant 3.200000e+01 : f32
    %4 = vector.broadcast %cst_2 : f32 to vector<8x1xf32>
    %5 = arith.divf %3, %4 : vector<8x1xf32>
    %6 = vector.broadcast %5 : vector<8x1xf32> to vector<8x32xf32>
    %7 = arith.subf %1, %6 : vector<8x32xf32>
    %8 = arith.mulf %7, %7 : vector<8x32xf32>
    %cst_3 = arith.constant dense<0.000000e+00> : vector<8xf32>
    %9 = vector.multi_reduction <add>, %8, %cst_3 [1] : vector<8x32xf32> to vector<8xf32>
    %10 = vector.shape_cast %9 : vector<8xf32> to vector<8x1xf32>
    %cst_4 = arith.constant 3.200000e+01 : f32
    %11 = vector.broadcast %cst_4 : f32 to vector<8x1xf32>
    %12 = arith.divf %10, %11 : vector<8x1xf32>
    %cst_5 = arith.constant 9.99999974E-6 : f32
    %13 = vector.broadcast %cst_5 : f32 to vector<8x1xf32>
    %14 = arith.addf %12, %13 : vector<8x1xf32>
    %15 = math.sqrt %14 : vector<8x1xf32>
    %16 = vector.broadcast %5 : vector<8x1xf32> to vector<8x32xf32>
    %17 = arith.subf %1, %16 : vector<8x32xf32>
    %cst_6 = arith.constant 9.99999974E-6 : f32
    %18 = vector.broadcast %cst_6 : f32 to vector<8x1xf32>
    %19 = arith.addf %12, %18 : vector<8x1xf32>
    %20 = math.rsqrt %19 : vector<8x1xf32>
    %21 = vector.broadcast %20 : vector<8x1xf32> to vector<8x32xf32>
    %22 = arith.mulf %17, %21 : vector<8x32xf32>
    %23 = vector.extract_strided_slice %22 {offsets = [0, 31], sizes = [8, 1], strides = [1, 1]} : vector<8x32xf32> to vector<8x1xf32>
    %24 = vector.shape_cast %23 : vector<8x1xf32> to vector<8x1xf32>
    %25 = vector.broadcast %24 : vector<8x1xf32> to vector<8x4xf32>
    %26 = tpu.concatenate %22, %25 in 1 : vector<8x32xf32>, vector<8x4xf32> -> vector<8x36xf32>
    %27 = vector.extract_strided_slice %26 {offsets = [0, 0], sizes = [8, 8], strides = [1, 1]} : vector<8x36xf32> to vector<8x8xf32>
    %28 = vector.extract_strided_slice %26 {offsets = [0, 4], sizes = [8, 8], strides = [1, 1]} : vector<8x36xf32> to vector<8x8xf32>
    %29 = vector.extract_strided_slice %26 {offsets = [0, 8], sizes = [8, 8], strides = [1, 1]} : vector<8x36xf32> to vector<8x8xf32>
    %30 = vector.extract_strided_slice %26 {offsets = [0, 12], sizes = [8, 8], strides = [1, 1]} : vector<8x36xf32> to vector<8x8xf32>
    %31 = vector.extract_strided_slice %26 {offsets = [0, 16], sizes = [8, 8], strides = [1, 1]} : vector<8x36xf32> to vector<8x8xf32>
    %32 = vector.extract_strided_slice %26 {offsets = [0, 20], sizes = [8, 8], strides = [1, 1]} : vector<8x36xf32> to vector<8x8xf32>
    %33 = vector.extract_strided_slice %26 {offsets = [0, 24], sizes = [8, 8], strides = [1, 1]} : vector<8x36xf32> to vector<8x8xf32>
    %34 = vector.extract_strided_slice %26 {offsets = [0, 28], sizes = [8, 8], strides = [1, 1]} : vector<8x36xf32> to vector<8x8xf32>
    %35 = tpu.concatenate %27, %28, %29, %30, %31, %32, %33, %34 in 0 : vector<8x8xf32>, vector<8x8xf32>, vector<8x8xf32>, vector<8x8xf32>, vector<8x8xf32>, vector<8x8xf32>, vector<8x8xf32>, vector<8x8xf32> -> vector<64x8xf32>
    %c0_7 = arith.constant 0 : index
    %c0_8 = arith.constant 0 : index
    %36 = vector.load %arg2[%c0_7, %c0_8] : memref<8x16xf32, #tpu.memory_space<vmem>>, vector<8x16xf32>
    %cst_9 = arith.constant dense<0.000000e+00> : vector<64x16xf32>
    %37 = tpu.matmul %35, %36, %cst_9 {dimension_numbers = #tpu.dot_dimension_numbers<[1], [0], [0], [1], [0, 0, 1, 1], [], []>} : vector<64x8xf32>, vector<8x16xf32>, vector<64x16xf32> -> vector<64x16xf32>
    %c0_10 = arith.constant 0 : index
    %c0_11 = arith.constant 0 : index
    %38 = vector.load %arg3[%c0_10, %c0_11] : memref<64x16xf32, #tpu.memory_space<vmem>>, vector<64x16xf32>
    %39 = arith.addf %37, %38 : vector<64x16xf32>
    %c0_12 = arith.constant 0 : index
    %c0_13 = arith.constant 0 : index
    %40 = vector.load %arg11[%c0_12, %c0_13] : memref<64x256xf32, #tpu.memory_space<vmem>>, vector<64x256xf32>
    %c0_14 = arith.constant 0 : index
    %c0_15 = arith.constant 0 : index
    %41 = vector.load %arg12[%c0_14, %c0_15] : memref<256x16xf32, #tpu.memory_space<vmem>>, vector<256x16xf32>
    %c0_16 = arith.constant 0 : index
    %c0_17 = arith.constant 0 : index
    %c0_18 = arith.constant 0 : index
    %42 = vector.load %arg8[%c0_16, %c0_17, %c0_18] : memref<2x8x48xf32, #tpu.memory_space<vmem>>, vector<1x8x48xf32>
    %43 = vector.shape_cast %42 : vector<1x8x48xf32> to vector<8x48xf32>
    %c0_19 = arith.constant 0 : index
    %c0_20 = arith.constant 0 : index
    %c0_21 = arith.constant 0 : index
    %44 = vector.load %arg4[%c0_19, %c0_20, %c0_21] : memref<2x16x48xf32, #tpu.memory_space<vmem>>, vector<1x16x48xf32>
    %45 = vector.shape_cast %44 : vector<1x16x48xf32> to vector<16x48xf32>
    %cst_22 = arith.constant dense<0.000000e+00> : vector<64x48xf32>
    %46 = tpu.matmul %39, %45, %cst_22 {dimension_numbers = #tpu.dot_dimension_numbers<[1], [0], [0], [1], [0, 0, 1, 1], [], []>} : vector<64x16xf32>, vector<16x48xf32>, vector<64x48xf32> -> vector<64x48xf32>
    %47 = vector.extract_strided_slice %43 {offsets = [0, 0], sizes = [1, 48], strides = [1, 1]} : vector<8x48xf32> to vector<1x48xf32>
    %48 = vector.broadcast %47 : vector<1x48xf32> to vector<64x48xf32>
    %49 = arith.addf %46, %48 : vector<64x48xf32>
    %50 = vector.extract_strided_slice %49 {offsets = [0, 0], sizes = [64, 16], strides = [1, 1]} : vector<64x48xf32> to vector<64x16xf32>
    %51 = vector.extract_strided_slice %49 {offsets = [0, 16], sizes = [64, 16], strides = [1, 1]} : vector<64x48xf32> to vector<64x16xf32>
    %52 = vector.extract_strided_slice %49 {offsets = [0, 32], sizes = [64, 16], strides = [1, 1]} : vector<64x48xf32> to vector<64x16xf32>
    %53 = tpu.concatenate %51, %51, %51, %51 in 0 : vector<64x16xf32>, vector<64x16xf32>, vector<64x16xf32>, vector<64x16xf32> -> vector<256x16xf32>
    %54 = arith.mulf %53, %41 : vector<256x16xf32>
    %55 = tpu.concatenate %52, %52, %52, %52 in 0 : vector<64x16xf32>, vector<64x16xf32>, vector<64x16xf32>, vector<64x16xf32> -> vector<256x16xf32>
    %56 = arith.mulf %55, %41 : vector<256x16xf32>
    %cst_23 = arith.constant dense<0.000000e+00> : vector<64x256xf32>
    %57 = tpu.matmul %50, %54, %cst_23 {dimension_numbers = #tpu.dot_dimension_numbers<[1], [1], [0], [0], [0, 0, 1, 0], [], []>} : vector<64x16xf32>, vector<256x16xf32>, vector<64x256xf32> -> vector<64x256xf32>
    %cst_24 = arith.constant 5.000000e-01 : f32
    %58 = vector.broadcast %cst_24 : f32 to vector<64x256xf32>
    %59 = arith.mulf %57, %58 : vector<64x256xf32>
    %60 = arith.addf %59, %40 : vector<64x256xf32>
    %cst_25 = arith.constant dense<0xFF800000> : vector<64xf32>
    %61 = vector.multi_reduction <maximumf>, %60, %cst_25 [1] : vector<64x256xf32> to vector<64xf32>
    %62 = vector.shape_cast %61 : vector<64xf32> to vector<64x1xf32>
    %63 = vector.broadcast %62 : vector<64x1xf32> to vector<64x256xf32>
    %64 = arith.subf %60, %63 : vector<64x256xf32>
    %65 = math.exp %64 : vector<64x256xf32>
    %66 = tpu.concatenate %56, %41 in 1 : vector<256x16xf32>, vector<256x16xf32> -> vector<256x32xf32>
    %cst_26 = arith.constant dense<0.000000e+00> : vector<64x32xf32>
    %67 = tpu.matmul %65, %66, %cst_26 {dimension_numbers = #tpu.dot_dimension_numbers<[1], [0], [0], [1], [0, 0, 1, 1], [], []>} : vector<64x256xf32>, vector<256x32xf32>, vector<64x32xf32> -> vector<64x32xf32>
    %68 = vector.extract_strided_slice %67 {offsets = [0, 0], sizes = [64, 16], strides = [1, 1]} : vector<64x32xf32> to vector<64x16xf32>
    %69 = vector.extract_strided_slice %67 {offsets = [0, 16], sizes = [64, 16], strides = [1, 1]} : vector<64x32xf32> to vector<64x16xf32>
    %70 = tpu.reciprocal %69 {approx = true} : vector<64x16xf32> -> vector<64x16xf32>
    %71 = arith.mulf %68, %70 : vector<64x16xf32>
    %c0_27 = arith.constant 0 : index
    %c0_28 = arith.constant 0 : index
    %c0_29 = arith.constant 0 : index
    %72 = vector.load %arg5[%c0_27, %c0_28, %c0_29] : memref<2x16x16xf32, #tpu.memory_space<vmem>>, vector<1x16x16xf32>
    %73 = vector.shape_cast %72 : vector<1x16x16xf32> to vector<16x16xf32>
    %cst_30 = arith.constant dense<0.000000e+00> : vector<64x16xf32>
    %74 = tpu.matmul %71, %73, %cst_30 {dimension_numbers = #tpu.dot_dimension_numbers<[1], [0], [0], [1], [0, 0, 1, 1], [], []>} : vector<64x16xf32>, vector<16x16xf32>, vector<64x16xf32> -> vector<64x16xf32>
    %75 = vector.extract_strided_slice %43 {offsets = [1, 0], sizes = [1, 16], strides = [1, 1]} : vector<8x48xf32> to vector<1x16xf32>
    %76 = vector.broadcast %75 : vector<1x16xf32> to vector<64x16xf32>
    %77 = arith.addf %74, %76 : vector<64x16xf32>
    %78 = arith.addf %39, %77 : vector<64x16xf32>
    %79 = vector.extract_strided_slice %43 {offsets = [2, 0], sizes = [1, 16], strides = [1, 1]} : vector<8x48xf32> to vector<1x16xf32>
    %80 = vector.extract_strided_slice %43 {offsets = [3, 0], sizes = [1, 16], strides = [1, 1]} : vector<8x48xf32> to vector<1x16xf32>
    %cst_31 = arith.constant dense<0.000000e+00> : vector<64xf32>
    %81 = vector.multi_reduction <add>, %78, %cst_31 [1] : vector<64x16xf32> to vector<64xf32>
    %82 = vector.shape_cast %81 : vector<64xf32> to vector<64x1xf32>
    %cst_32 = arith.constant 1.600000e+01 : f32
    %83 = vector.broadcast %cst_32 : f32 to vector<64x1xf32>
    %84 = arith.divf %82, %83 : vector<64x1xf32>
    %85 = vector.broadcast %84 : vector<64x1xf32> to vector<64x16xf32>
    %86 = arith.subf %78, %85 : vector<64x16xf32>
    %87 = arith.mulf %86, %86 : vector<64x16xf32>
    %cst_33 = arith.constant dense<0.000000e+00> : vector<64xf32>
    %88 = vector.multi_reduction <add>, %87, %cst_33 [1] : vector<64x16xf32> to vector<64xf32>
    %89 = vector.shape_cast %88 : vector<64xf32> to vector<64x1xf32>
    %cst_34 = arith.constant 1.600000e+01 : f32
    %90 = vector.broadcast %cst_34 : f32 to vector<64x1xf32>
    %91 = arith.divf %89, %90 : vector<64x1xf32>
    %92 = vector.broadcast %84 : vector<64x1xf32> to vector<64x16xf32>
    %93 = arith.subf %78, %92 : vector<64x16xf32>
    %cst_35 = arith.constant 9.99999974E-6 : f32
    %94 = vector.broadcast %cst_35 : f32 to vector<64x1xf32>
    %95 = arith.addf %91, %94 : vector<64x1xf32>
    %96 = math.rsqrt %95 : vector<64x1xf32>
    %97 = vector.broadcast %96 : vector<64x1xf32> to vector<64x16xf32>
    %98 = arith.mulf %93, %97 : vector<64x16xf32>
    %99 = vector.broadcast %79 : vector<1x16xf32> to vector<64x16xf32>
    %100 = arith.mulf %98, %99 : vector<64x16xf32>
    %101 = vector.broadcast %80 : vector<1x16xf32> to vector<64x16xf32>
    %102 = arith.addf %100, %101 : vector<64x16xf32>
    %c0_36 = arith.constant 0 : index
    %c0_37 = arith.constant 0 : index
    %c0_38 = arith.constant 0 : index
    %103 = vector.load %arg6[%c0_36, %c0_37, %c0_38] : memref<2x16x32xf32, #tpu.memory_space<vmem>>, vector<1x16x32xf32>
    %104 = vector.shape_cast %103 : vector<1x16x32xf32> to vector<16x32xf32>
    %cst_39 = arith.constant dense<0.000000e+00> : vector<64x32xf32>
    %105 = tpu.matmul %102, %104, %cst_39 {dimension_numbers = #tpu.dot_dimension_numbers<[1], [0], [0], [1], [0, 0, 1, 1], [], []>} : vector<64x16xf32>, vector<16x32xf32>, vector<64x32xf32> -> vector<64x32xf32>
    %106 = vector.extract_strided_slice %43 {offsets = [4, 0], sizes = [1, 32], strides = [1, 1]} : vector<8x48xf32> to vector<1x32xf32>
    %107 = vector.broadcast %106 : vector<1x32xf32> to vector<64x32xf32>
    %108 = arith.addf %105, %107 : vector<64x32xf32>
    %109 = arith.mulf %108, %108 : vector<64x32xf32>
    %110 = arith.mulf %108, %109 : vector<64x32xf32>
    %cst_40 = arith.constant 4.471500e-02 : f32
    %111 = vector.broadcast %cst_40 : f32 to vector<64x32xf32>
    %112 = arith.mulf %111, %110 : vector<64x32xf32>
    %113 = arith.addf %108, %112 : vector<64x32xf32>
    %cst_41 = arith.constant 0.797884583 : f32
    %114 = vector.broadcast %cst_41 : f32 to vector<64x32xf32>
    %115 = arith.mulf %114, %113 : vector<64x32xf32>
    %116 = math.tanh %115 : vector<64x32xf32>
    %cst_42 = arith.constant 1.000000e+00 : f32
    %117 = vector.broadcast %cst_42 : f32 to vector<64x32xf32>
    %118 = arith.addf %117, %116 : vector<64x32xf32>
    %cst_43 = arith.constant 5.000000e-01 : f32
    %119 = vector.broadcast %cst_43 : f32 to vector<64x32xf32>
    %120 = arith.mulf %119, %118 : vector<64x32xf32>
    %121 = arith.mulf %108, %120 : vector<64x32xf32>
    %c0_44 = arith.constant 0 : index
    %c0_45 = arith.constant 0 : index
    %c0_46 = arith.constant 0 : index
    %122 = vector.load %arg7[%c0_44, %c0_45, %c0_46] : memref<2x32x16xf32, #tpu.memory_space<vmem>>, vector<1x32x16xf32>
    %123 = vector.shape_cast %122 : vector<1x32x16xf32> to vector<32x16xf32>
    %cst_47 = arith.constant dense<0.000000e+00> : vector<64x16xf32>
    %124 = tpu.matmul %121, %123, %cst_47 {dimension_numbers = #tpu.dot_dimension_numbers<[1], [0], [0], [1], [0, 0, 1, 1], [], []>} : vector<64x32xf32>, vector<32x16xf32>, vector<64x16xf32> -> vector<64x16xf32>
    %125 = vector.extract_strided_slice %43 {offsets = [5, 0], sizes = [1, 16], strides = [1, 1]} : vector<8x48xf32> to vector<1x16xf32>
    %126 = vector.broadcast %125 : vector<1x16xf32> to vector<64x16xf32>
    %127 = arith.addf %124, %126 : vector<64x16xf32>
    %128 = arith.addf %102, %127 : vector<64x16xf32>
    %129 = vector.extract_strided_slice %43 {offsets = [6, 0], sizes = [1, 16], strides = [1, 1]} : vector<8x48xf32> to vector<1x16xf32>
    %130 = vector.extract_strided_slice %43 {offsets = [7, 0], sizes = [1, 16], strides = [1, 1]} : vector<8x48xf32> to vector<1x16xf32>
    %cst_48 = arith.constant dense<0.000000e+00> : vector<64xf32>
    %131 = vector.multi_reduction <add>, %128, %cst_48 [1] : vector<64x16xf32> to vector<64xf32>
    %132 = vector.shape_cast %131 : vector<64xf32> to vector<64x1xf32>
    %cst_49 = arith.constant 1.600000e+01 : f32
    %133 = vector.broadcast %cst_49 : f32 to vector<64x1xf32>
    %134 = arith.divf %132, %133 : vector<64x1xf32>
    %135 = vector.broadcast %134 : vector<64x1xf32> to vector<64x16xf32>
    %136 = arith.subf %128, %135 : vector<64x16xf32>
    %137 = arith.mulf %136, %136 : vector<64x16xf32>
    %cst_50 = arith.constant dense<0.000000e+00> : vector<64xf32>
    %138 = vector.multi_reduction <add>, %137, %cst_50 [1] : vector<64x16xf32> to vector<64xf32>
    %139 = vector.shape_cast %138 : vector<64xf32> to vector<64x1xf32>
    %cst_51 = arith.constant 1.600000e+01 : f32
    %140 = vector.broadcast %cst_51 : f32 to vector<64x1xf32>
    %141 = arith.divf %139, %140 : vector<64x1xf32>
    %142 = vector.broadcast %134 : vector<64x1xf32> to vector<64x16xf32>
    %143 = arith.subf %128, %142 : vector<64x16xf32>
    %cst_52 = arith.constant 9.99999974E-6 : f32
    %144 = vector.broadcast %cst_52 : f32 to vector<64x1xf32>
    %145 = arith.addf %141, %144 : vector<64x1xf32>
    %146 = math.rsqrt %145 : vector<64x1xf32>
    %147 = vector.broadcast %146 : vector<64x1xf32> to vector<64x16xf32>
    %148 = arith.mulf %143, %147 : vector<64x16xf32>
    %149 = vector.broadcast %129 : vector<1x16xf32> to vector<64x16xf32>
    %150 = arith.mulf %148, %149 : vector<64x16xf32>
    %151 = vector.broadcast %130 : vector<1x16xf32> to vector<64x16xf32>
    %152 = arith.addf %150, %151 : vector<64x16xf32>
    %c1 = arith.constant 1 : index
    %c0_53 = arith.constant 0 : index
    %c0_54 = arith.constant 0 : index
    %153 = vector.load %arg8[%c1, %c0_53, %c0_54] : memref<2x8x48xf32, #tpu.memory_space<vmem>>, vector<1x8x48xf32>
    %154 = vector.shape_cast %153 : vector<1x8x48xf32> to vector<8x48xf32>
    %c1_55 = arith.constant 1 : index
    %c0_56 = arith.constant 0 : index
    %c0_57 = arith.constant 0 : index
    %155 = vector.load %arg4[%c1_55, %c0_56, %c0_57] : memref<2x16x48xf32, #tpu.memory_space<vmem>>, vector<1x16x48xf32>
    %156 = vector.shape_cast %155 : vector<1x16x48xf32> to vector<16x48xf32>
    %cst_58 = arith.constant dense<0.000000e+00> : vector<64x48xf32>
    %157 = tpu.matmul %152, %156, %cst_58 {dimension_numbers = #tpu.dot_dimension_numbers<[1], [0], [0], [1], [0, 0, 1, 1], [], []>} : vector<64x16xf32>, vector<16x48xf32>, vector<64x48xf32> -> vector<64x48xf32>
    %158 = vector.extract_strided_slice %154 {offsets = [0, 0], sizes = [1, 48], strides = [1, 1]} : vector<8x48xf32> to vector<1x48xf32>
    %159 = vector.broadcast %158 : vector<1x48xf32> to vector<64x48xf32>
    %160 = arith.addf %157, %159 : vector<64x48xf32>
    %161 = vector.extract_strided_slice %160 {offsets = [0, 0], sizes = [64, 16], strides = [1, 1]} : vector<64x48xf32> to vector<64x16xf32>
    %162 = vector.extract_strided_slice %160 {offsets = [0, 16], sizes = [64, 16], strides = [1, 1]} : vector<64x48xf32> to vector<64x16xf32>
    %163 = vector.extract_strided_slice %160 {offsets = [0, 32], sizes = [64, 16], strides = [1, 1]} : vector<64x48xf32> to vector<64x16xf32>
    %164 = tpu.concatenate %162, %162, %162, %162 in 0 : vector<64x16xf32>, vector<64x16xf32>, vector<64x16xf32>, vector<64x16xf32> -> vector<256x16xf32>
    %165 = arith.mulf %164, %41 : vector<256x16xf32>
    %166 = tpu.concatenate %163, %163, %163, %163 in 0 : vector<64x16xf32>, vector<64x16xf32>, vector<64x16xf32>, vector<64x16xf32> -> vector<256x16xf32>
    %167 = arith.mulf %166, %41 : vector<256x16xf32>
    %cst_59 = arith.constant dense<0.000000e+00> : vector<64x256xf32>
    %168 = tpu.matmul %161, %165, %cst_59 {dimension_numbers = #tpu.dot_dimension_numbers<[1], [1], [0], [0], [0, 0, 1, 0], [], []>} : vector<64x16xf32>, vector<256x16xf32>, vector<64x256xf32> -> vector<64x256xf32>
    %cst_60 = arith.constant 5.000000e-01 : f32
    %169 = vector.broadcast %cst_60 : f32 to vector<64x256xf32>
    %170 = arith.mulf %168, %169 : vector<64x256xf32>
    %171 = arith.addf %170, %40 : vector<64x256xf32>
    %cst_61 = arith.constant dense<0xFF800000> : vector<64xf32>
    %172 = vector.multi_reduction <maximumf>, %171, %cst_61 [1] : vector<64x256xf32> to vector<64xf32>
    %173 = vector.shape_cast %172 : vector<64xf32> to vector<64x1xf32>
    %174 = vector.broadcast %173 : vector<64x1xf32> to vector<64x256xf32>
    %175 = arith.subf %171, %174 : vector<64x256xf32>
    %176 = math.exp %175 : vector<64x256xf32>
    %177 = tpu.concatenate %167, %41 in 1 : vector<256x16xf32>, vector<256x16xf32> -> vector<256x32xf32>
    %cst_62 = arith.constant dense<0.000000e+00> : vector<64x32xf32>
    %178 = tpu.matmul %176, %177, %cst_62 {dimension_numbers = #tpu.dot_dimension_numbers<[1], [0], [0], [1], [0, 0, 1, 1], [], []>} : vector<64x256xf32>, vector<256x32xf32>, vector<64x32xf32> -> vector<64x32xf32>
    %179 = vector.extract_strided_slice %178 {offsets = [0, 0], sizes = [64, 16], strides = [1, 1]} : vector<64x32xf32> to vector<64x16xf32>
    %180 = vector.extract_strided_slice %178 {offsets = [0, 16], sizes = [64, 16], strides = [1, 1]} : vector<64x32xf32> to vector<64x16xf32>
    %181 = tpu.reciprocal %180 {approx = true} : vector<64x16xf32> -> vector<64x16xf32>
    %182 = arith.mulf %179, %181 : vector<64x16xf32>
    %c1_63 = arith.constant 1 : index
    %c0_64 = arith.constant 0 : index
    %c0_65 = arith.constant 0 : index
    %183 = vector.load %arg5[%c1_63, %c0_64, %c0_65] : memref<2x16x16xf32, #tpu.memory_space<vmem>>, vector<1x16x16xf32>
    %184 = vector.shape_cast %183 : vector<1x16x16xf32> to vector<16x16xf32>
    %cst_66 = arith.constant dense<0.000000e+00> : vector<64x16xf32>
    %185 = tpu.matmul %182, %184, %cst_66 {dimension_numbers = #tpu.dot_dimension_numbers<[1], [0], [0], [1], [0, 0, 1, 1], [], []>} : vector<64x16xf32>, vector<16x16xf32>, vector<64x16xf32> -> vector<64x16xf32>
    %186 = vector.extract_strided_slice %154 {offsets = [1, 0], sizes = [1, 16], strides = [1, 1]} : vector<8x48xf32> to vector<1x16xf32>
    %187 = vector.broadcast %186 : vector<1x16xf32> to vector<64x16xf32>
    %188 = arith.addf %185, %187 : vector<64x16xf32>
    %189 = arith.addf %152, %188 : vector<64x16xf32>
    %190 = vector.extract_strided_slice %154 {offsets = [2, 0], sizes = [1, 16], strides = [1, 1]} : vector<8x48xf32> to vector<1x16xf32>
    %191 = vector.extract_strided_slice %154 {offsets = [3, 0], sizes = [1, 16], strides = [1, 1]} : vector<8x48xf32> to vector<1x16xf32>
    %cst_67 = arith.constant dense<0.000000e+00> : vector<64xf32>
    %192 = vector.multi_reduction <add>, %189, %cst_67 [1] : vector<64x16xf32> to vector<64xf32>
    %193 = vector.shape_cast %192 : vector<64xf32> to vector<64x1xf32>
    %cst_68 = arith.constant 1.600000e+01 : f32
    %194 = vector.broadcast %cst_68 : f32 to vector<64x1xf32>
    %195 = arith.divf %193, %194 : vector<64x1xf32>
    %196 = vector.broadcast %195 : vector<64x1xf32> to vector<64x16xf32>
    %197 = arith.subf %189, %196 : vector<64x16xf32>
    %198 = arith.mulf %197, %197 : vector<64x16xf32>
    %cst_69 = arith.constant dense<0.000000e+00> : vector<64xf32>
    %199 = vector.multi_reduction <add>, %198, %cst_69 [1] : vector<64x16xf32> to vector<64xf32>
    %200 = vector.shape_cast %199 : vector<64xf32> to vector<64x1xf32>
    %cst_70 = arith.constant 1.600000e+01 : f32
    %201 = vector.broadcast %cst_70 : f32 to vector<64x1xf32>
    %202 = arith.divf %200, %201 : vector<64x1xf32>
    %203 = vector.broadcast %195 : vector<64x1xf32> to vector<64x16xf32>
    %204 = arith.subf %189, %203 : vector<64x16xf32>
    %cst_71 = arith.constant 9.99999974E-6 : f32
    %205 = vector.broadcast %cst_71 : f32 to vector<64x1xf32>
    %206 = arith.addf %202, %205 : vector<64x1xf32>
    %207 = math.rsqrt %206 : vector<64x1xf32>
    %208 = vector.broadcast %207 : vector<64x1xf32> to vector<64x16xf32>
    %209 = arith.mulf %204, %208 : vector<64x16xf32>
    %210 = vector.broadcast %190 : vector<1x16xf32> to vector<64x16xf32>
    %211 = arith.mulf %209, %210 : vector<64x16xf32>
    %212 = vector.broadcast %191 : vector<1x16xf32> to vector<64x16xf32>
    %213 = arith.addf %211, %212 : vector<64x16xf32>
    %c1_72 = arith.constant 1 : index
    %c0_73 = arith.constant 0 : index
    %c0_74 = arith.constant 0 : index
    %214 = vector.load %arg6[%c1_72, %c0_73, %c0_74] : memref<2x16x32xf32, #tpu.memory_space<vmem>>, vector<1x16x32xf32>
    %215 = vector.shape_cast %214 : vector<1x16x32xf32> to vector<16x32xf32>
    %cst_75 = arith.constant dense<0.000000e+00> : vector<64x32xf32>
    %216 = tpu.matmul %213, %215, %cst_75 {dimension_numbers = #tpu.dot_dimension_numbers<[1], [0], [0], [1], [0, 0, 1, 1], [], []>} : vector<64x16xf32>, vector<16x32xf32>, vector<64x32xf32> -> vector<64x32xf32>
    %217 = vector.extract_strided_slice %154 {offsets = [4, 0], sizes = [1, 32], strides = [1, 1]} : vector<8x48xf32> to vector<1x32xf32>
    %218 = vector.broadcast %217 : vector<1x32xf32> to vector<64x32xf32>
    %219 = arith.addf %216, %218 : vector<64x32xf32>
    %220 = arith.mulf %219, %219 : vector<64x32xf32>
    %221 = arith.mulf %219, %220 : vector<64x32xf32>
    %cst_76 = arith.constant 4.471500e-02 : f32
    %222 = vector.broadcast %cst_76 : f32 to vector<64x32xf32>
    %223 = arith.mulf %222, %221 : vector<64x32xf32>
    %224 = arith.addf %219, %223 : vector<64x32xf32>
    %cst_77 = arith.constant 0.797884583 : f32
    %225 = vector.broadcast %cst_77 : f32 to vector<64x32xf32>
    %226 = arith.mulf %225, %224 : vector<64x32xf32>
    %227 = math.tanh %226 : vector<64x32xf32>
    %cst_78 = arith.constant 1.000000e+00 : f32
    %228 = vector.broadcast %cst_78 : f32 to vector<64x32xf32>
    %229 = arith.addf %228, %227 : vector<64x32xf32>
    %cst_79 = arith.constant 5.000000e-01 : f32
    %230 = vector.broadcast %cst_79 : f32 to vector<64x32xf32>
    %231 = arith.mulf %230, %229 : vector<64x32xf32>
    %232 = arith.mulf %219, %231 : vector<64x32xf32>
    %c1_80 = arith.constant 1 : index
    %c0_81 = arith.constant 0 : index
    %c0_82 = arith.constant 0 : index
    %233 = vector.load %arg7[%c1_80, %c0_81, %c0_82] : memref<2x32x16xf32, #tpu.memory_space<vmem>>, vector<1x32x16xf32>
    %234 = vector.shape_cast %233 : vector<1x32x16xf32> to vector<32x16xf32>
    %cst_83 = arith.constant dense<0.000000e+00> : vector<64x16xf32>
    %235 = tpu.matmul %232, %234, %cst_83 {dimension_numbers = #tpu.dot_dimension_numbers<[1], [0], [0], [1], [0, 0, 1, 1], [], []>} : vector<64x32xf32>, vector<32x16xf32>, vector<64x16xf32> -> vector<64x16xf32>
    %236 = vector.extract_strided_slice %154 {offsets = [5, 0], sizes = [1, 16], strides = [1, 1]} : vector<8x48xf32> to vector<1x16xf32>
    %237 = vector.broadcast %236 : vector<1x16xf32> to vector<64x16xf32>
    %238 = arith.addf %235, %237 : vector<64x16xf32>
    %239 = arith.addf %213, %238 : vector<64x16xf32>
    %240 = vector.extract_strided_slice %154 {offsets = [6, 0], sizes = [1, 16], strides = [1, 1]} : vector<8x48xf32> to vector<1x16xf32>
    %241 = vector.extract_strided_slice %154 {offsets = [7, 0], sizes = [1, 16], strides = [1, 1]} : vector<8x48xf32> to vector<1x16xf32>
    %cst_84 = arith.constant dense<0.000000e+00> : vector<64xf32>
    %242 = vector.multi_reduction <add>, %239, %cst_84 [1] : vector<64x16xf32> to vector<64xf32>
    %243 = vector.shape_cast %242 : vector<64xf32> to vector<64x1xf32>
    %cst_85 = arith.constant 1.600000e+01 : f32
    %244 = vector.broadcast %cst_85 : f32 to vector<64x1xf32>
    %245 = arith.divf %243, %244 : vector<64x1xf32>
    %246 = vector.broadcast %245 : vector<64x1xf32> to vector<64x16xf32>
    %247 = arith.subf %239, %246 : vector<64x16xf32>
    %248 = arith.mulf %247, %247 : vector<64x16xf32>
    %cst_86 = arith.constant dense<0.000000e+00> : vector<64xf32>
    %249 = vector.multi_reduction <add>, %248, %cst_86 [1] : vector<64x16xf32> to vector<64xf32>
    %250 = vector.shape_cast %249 : vector<64xf32> to vector<64x1xf32>
    %cst_87 = arith.constant 1.600000e+01 : f32
    %251 = vector.broadcast %cst_87 : f32 to vector<64x1xf32>
    %252 = arith.divf %250, %251 : vector<64x1xf32>
    %253 = vector.broadcast %245 : vector<64x1xf32> to vector<64x16xf32>
    %254 = arith.subf %239, %253 : vector<64x16xf32>
    %cst_88 = arith.constant 9.99999974E-6 : f32
    %255 = vector.broadcast %cst_88 : f32 to vector<64x1xf32>
    %256 = arith.addf %252, %255 : vector<64x1xf32>
    %257 = math.rsqrt %256 : vector<64x1xf32>
    %258 = vector.broadcast %257 : vector<64x1xf32> to vector<64x16xf32>
    %259 = arith.mulf %254, %258 : vector<64x16xf32>
    %260 = vector.broadcast %240 : vector<1x16xf32> to vector<64x16xf32>
    %261 = arith.mulf %259, %260 : vector<64x16xf32>
    %262 = vector.broadcast %241 : vector<1x16xf32> to vector<64x16xf32>
    %263 = arith.addf %261, %262 : vector<64x16xf32>
    %264 = vector.extract_strided_slice %263 {offsets = [0, 0], sizes = [8, 16], strides = [1, 1]} : vector<64x16xf32> to vector<8x16xf32>
    %265 = vector.extract_strided_slice %263 {offsets = [8, 0], sizes = [8, 16], strides = [1, 1]} : vector<64x16xf32> to vector<8x16xf32>
    %266 = vector.extract_strided_slice %263 {offsets = [16, 0], sizes = [8, 16], strides = [1, 1]} : vector<64x16xf32> to vector<8x16xf32>
    %267 = vector.extract_strided_slice %263 {offsets = [24, 0], sizes = [8, 16], strides = [1, 1]} : vector<64x16xf32> to vector<8x16xf32>
    %268 = vector.extract_strided_slice %263 {offsets = [32, 0], sizes = [8, 16], strides = [1, 1]} : vector<64x16xf32> to vector<8x16xf32>
    %269 = vector.extract_strided_slice %263 {offsets = [40, 0], sizes = [8, 16], strides = [1, 1]} : vector<64x16xf32> to vector<8x16xf32>
    %270 = vector.extract_strided_slice %263 {offsets = [48, 0], sizes = [8, 16], strides = [1, 1]} : vector<64x16xf32> to vector<8x16xf32>
    %271 = vector.extract_strided_slice %263 {offsets = [56, 0], sizes = [8, 16], strides = [1, 1]} : vector<64x16xf32> to vector<8x16xf32>
    %272 = tpu.concatenate %264, %265, %266, %267, %268, %269, %270, %271 in 1 : vector<8x16xf32>, vector<8x16xf32>, vector<8x16xf32>, vector<8x16xf32>, vector<8x16xf32>, vector<8x16xf32>, vector<8x16xf32>, vector<8x16xf32> -> vector<8x128xf32>
    %c0_89 = arith.constant 0 : index
    %c0_90 = arith.constant 0 : index
    %273 = vector.load %arg9[%c0_89, %c0_90] : memref<128x8xf32, #tpu.memory_space<vmem>>, vector<128x8xf32>
    %cst_91 = arith.constant dense<0.000000e+00> : vector<8x8xf32>
    %274 = tpu.matmul %272, %273, %cst_91 {dimension_numbers = #tpu.dot_dimension_numbers<[1], [0], [0], [1], [0, 0, 1, 1], [], []>} : vector<8x128xf32>, vector<128x8xf32>, vector<8x8xf32> -> vector<8x8xf32>
    %c0_92 = arith.constant 0 : index
    %c0_93 = arith.constant 0 : index
    %275 = vector.load %arg10[%c0_92, %c0_93] : memref<1x8xf32, #tpu.memory_space<vmem>>, vector<1x8xf32>
    %276 = vector.broadcast %275 : vector<1x8xf32> to vector<8x8xf32>
    %277 = arith.addf %274, %276 : vector<8x8xf32>
    %278 = vector.broadcast %15 : vector<8x1xf32> to vector<8x8xf32>
    %279 = arith.mulf %277, %278 : vector<8x8xf32>
    %280 = vector.broadcast %5 : vector<8x1xf32> to vector<8x8xf32>
    %281 = arith.addf %279, %280 : vector<8x8xf32>
    %c0_94 = arith.constant 0 : index
    %c0_95 = arith.constant 0 : index
    %c0_96 = arith.constant 0 : index
    %282 = vector.load %arg13[%c0_94, %c0_95, %c0_96] : memref<1x8x8xf32, #tpu.memory_space<vmem>>, vector<1x8x8xf32>
    %283 = vector.shape_cast %282 : vector<1x8x8xf32> to vector<8x8xf32>
    %284 = vector.shape_cast %281 : vector<8x8xf32> to vector<1x8x8xf32>
    tpu.vector_store %arg13[%c0_94, %c0_95, %c0_96], %284 {strides = array<i32>} : memref<1x8x8xf32, #tpu.memory_space<vmem>>, vector<1x8x8xf32>,
    return
  }
  func.func @transform_0(%arg0: i32) -> (i32, i32, i32) {
    %c0_i32 = arith.constant 0 : i32
    %c0_i32_0 = arith.constant 0 : i32
    %c0_i32_1 = arith.constant 0 : i32
    return %arg0, %c0_i32, %c0_i32_0 : i32, i32, i32
  }
  func.func @transform_1(%arg0: i32) -> (i32, i32) {
    %c0_i32 = arith.constant 0 : i32
    %c0_i32_0 = arith.constant 0 : i32
    %c0_i32_1 = arith.constant 0 : i32
    return %c0_i32, %c0_i32_0 : i32, i32
  }
  func.func @transform_2(%arg0: i32) -> (i32, i32) {
    %c0_i32 = arith.constant 0 : i32
    %c0_i32_0 = arith.constant 0 : i32
    %c0_i32_1 = arith.constant 0 : i32
    return %c0_i32, %c0_i32_0 : i32, i32
  }
  func.func @transform_3(%arg0: i32) -> (i32, i32, i32) {
    %c0_i32 = arith.constant 0 : i32
    %c0_i32_0 = arith.constant 0 : i32
    %c0_i32_1 = arith.constant 0 : i32
    %c0_i32_2 = arith.constant 0 : i32
    return %c0_i32, %c0_i32_0, %c0_i32_1 : i32, i32, i32
  }
  func.func @transform_4(%arg0: i32) -> (i32, i32, i32) {
    %c0_i32 = arith.constant 0 : i32
    %c0_i32_0 = arith.constant 0 : i32
    %c0_i32_1 = arith.constant 0 : i32
    %c0_i32_2 = arith.constant 0 : i32
    return %c0_i32, %c0_i32_0, %c0_i32_1 : i32, i32, i32
  }
  func.func @transform_5(%arg0: i32) -> (i32, i32, i32) {
    %c0_i32 = arith.constant 0 : i32
    %c0_i32_0 = arith.constant 0 : i32
    %c0_i32_1 = arith.constant 0 : i32
    %c0_i32_2 = arith.constant 0 : i32
    return %c0_i32, %c0_i32_0, %c0_i32_1 : i32, i32, i32
  }
  func.func @transform_6(%arg0: i32) -> (i32, i32, i32) {
    %c0_i32 = arith.constant 0 : i32
    %c0_i32_0 = arith.constant 0 : i32
    %c0_i32_1 = arith.constant 0 : i32
    %c0_i32_2 = arith.constant 0 : i32
    return %c0_i32, %c0_i32_0, %c0_i32_1 : i32, i32, i32
  }
  func.func @transform_7(%arg0: i32) -> (i32, i32, i32) {
    %c0_i32 = arith.constant 0 : i32
    %c0_i32_0 = arith.constant 0 : i32
    %c0_i32_1 = arith.constant 0 : i32
    %c0_i32_2 = arith.constant 0 : i32
    return %c0_i32, %c0_i32_0, %c0_i32_1 : i32, i32, i32
  }
  func.func @transform_8(%arg0: i32) -> (i32, i32) {
    %c0_i32 = arith.constant 0 : i32
    %c0_i32_0 = arith.constant 0 : i32
    %c0_i32_1 = arith.constant 0 : i32
    return %c0_i32, %c0_i32_0 : i32, i32
  }
  func.func @transform_9(%arg0: i32) -> (i32, i32) {
    %c0_i32 = arith.constant 0 : i32
    %c0_i32_0 = arith.constant 0 : i32
    %c0_i32_1 = arith.constant 0 : i32
    return %c0_i32, %c0_i32_0 : i32, i32
  }
  func.func @transform_10(%arg0: i32) -> (i32, i32) {
    %c0_i32 = arith.constant 0 : i32
    %c0_i32_0 = arith.constant 0 : i32
    %c0_i32_1 = arith.constant 0 : i32
    return %c0_i32, %c0_i32_0 : i32, i32
  }
  func.func @transform_11(%arg0: i32) -> (i32, i32) {
    %c0_i32 = arith.constant 0 : i32
    %c0_i32_0 = arith.constant 0 : i32
    %c0_i32_1 = arith.constant 0 : i32
    return %c0_i32, %c0_i32_0 : i32, i32
  }
  func.func @transform_12(%arg0: i32) -> (i32, i32, i32) {
    %c0_i32 = arith.constant 0 : i32
    %c0_i32_0 = arith.constant 0 : i32
    %c0_i32_1 = arith.constant 0 : i32
    return %arg0, %c0_i32, %c0_i32_0 : i32, i32, i32
  }
}

</mosaic_0001>

<llo_original>
// kernel: forward.1
$region0: #{forward.1}
  #allocation0 [shape = 'u32[]', space=smem, size = 0x4, offset = 0x4, fixed_abs, tag = 'smem constant byte address 0x4 - core index']
  #allocation1 [shape = 'u32[144,128]{1,0:T(1,128)}', space=vmem, size = 0x12000, scoped, tag = 'internal scratch']
  %s0 = inlined_call_operand.vmem [shape: f32[1,8,32], index: 0, kind: input, shape index: {}]
  %s1 = inlined_call_operand.vmem [shape: f32[8,16], index: 1, kind: input, shape index: {}]
  %s2 = inlined_call_operand.vmem [shape: f32[64,16], index: 2, kind: input, shape index: {}]
  %s3 = inlined_call_operand.vmem [shape: f32[2,16,48], index: 3, kind: input, shape index: {}]
  %s4 = inlined_call_operand.vmem [shape: f32[2,16,16], index: 4, kind: input, shape index: {}]
  %s5 = inlined_call_operand.vmem [shape: f32[2,16,32], index: 5, kind: input, shape index: {}]
  %s6 = inlined_call_operand.vmem [shape: f32[2,32,16], index: 6, kind: input, shape index: {}]
  %s7 = inlined_call_operand.vmem [shape: f32[2,8,48], index: 7, kind: input, shape index: {}]
  %s8 = inlined_call_operand.vmem [shape: f32[128,8], index: 8, kind: input, shape index: {}]
  %s9 = inlined_call_operand.vmem [shape: f32[1,8], index: 9, kind: input, shape index: {}]
  %s10 = inlined_call_operand.vmem [shape: f32[64,256], index: 10, kind: input, shape index: {}]
  %s11 = inlined_call_operand.vmem [shape: f32[256,16], index: 11, kind: input, shape index: {}]
  %s12 = inlined_call_operand.hbm [shape: f32[1,8,8], index: 12, kind: output, shape index: {}]
  %s13 = sld [smem:[#allocation0]]
  $region58: #{forward.1} parent=0
    _
  %s15 = ssub.s32 1, %s13
  %s16 = scalar_select 0, %s15, %s13
  $region1: #{forward.1} parent=0
    #allocation2 [shape = 'u8[4096]{0}', space=vmem, size = 0x1000, scoped, tag = 'output window, operand 0, single buffered']
    #allocation3 [shape = 's32[1]{0}', space=sflag, size = 0x4, scoped, tag = 'scoped memory for forward.1']
    %17 = vsyncpa [#allocation3], 0
    // Predicated region
    $region2: #{forward.1} parent=1 // pred_check
      _
    $region3: #{forward.1} parent=1 // pred_check_branch
      %19 = sbr.rel (0) target = $region5
    $region4: #{forward.1} parent=1 // pred_region
      _
    $region5: #{forward.1} parent=1 // pred_fallthru
      _
    // Predicated region
    $region6: #{forward.1} parent=1 // pred_check
      _
    $region7: #{forward.1} parent=1 // pred_check_branch
      %21 = sbr.rel (0) target = $region9
    $region8: #{forward.1} parent=1 // pred_region
      _
    $region9: #{forward.1} parent=1 // pred_fallthru
      _
    // Predicated region
    $region10: #{forward.1} parent=1 // pred_check
      _
    $region11: #{forward.1} parent=1 // pred_check_branch
      %23 = sbr.rel (0) target = $region13
    $region12: #{forward.1} parent=1 // pred_region
      _
    $region13: #{forward.1} parent=1 // pred_fallthru
      _
    // Predicated region
    $region14: #{forward.1} parent=1 // pred_check
      _
    $region15: #{forward.1} parent=1 // pred_check_branch
      %25 = sbr.rel (0) target = $region17
    $region16: #{forward.1} parent=1 // pred_region
      _
    $region17: #{forward.1} parent=1 // pred_fallthru
      _
    // Predicated region
    $region18: #{forward.1} parent=1 // pred_check
      _
    $region19: #{forward.1} parent=1 // pred_check_branch
      %27 = sbr.rel (0) target = $region21
    $region20: #{forward.1} parent=1 // pred_region
      _
    $region21: #{forward.1} parent=1 // pred_fallthru
      _
    // Predicated region
    $region22: #{forward.1} parent=1 // pred_check
      _
    $region23: #{forward.1} parent=1 // pred_check_branch
      %29 = sbr.rel (0) target = $region25
    $region24: #{forward.1} parent=1 // pred_region
      _
    $region25: #{forward.1} parent=1 // pred_fallthru
      _
    // Predicated region
    $region26: #{forward.1} parent=1 // pred_check
      _
    $region27: #{forward.1} parent=1 // pred_check_branch
      %31 = sbr.rel (0) target = $region29
    $region28: #{forward.1} parent=1 // pred_region
      _
    $region29: #{forward.1} parent=1 // pred_fallthru
      _
    // Predicated region
    $region30: #{forward.1} parent=1 // pred_check
      _
    $region31: #{forward.1} parent=1 // pred_check_branch
      %33 = sbr.rel (0) target = $region33
    $region32: #{forward.1} parent=1 // pred_region
      _
    $region33: #{forward.1} parent=1 // pred_fallthru
      _
    // Predicated region
    $region34: #{forward.1} parent=1 // pred_check
      _
    $region35: #{forward.1} parent=1 // pred_check_branch
      %35 = sbr.rel (0) target = $region37
    $region36: #{forward.1} parent=1 // pred_region
      _
    $region37: #{forward.1} parent=1 // pred_fallthru
      _
    // Predicated region
    $region38: #{forward.1} parent=1 // pred_check
      _
    $region39: #{forward.1} parent=1 // pred_check_branch
      %37 = sbr.rel (0) target = $region41
    $region40: #{forward.1} parent=1 // pred_region
      _
    $region41: #{forward.1} parent=1 // pred_fallthru
      _
    // Predicated region
    $region42: #{forward.1} parent=1 // pred_check
      _
    $region43: #{forward.1} parent=1 // pred_check_branch
      %39 = sbr.rel (0) target = $region45
    $region44: #{forward.1} parent=1 // pred_region
      _
    $region45: #{forward.1} parent=1 // pred_fallthru
      _
    // Predicated region
    $region46: #{forward.1} parent=1 // pred_check
      _
    $region47: #{forward.1} parent=1 // pred_check_branch
      %41 = sbr.rel (0) target = $region49
    $region48: #{forward.1} parent=1 // pred_region
      _
    $region49: #{forward.1} parent=1 // pred_fallthru
      _
    %v42 = vld [vmem:[%s0] sm:$0xff]
    %vm43 = vcmask 261120
    %v44 = vsel %vm43, %v42, 0.0
    %45 = vadd.xlane.f32.xlu0 %v44
    %v46 = vpop.xlane.xlu0 %45
    %v47 = vrcp.pop 32.0
    %v48 = vmul.f32 %v46, %v47
    %v49 = vsub.f32 %v42, %v48
    %v50 = vmul.f32 %v49, %v49
    %v51 = vsel %vm43, %v50, 0.0
    %52 = vadd.xlane.f32.xlu0 %v51
    %v53 = vpop.xlane.xlu0 %52
    %v54 = vmul.f32 %v53, %v47
    %v55 = vadd.f32 %v54, 1e-05
    %v56 = vrsqrt.pop %v55
    %v57 = vmul.f32 %v55, %v56
    %vm58 = vcmp.eq.f32.partialorder %v55, inf
    %v59 = vsel %vm58, %v55, %v57
    %vm60 = vcmp.eq.f32.partialorder %v55, 0.0
    %v61 = vand.u32 %v55, 2147483648
    %v62 = vsel %vm60, %v61, %v59
    %v63 = vrsqrt.pop %v55
    %v64 = vmul.f32 %v49, %v63
    %66 = vset.pattern.permute.xlu0 31
    %67 = vperm.xlu0 %66, %v64
    %v68 = vpop.permute.xlu0 %67
    %v70 = vsel %vm43, %v64, %v68
    %72 = vrot.lane.b32.xlu0 %v70, 124
    %v73 = vpop.permute.xlu0 %72
    %74 = vrot.lane.b32.xlu0 %v70, 120
    %v75 = vpop.permute.xlu0 %74
    %76 = vrot.lane.b32.xlu0 %v70, 116
    %v77 = vpop.permute.xlu0 %76
    %78 = vrot.lane.b32.xlu0 %v70, 112
    %v79 = vpop.permute.xlu0 %78
    %80 = vrot.lane.b32.xlu0 %v70, 108
    %v81 = vpop.permute.xlu0 %80
    %82 = vrot.lane.b32.xlu0 %v70, 104
    %v83 = vpop.permute.xlu0 %82
    %84 = vrot.lane.b32.xlu0 %v70, 100
    %v85 = vpop.permute.xlu0 %84
    %v86 = vld [vmem:[%s1] sm:$0xff]
    %v87 = vld [vmem:[%s2] sm:$0xff]
    %v88 = vld [vmem:[%s2 + $0x8] sm:$0xff]
    %v89 = vld [vmem:[%s2 + $0x10] sm:$0xff]
    %v90 = vld [vmem:[%s2 + $0x18] sm:$0xff]
    %v91 = vld [vmem:[%s2 + $0x20] sm:$0xff]
    %v92 = vld [vmem:[%s2 + $0x28] sm:$0xff]
    %v93 = vld [vmem:[%s2 + $0x30] sm:$0xff]
    %v94 = vld [vmem:[%s2 + $0x38] sm:$0xff]
    %vm95 = vcmask 64512
    %v96 = vsel %vm95, %v70, 0
    %v98 = vsel %vm95, %v73, 0
    %v100 = vsel %vm95, %v75, 0
    %v102 = vsel %vm95, %v77, 0
    %v104 = vsel %vm95, %v79, 0
    %v106 = vsel %vm95, %v81, 0
    %v108 = vsel %vm95, %v83, 0
    %v110 = vsel %vm95, %v85, 0
    %112 = vmatprep.subr.mxu0 0.0
    %113 = vmatpush1.msra.mxu0 %v86
    %114 = vmatprep.subr.mxu0 0.0
    %115 = vmatpush1.msra.mxu0 0.0
    %116 = vmatprep.subr.mxu0 0.0
    %117 = vmatpush1.msra.mxu0 0.0
    %118 = vmatprep.subr.mxu0 0.0
    %119 = vmatpush1.msra.mxu0 0.0
    %120 = vmatprep.subr.mxu0 0.0
    %121 = vmatpush1.msra.mxu0 0.0
    %122 = vmatprep.subr.mxu0 0.0
    %123 = vmatpush1.msra.mxu0 0.0
    %124 = vmatprep.subr.mxu0 0.0
    %125 = vmatpush1.msra.mxu0 0.0
    %126 = vmatprep.subr.mxu0 0.0
    %127 = vmatpush1.msra.mxu0 0.0
    %128 = vmatprep.subr.mxu0 0.0
    %129 = vmatpush1.msra.mxu0 0.0
    %130 = vmatprep.subr.mxu0 0.0
    %131 = vmatpush1.msra.mxu0 0.0
    %132 = vmatprep.subr.mxu0 0.0
    %133 = vmatpush1.msra.mxu0 0.0
    %134 = vmatprep.subr.mxu0 0.0
    %135 = vmatpush1.msra.mxu0 0.0
    %136 = vmatprep.subr.mxu0 0.0
    %137 = vmatpush1.msra.mxu0 0.0
    %138 = vmatprep.subr.mxu0 0.0
    %139 = vmatpush1.msra.mxu0 0.0
    %140 = vmatprep.subr.mxu0 0.0
    %141 = vmatpush1.msra.mxu0 0.0
    %142 = vmatprep.subr.mxu0 0.0
    %143 = vmatpush1.msra.mxu0 0.0
    %144 = vmatprep.subr.mxu0 0.0
    %145 = vmatpush1.msra.mxu0 0.0
    %146 = vmatprep.subr.mxu0 0.0
    %147 = vmatpush1.msra.mxu0 0.0
    %148 = vmatprep.subr.mxu0 0.0
    %149 = vmatpush1.msra.mxu0 0.0
    %150 = vmatprep.subr.mxu0 0.0
    %151 = vmatpush1.msra.mxu0 0.0
    %152 = vmatprep.subr.mxu0 0.0
    %153 = vmatpush1.msra.mxu0 0.0
    %154 = vmatprep.subr.mxu0 0.0
    %155 = vmatpush1.msra.mxu0 0.0
    %156 = vmatprep.subr.mxu0 0.0
    %157 = vmatpush1.msra.mxu0 0.0
    %158 = vmatprep.subr.mxu0 0.0
    %159 = vmatpush1.msra.mxu0 0.0
    %160 = vmatprep.subr.mxu0 0.0
    %161 = vmatpush1.msra.mxu0 0.0
    %162 = vmatprep.subr.mxu0 0.0
    %163 = vmatpush1.msra.mxu0 0.0
    %164 = vmatprep.subr.mxu0 0.0
    %165 = vmatpush1.msra.mxu0 0.0
    %166 = vmatprep.subr.mxu0 0.0
    %167 = vmatpush1.msra.mxu0 0.0
    %168 = vmatprep.subr.mxu0 0.0
    %169 = vmatpush1.msra.mxu0 0.0
    %170 = vmatprep.subr.mxu0 0.0
    %171 = vmatpush1.msra.mxu0 0.0
    %172 = vmatprep.subr.mxu0 0.0
    %173 = vmatpush1.msra.mxu0 0.0
    %174 = vmatprep.subr.mxu0 0.0
    %175 = vmatpush1.msra.mxu0 0.0
    %176 = vmatprep.mubr.f32.mxu0 0.0
    %177 = vmatmul.mubr.f32.gmra.mrb[0].mxu0 %v96
    %v178 = vpop.f32.mrb[0].mxu0
    %v179 = vadd.f32 %v87, %v178
    %v180 = vpop.f32.mrb[0].mxu0
    %181 = vmatprep.mubr.f32.mxu0 0.0
    %182 = vmatmul.mubr.f32.gmra.mrb[0].mxu0 %v98
    %v183 = vpop.f32.mrb[0].mxu0
    %v184 = vadd.f32 %v88, %v183
    %v185 = vpop.f32.mrb[0].mxu0
    %186 = vmatprep.mubr.f32.mxu0 0.0
    %187 = vmatmul.mubr.f32.gmra.mrb[0].mxu0 %v100
    %v188 = vpop.f32.mrb[0].mxu0
    %v189 = vadd.f32 %v89, %v188
    %v190 = vpop.f32.mrb[0].mxu0
    %191 = vmatprep.mubr.f32.mxu0 0.0
    %192 = vmatmul.mubr.f32.gmra.mrb[0].mxu0 %v102
    %v193 = vpop.f32.mrb[0].mxu0
    %v194 = vadd.f32 %v90, %v193
    %v195 = vpop.f32.mrb[0].mxu0
    %196 = vmatprep.mubr.f32.mxu0 0.0
    %197 = vmatmul.mubr.f32.gmra.mrb[0].mxu0 %v104
    %v198 = vpop.f32.mrb[0].mxu0
    %v199 = vadd.f32 %v91, %v198
    %v200 = vpop.f32.mrb[0].mxu0
    %201 = vmatprep.mubr.f32.mxu0 0.0
    %202 = vmatmul.mubr.f32.gmra.mrb[0].mxu0 %v106
    %v203 = vpop.f32.mrb[0].mxu0
    %v204 = vadd.f32 %v92, %v203
    %v205 = vpop.f32.mrb[0].mxu0
    %206 = vmatprep.mubr.f32.mxu0 0.0
    %207 = vmatmul.mubr.f32.gmra.mrb[0].mxu0 %v108
    %v208 = vpop.f32.mrb[0].mxu0
    %v209 = vadd.f32 %v93, %v208
    %v210 = vpop.f32.mrb[0].mxu0
    %211 = vmatprep.mubr.f32.mxu0 0.0
    %212 = vmatmul.mubr.f32.gmra.mrb[0].mxu0 %v110
    %v213 = vpop.f32.mrb[0].mxu0
    %v214 = vadd.f32 %v94, %v213
    %v215 = vpop.f32.mrb[0].mxu0
    %216 = vdwg.mxu0
    %v217 = vld [vmem:[%s10] sm:$0xff]
    %v218 = vld [vmem:[%s10 + $0x8] sm:$0xff]
    %v219 = vld [vmem:[%s10 + $0x10] sm:$0xff]
    %v220 = vld [vmem:[%s10 + $0x18] sm:$0xff]
    %v221 = vld [vmem:[%s10 + $0x20] sm:$0xff]
    %v222 = vld [vmem:[%s10 + $0x28] sm:$0xff]
    %v223 = vld [vmem:[%s10 + $0x30] sm:$0xff]
    %v224 = vld [vmem:[%s10 + $0x38] sm:$0xff]
    %v225 = vld [vmem:[%s10 + $0x40] sm:$0xff]
    %v226 = vld [vmem:[%s10 + $0x48] sm:$0xff]
    %v227 = vld [vmem:[%s10 + $0x50] sm:$0xff]
    %v228 = vld [vmem:[%s10 + $0x58] sm:$0xff]
    %v229 = vld [vmem:[%s10 + $0x60] sm:$0xff]
    %v230 = vld [vmem:[%s10 + $0x68] sm:$0xff]
    %v231 = vld [vmem:[%s10 + $0x70] sm:$0xff]
    %v232 = vld [vmem:[%s10 + $0x78] sm:$0xff]
    %v233 = vld [vmem:[%s11] sm:$0xff]
    %v234 = vld [vmem:[%s11 + $0x8] sm:$0xff]
    %v235 = vld [vmem:[%s11 + $0x10] sm:$0xff]
    %v236 = vld [vmem:[%s11 + $0x18] sm:$0xff]
    %v237 = vld [vmem:[%s11 + $0x20] sm:$0xff]
    %v238 = vld [vmem:[%s11 + $0x28] sm:$0xff]
    %v239 = vld [vmem:[%s11 + $0x30] sm:$0xff]
    %v240 = vld [vmem:[%s11 + $0x38] sm:$0xff]
    %v241 = vld [vmem:[%s11 + $0x40] sm:$0xff]
    %v242 = vld [vmem:[%s11 + $0x48] sm:$0xff]
    %v243 = vld [vmem:[%s11 + $0x50] sm:$0xff]
    %v244 = vld [vmem:[%s11 + $0x58] sm:$0xff]
    %v245 = vld [vmem:[%s11 + $0x60] sm:$0xff]
    %v246 = vld [vmem:[%s11 + $0x68] sm:$0xff]
    %v247 = vld [vmem:[%s11 + $0x70] sm:$0xff]
    %v248 = vld [vmem:[%s11 + $0x78] sm:$0xff]
    %v249 = vld [vmem:[%s11 + $0x80] sm:$0xff]
    %v250 = vld [vmem:[%s11 + $0x88] sm:$0xff]
    %v251 = vld [vmem:[%s11 + $0x90] sm:$0xff]
    %v252 = vld [vmem:[%s11 + $0x98] sm:$0xff]
    %v253 = vld [vmem:[%s11 + $0xa0] sm:$0xff]
    %v254 = vld [vmem:[%s11 + $0xa8] sm:$0xff]
    %v255 = vld [vmem:[%s11 + $0xb0] sm:$0xff]
    %v256 = vld [vmem:[%s11 + $0xb8] sm:$0xff]
    %v257 = vld [vmem:[%s11 + $0xc0] sm:$0xff]
    %v258 = vld [vmem:[%s11 + $0xc8] sm:$0xff]
    %v259 = vld [vmem:[%s11 + $0xd0] sm:$0xff]
    %v260 = vld [vmem:[%s11 + $0xd8] sm:$0xff]
    %v261 = vld [vmem:[%s11 + $0xe0] sm:$0xff]
    %v262 = vld [vmem:[%s11 + $0xe8] sm:$0xff]
    %v263 = vld [vmem:[%s11 + $0xf0] sm:$0xff]
    %v264 = vld [vmem:[%s11 + $0xf8] sm:$0xff]
    %v265 = vld [vmem:[%s7] sm:$0xff]
    %v266 = vld [vmem:[%s3] sm:$0xff]
    %v267 = vld [vmem:[%s3 + $0x8] sm:$0xff]
    %v268 = vlaneseq
    %v269 = vshrl.u32 %v268, 7
    %v270 = vsub.s32 0, %v269
    %v271 = vrot.slane %v265, %v270
    %vm272 = vcmask 130048
    %v274 = vsel %vm272, %v179, 0
    %v277 = vsel %vm272, %v184, 0
    %v280 = vsel %vm272, %v189, 0
    %v283 = vsel %vm272, %v194, 0
    %v286 = vsel %vm272, %v199, 0
    %v289 = vsel %vm272, %v204, 0
    %v292 = vsel %vm272, %v209, 0
    %v295 = vsel %vm272, %v214, 0
    %297 = vmatprep.subr.mxu0 0.0
    %298 = vmatpush1.msra.mxu0 %v266
    %299 = vmatprep.subr.mxu0 0.0
    %300 = vmatpush1.msra.mxu0 %v267
    %301 = vmatprep.subr.mxu0 0.0
    %302 = vmatpush1.msra.mxu0 0.0
    %303 = vmatprep.subr.mxu0 0.0
    %304 = vmatpush1.msra.mxu0 0.0
    %305 = vmatprep.subr.mxu0 0.0
    %306 = vmatpush1.msra.mxu0 0.0
    %307 = vmatprep.subr.mxu0 0.0
    %308 = vmatpush1.msra.mxu0 0.0
    %309 = vmatprep.subr.mxu0 0.0
    %310 = vmatpush1.msra.mxu0 0.0
    %311 = vmatprep.subr.mxu0 0.0
    %312 = vmatpush1.msra.mxu0 0.0
    %313 = vmatprep.subr.mxu0 0.0
    %314 = vmatpush1.msra.mxu0 0.0
    %315 = vmatprep.subr.mxu0 0.0
    %316 = vmatpush1.msra.mxu0 0.0
    %317 = vmatprep.subr.mxu0 0.0
    %318 = vmatpush1.msra.mxu0 0.0
    %319 = vmatprep.subr.mxu0 0.0
    %320 = vmatpush1.msra.mxu0 0.0
    %321 = vmatprep.subr.mxu0 0.0
    %322 = vmatpush1.msra.mxu0 0.0
    %323 = vmatprep.subr.mxu0 0.0
    %324 = vmatpush1.msra.mxu0 0.0
    %325 = vmatprep.subr.mxu0 0.0
    %326 = vmatpush1.msra.mxu0 0.0
    %327 = vmatprep.subr.mxu0 0.0
    %328 = vmatpush1.msra.mxu0 0.0
    %329 = vmatprep.subr.mxu0 0.0
    %330 = vmatpush1.msra.mxu0 0.0
    %331 = vmatprep.subr.mxu0 0.0
    %332 = vmatpush1.msra.mxu0 0.0
    %333 = vmatprep.subr.mxu0 0.0
    %334 = vmatpush1.msra.mxu0 0.0
    %335 = vmatprep.subr.mxu0 0.0
    %336 = vmatpush1.msra.mxu0 0.0
    %337 = vmatprep.subr.mxu0 0.0
    %338 = vmatpush1.msra.mxu0 0.0
    %339 = vmatprep.subr.mxu0 0.0
    %340 = vmatpush1.msra.mxu0 0.0
    %341 = vmatprep.subr.mxu0 0.0
    %342 = vmatpush1.msra.mxu0 0.0
    %343 = vmatprep.subr.mxu0 0.0
    %344 = vmatpush1.msra.mxu0 0.0
    %345 = vmatprep.subr.mxu0 0.0
    %346 = vmatpush1.msra.mxu0 0.0
    %347 = vmatprep.subr.mxu0 0.0
    %348 = vmatpush1.msra.mxu0 0.0
    %349 = vmatprep.subr.mxu0 0.0
    %350 = vmatpush1.msra.mxu0 0.0
    %351 = vmatprep.subr.mxu0 0.0
    %352 = vmatpush1.msra.mxu0 0.0
    %353 = vmatprep.subr.mxu0 0.0
    %354 = vmatpush1.msra.mxu0 0.0
    %355 = vmatprep.subr.mxu0 0.0
    %356 = vmatpush1.msra.mxu0 0.0
    %357 = vmatprep.subr.mxu0 0.0
    %358 = vmatpush1.msra.mxu0 0.0
    %359 = vmatprep.subr.mxu0 0.0
    %360 = vmatpush1.msra.mxu0 0.0
    %361 = vmatprep.mubr.f32.mxu0 0.0
    %362 = vmatmul.mubr.f32.gmra.mrb[0].mxu0 %v274
    %v363 = vpop.f32.mrb[0].mxu0
    %v364 = vadd.f32 %v271, %v363
    %v365 = vpop.f32.mrb[0].mxu0
    %366 = vmatprep.mubr.f32.mxu0 0.0
    %367 = vmatmul.mubr.f32.gmra.mrb[0].mxu0 %v277
    %v368 = vpop.f32.mrb[0].mxu0
    %v369 = vadd.f32 %v271, %v368
    %v370 = vpop.f32.mrb[0].mxu0
    %371 = vmatprep.mubr.f32.mxu0 0.0
    %372 = vmatmul.mubr.f32.gmra.mrb[0].mxu0 %v280
    %v373 = vpop.f32.mrb[0].mxu0
    %v374 = vadd.f32 %v271, %v373
    %v375 = vpop.f32.mrb[0].mxu0
    %376 = vmatprep.mubr.f32.mxu0 0.0
    %377 = vmatmul.mubr.f32.gmra.mrb[0].mxu0 %v283
    %v378 = vpop.f32.mrb[0].mxu0
    %v379 = vadd.f32 %v271, %v378
    %v380 = vpop.f32.mrb[0].mxu0
    %381 = vmatprep.mubr.f32.mxu0 0.0
    %382 = vmatmul.mubr.f32.gmra.mrb[0].mxu0 %v286
    %v383 = vpop.f32.mrb[0].mxu0
    %v384 = vadd.f32 %v271, %v383
    %v385 = vpop.f32.mrb[0].mxu0
    %386 = vmatprep.mubr.f32.mxu0 0.0
    %387 = vmatmul.mubr.f32.gmra.mrb[0].mxu0 %v289
    %v388 = vpop.f32.mrb[0].mxu0
    %v389 = vadd.f32 %v271, %v388
    %v390 = vpop.f32.mrb[0].mxu0
    %391 = vmatprep.mubr.f32.mxu0 0.0
    %392 = vmatmul.mubr.f32.gmra.mrb[0].mxu0 %v292
    %v393 = vpop.f32.mrb[0].mxu0
    %v394 = vadd.f32 %v271, %v393
    %v395 = vpop.f32.mrb[0].mxu0
    %396 = vmatprep.mubr.f32.mxu0 0.0
    %397 = vmatmul.mubr.f32.gmra.mrb[0].mxu0 %v295
    %v398 = vpop.f32.mrb[0].mxu0
    %v399 = vadd.f32 %v271, %v398
    %v400 = vpop.f32.mrb[0].mxu0
    %401 = vdwg.mxu0
    %434 = vrot.lane.b32.xlu0 %v233, 16
    %v435 = vpop.permute.xlu0 %434
    %436 = vrot.lane.b32.xlu0 %v234, 16
    %v437 = vpop.permute.xlu0 %436
    %438 = vrot.lane.b32.xlu0 %v235, 16
    %v439 = vpop.permute.xlu0 %438
    %440 = vrot.lane.b32.xlu0 %v236, 16
    %v441 = vpop.permute.xlu0 %440
    %442 = vrot.lane.b32.xlu0 %v237, 16
    %v443 = vpop.permute.xlu0 %442
    %444 = vrot.lane.b32.xlu0 %v238, 16
    %v445 = vpop.permute.xlu0 %444
    %446 = vrot.lane.b32.xlu0 %v239, 16
    %v447 = vpop.permute.xlu0 %446
    %448 = vrot.lane.b32.xlu0 %v240, 16
    %v449 = vpop.permute.xlu0 %448
    %450 = vrot.lane.b32.xlu0 %v241, 16
    %v451 = vpop.permute.xlu0 %450
    %452 = vrot.lane.b32.xlu0 %v242, 16
    %v453 = vpop.permute.xlu0 %452
    %454 = vrot.lane.b32.xlu0 %v243, 16
    %v455 = vpop.permute.xlu0 %454
    %456 = vrot.lane.b32.xlu0 %v244, 16
    %v457 = vpop.permute.xlu0 %456
    %458 = vrot.lane.b32.xlu0 %v245, 16
    %v459 = vpop.permute.xlu0 %458
    %460 = vrot.lane.b32.xlu0 %v246, 16
    %v461 = vpop.permute.xlu0 %460
    %462 = vrot.lane.b32.xlu0 %v247, 16
    %v463 = vpop.permute.xlu0 %462
    %464 = vrot.lane.b32.xlu0 %v248, 16
    %v465 = vpop.permute.xlu0 %464
    %466 = vrot.lane.b32.xlu0 %v249, 16
    %v467 = vpop.permute.xlu0 %466
    %468 = vrot.lane.b32.xlu0 %v250, 16
    %v469 = vpop.permute.xlu0 %468
    %470 = vrot.lane.b32.xlu0 %v251, 16
    %v471 = vpop.permute.xlu0 %470
    %472 = vrot.lane.b32.xlu0 %v252, 16
    %v473 = vpop.permute.xlu0 %472
    %474 = vrot.lane.b32.xlu0 %v253, 16
    %v475 = vpop.permute.xlu0 %474
    %476 = vrot.lane.b32.xlu0 %v254, 16
    %v477 = vpop.permute.xlu0 %476
    %478 = vrot.lane.b32.xlu0 %v255, 16
    %v479 = vpop.permute.xlu0 %478
    %480 = vrot.lane.b32.xlu0 %v256, 16
    %v481 = vpop.permute.xlu0 %480
    %482 = vrot.lane.b32.xlu0 %v257, 16
    %v483 = vpop.permute.xlu0 %482
    %484 = vrot.lane.b32.xlu0 %v258, 16
    %v485 = vpop.permute.xlu0 %484
    %486 = vrot.lane.b32.xlu0 %v259, 16
    %v487 = vpop.permute.xlu0 %486
    %488 = vrot.lane.b32.xlu0 %v260, 16
    %v489 = vpop.permute.xlu0 %488
    %490 = vrot.lane.b32.xlu0 %v261, 16
    %v491 = vpop.permute.xlu0 %490
    %492 = vrot.lane.b32.xlu0 %v262, 16
    %v493 = vpop.permute.xlu0 %492
    %494 = vrot.lane.b32.xlu0 %v263, 16
    %v495 = vpop.permute.xlu0 %494
    %496 = vrot.lane.b32.xlu0 %v264, 16
    %v497 = vpop.permute.xlu0 %496
    %v530 = vmul.f32 %v364, %v435
    %v531 = vmul.f32 %v369, %v437
    %v532 = vmul.f32 %v374, %v439
    %v533 = vmul.f32 %v379, %v441
    %v534 = vmul.f32 %v384, %v443
    %v535 = vmul.f32 %v389, %v445
    %v536 = vmul.f32 %v394, %v447
    %v537 = vmul.f32 %v399, %v449
    %v538 = vmul.f32 %v364, %v451
    %v539 = vmul.f32 %v369, %v453
    %v540 = vmul.f32 %v374, %v455
    %v541 = vmul.f32 %v379, %v457
    %v542 = vmul.f32 %v384, %v459
    %v543 = vmul.f32 %v389, %v461
    %v544 = vmul.f32 %v394, %v463
    %v545 = vmul.f32 %v399, %v465
    %v546 = vmul.f32 %v364, %v467
    %v547 = vmul.f32 %v369, %v469
    %v548 = vmul.f32 %v374, %v471
    %v549 = vmul.f32 %v379, %v473
    %v550 = vmul.f32 %v384, %v475
    %v551 = vmul.f32 %v389, %v477
    %v552 = vmul.f32 %v394, %v479
    %v553 = vmul.f32 %v399, %v481
    %v554 = vmul.f32 %v364, %v483
    %v555 = vmul.f32 %v369, %v485
    %v556 = vmul.f32 %v374, %v487
    %v557 = vmul.f32 %v379, %v489
    %v558 = vmul.f32 %v384, %v491
    %v559 = vmul.f32 %v389, %v493
    %v560 = vmul.f32 %v394, %v495
    %v561 = vmul.f32 %v399, %v497
    %562 = vrot.lane.b32.xlu0 %v233, 32
    %v563 = vpop.permute.xlu0 %562
    %564 = vrot.lane.b32.xlu0 %v234, 32
    %v565 = vpop.permute.xlu0 %564
    %566 = vrot.lane.b32.xlu0 %v235, 32
    %v567 = vpop.permute.xlu0 %566
    %568 = vrot.lane.b32.xlu0 %v236, 32
    %v569 = vpop.permute.xlu0 %568
    %570 = vrot.lane.b32.xlu0 %v237, 32
    %v571 = vpop.permute.xlu0 %570
    %572 = vrot.lane.b32.xlu0 %v238, 32
    %v573 = vpop.permute.xlu0 %572
    %574 = vrot.lane.b32.xlu0 %v239, 32
    %v575 = vpop.permute.xlu0 %574
    %576 = vrot.lane.b32.xlu0 %v240, 32
    %v577 = vpop.permute.xlu0 %576
    %578 = vrot.lane.b32.xlu0 %v241, 32
    %v579 = vpop.permute.xlu0 %578
    %580 = vrot.lane.b32.xlu0 %v242, 32
    %v581 = vpop.permute.xlu0 %580
    %582 = vrot.lane.b32.xlu0 %v243, 32
    %v583 = vpop.permute.xlu0 %582
    %584 = vrot.lane.b32.xlu0 %v244, 32
    %v585 = vpop.permute.xlu0 %584
    %586 = vrot.lane.b32.xlu0 %v245, 32
    %v587 = vpop.permute.xlu0 %586
    %588 = vrot.lane.b32.xlu0 %v246, 32
    %v589 = vpop.permute.xlu0 %588
    %590 = vrot.lane.b32.xlu0 %v247, 32
    %v591 = vpop.permute.xlu0 %590
    %592 = vrot.lane.b32.xlu0 %v248, 32
    %v593 = vpop.permute.xlu0 %592
    %594 = vrot.lane.b32.xlu0 %v249, 32
    %v595 = vpop.permute.xlu0 %594
    %596 = vrot.lane.b32.xlu0 %v250, 32
    %v597 = vpop.permute.xlu0 %596
    %598 = vrot.lane.b32.xlu0 %v251, 32
    %v599 = vpop.permute.xlu0 %598
    %600 = vrot.lane.b32.xlu0 %v252, 32
    %v601 = vpop.permute.xlu0 %600
    %602 = vrot.lane.b32.xlu0 %v253, 32
    %v603 = vpop.permute.xlu0 %602
    %604 = vrot.lane.b32.xlu0 %v254, 32
    %v605 = vpop.permute.xlu0 %604
    %606 = vrot.lane.b32.xlu0 %v255, 32
    %v607 = vpop.permute.xlu0 %606
    %608 = vrot.lane.b32.xlu0 %v256, 32
    %v609 = vpop.permute.xlu0 %608
    %610 = vrot.lane.b32.xlu0 %v257, 32
    %v611 = vpop.permute.xlu0 %610
    %612 = vrot.lane.b32.xlu0 %v258, 32
    %v613 = vpop.permute.xlu0 %612
    %614 = vrot.lane.b32.xlu0 %v259, 32
    %v615 = vpop.permute.xlu0 %614
    %616 = vrot.lane.b32.xlu0 %v260, 32
    %v617 = vpop.permute.xlu0 %616
    %618 = vrot.lane.b32.xlu0 %v261, 32
    %v619 = vpop.permute.xlu0 %618
    %620 = vrot.lane.b32.xlu0 %v262, 32
    %v621 = vpop.permute.xlu0 %620
    %622 = vrot.lane.b32.xlu0 %v263, 32
    %v623 = vpop.permute.xlu0 %622
    %624 = vrot.lane.b32.xlu0 %v264, 32
    %v625 = vpop.permute.xlu0 %624
    %v658 = vmul.f32 %v364, %v563
    %v659 = vmul.f32 %v369, %v565
    %v660 = vmul.f32 %v374, %v567
    %v661 = vmul.f32 %v379, %v569
    %v662 = vmul.f32 %v384, %v571
    %v663 = vmul.f32 %v389, %v573
    %v664 = vmul.f32 %v394, %v575
    %v665 = vmul.f32 %v399, %v577
    %v666 = vmul.f32 %v364, %v579
    %v667 = vmul.f32 %v369, %v581
    %v668 = vmul.f32 %v374, %v583
    %v669 = vmul.f32 %v379, %v585
    %v670 = vmul.f32 %v384, %v587
    %v671 = vmul.f32 %v389, %v589
    %v672 = vmul.f32 %v394, %v591
    %v673 = vmul.f32 %v399, %v593
    %v674 = vmul.f32 %v364, %v595
    %v675 = vmul.f32 %v369, %v597
    %v676 = vmul.f32 %v374, %v599
    %v677 = vmul.f32 %v379, %v601
    %v678 = vmul.f32 %v384, %v603
    %v679 = vmul.f32 %v389, %v605
    %v680 = vmul.f32 %v394, %v607
    %v681 = vmul.f32 %v399, %v609
    %v682 = vmul.f32 %v364, %v611
    %v683 = vmul.f32 %v369, %v613
    %v684 = vmul.f32 %v374, %v615
    %v685 = vmul.f32 %v379, %v617
    %v686 = vmul.f32 %v384, %v619
    %v687 = vmul.f32 %v389, %v621
    %v688 = vmul.f32 %v394, %v623
    %v689 = vmul.f32 %v399, %v625
    %722 = vrot.lane.b32.xlu0 %v530, 112
    %v723 = vpop.permute.xlu0 %722
    %724 = vrot.lane.b32.xlu0 %v531, 112
    %v725 = vpop.permute.xlu0 %724
    %726 = vrot.lane.b32.xlu0 %v532, 112
    %v727 = vpop.permute.xlu0 %726
    %728 = vrot.lane.b32.xlu0 %v533, 112
    %v729 = vpop.permute.xlu0 %728
    %730 = vrot.lane.b32.xlu0 %v534, 112
    %v731 = vpop.permute.xlu0 %730
    %732 = vrot.lane.b32.xlu0 %v535, 112
    %v733 = vpop.permute.xlu0 %732
    %734 = vrot.lane.b32.xlu0 %v536, 112
    %v735 = vpop.permute.xlu0 %734
    %736 = vrot.lane.b32.xlu0 %v537, 112
    %v737 = vpop.permute.xlu0 %736
    %738 = vrot.lane.b32.xlu0 %v538, 112
    %v739 = vpop.permute.xlu0 %738
    %740 = vrot.lane.b32.xlu0 %v539, 112
    %v741 = vpop.permute.xlu0 %740
    %742 = vrot.lane.b32.xlu0 %v540, 112
    %v743 = vpop.permute.xlu0 %742
    %744 = vrot.lane.b32.xlu0 %v541, 112
    %v745 = vpop.permute.xlu0 %744
    %746 = vrot.lane.b32.xlu0 %v542, 112
    %v747 = vpop.permute.xlu0 %746
    %748 = vrot.lane.b32.xlu0 %v543, 112
    %v749 = vpop.permute.xlu0 %748
    %750 = vrot.lane.b32.xlu0 %v544, 112
    %v751 = vpop.permute.xlu0 %750
    %752 = vrot.lane.b32.xlu0 %v545, 112
    %v753 = vpop.permute.xlu0 %752
    %754 = vrot.lane.b32.xlu0 %v546, 112
    %v755 = vpop.permute.xlu0 %754
    %756 = vrot.lane.b32.xlu0 %v547, 112
    %v757 = vpop.permute.xlu0 %756
    %758 = vrot.lane.b32.xlu0 %v548, 112
    %v759 = vpop.permute.xlu0 %758
    %760 = vrot.lane.b32.xlu0 %v549, 112
    %v761 = vpop.permute.xlu0 %760
    %762 = vrot.lane.b32.xlu0 %v550, 112
    %v763 = vpop.permute.xlu0 %762
    %764 = vrot.lane.b32.xlu0 %v551, 112
    %v765 = vpop.permute.xlu0 %764
    %766 = vrot.lane.b32.xlu0 %v552, 112
    %v767 = vpop.permute.xlu0 %766
    %768 = vrot.lane.b32.xlu0 %v553, 112
    %v769 = vpop.permute.xlu0 %768
    %770 = vrot.lane.b32.xlu0 %v554, 112
    %v771 = vpop.permute.xlu0 %770
    %772 = vrot.lane.b32.xlu0 %v555, 112
    %v773 = vpop.permute.xlu0 %772
    %774 = vrot.lane.b32.xlu0 %v556, 112
    %v775 = vpop.permute.xlu0 %774
    %776 = vrot.lane.b32.xlu0 %v557, 112
    %v777 = vpop.permute.xlu0 %776
    %778 = vrot.lane.b32.xlu0 %v558, 112
    %v779 = vpop.permute.xlu0 %778
    %780 = vrot.lane.b32.xlu0 %v559, 112
    %v781 = vpop.permute.xlu0 %780
    %782 = vrot.lane.b32.xlu0 %v560, 112
    %v783 = vpop.permute.xlu0 %782
    %784 = vrot.lane.b32.xlu0 %v561, 112
    %v785 = vpop.permute.xlu0 %784
    %v787 = vsel %vm272, %v364, 0
    %v790 = vsel %vm272, %v369, 0
    %v793 = vsel %vm272, %v374, 0
    %v796 = vsel %vm272, %v379, 0
    %v799 = vsel %vm272, %v384, 0
    %v802 = vsel %vm272, %v389, 0
    %v805 = vsel %vm272, %v394, 0
    %v808 = vsel %vm272, %v399, 0
    %v810 = vsel %vm272, %v723, 0
    %v812 = vsel %vm272, %v725, 0
    %v814 = vsel %vm272, %v727, 0
    %v816 = vsel %vm272, %v729, 0
    %v818 = vsel %vm272, %v731, 0
    %v820 = vsel %vm272, %v733, 0
    %v822 = vsel %vm272, %v735, 0
    %v824 = vsel %vm272, %v737, 0
    %v826 = vsel %vm272, %v739, 0
    %v828 = vsel %vm272, %v741, 0
    %v830 = vsel %vm272, %v743, 0
    %v832 = vsel %vm272, %v745, 0
    %v834 = vsel %vm272, %v747, 0
    %v836 = vsel %vm272, %v749, 0
    %v838 = vsel %vm272, %v751, 0
    %v840 = vsel %vm272, %v753, 0
    %v842 = vsel %vm272, %v755, 0
    %v844 = vsel %vm272, %v757, 0
    %v846 = vsel %vm272, %v759, 0
    %v848 = vsel %vm272, %v761, 0
    %v850 = vsel %vm272, %v763, 0
    %v852 = vsel %vm272, %v765, 0
    %v854 = vsel %vm272, %v767, 0
    %v856 = vsel %vm272, %v769, 0
    %v858 = vsel %vm272, %v771, 0
    %v860 = vsel %vm272, %v773, 0
    %v862 = vsel %vm272, %v775, 0
    %v864 = vsel %vm272, %v777, 0
    %v866 = vsel %vm272, %v779, 0
    %v868 = vsel %vm272, %v781, 0
    %v870 = vsel %vm272, %v783, 0
    %v872 = vsel %vm272, %v785, 0
    %874 = vmatprep.subr.mxu0 0.0
    %875 = vmatpush1.xpose.msra.mxu0 %v810
    %876 = vmatprep.subr.mxu0 0.0
    %877 = vmatpush1.xpose.msra.mxu0 %v812
    %878 = vmatprep.subr.mxu0 0.0
    %879 = vmatpush1.xpose.msra.mxu0 %v814
    %880 = vmatprep.subr.mxu0 0.0
    %881 = vmatpush1.xpose.msra.mxu0 %v816
    %882 = vmatprep.subr.mxu0 0.0
    %883 = vmatpush1.xpose.msra.mxu0 %v818
    %884 = vmatprep.subr.mxu0 0.0
    %885 = vmatpush1.xpose.msra.mxu0 %v820
    %886 = vmatprep.subr.mxu0 0.0
    %887 = vmatpush1.xpose.msra.mxu0 %v822
    %888 = vmatprep.subr.mxu0 0.0
    %889 = vmatpush1.xpose.msra.mxu0 %v824
    %890 = vmatprep.subr.mxu0 0.0
    %891 = vmatpush1.xpose.msra.mxu0 %v826
    %892 = vmatprep.subr.mxu0 0.0
    %893 = vmatpush1.xpose.msra.mxu0 %v828
    %894 = vmatprep.subr.mxu0 0.0
    %895 = vmatpush1.xpose.msra.mxu0 %v830
    %896 = vmatprep.subr.mxu0 0.0
    %897 = vmatpush1.xpose.msra.mxu0 %v832
    %898 = vmatprep.subr.mxu0 0.0
    %899 = vmatpush1.xpose.msra.mxu0 %v834
    %900 = vmatprep.subr.mxu0 0.0
    %901 = vmatpush1.xpose.msra.mxu0 %v836
    %902 = vmatprep.subr.mxu0 0.0
    %903 = vmatpush1.xpose.msra.mxu0 %v838
    %904 = vmatprep.subr.mxu0 0.0
    %905 = vmatpush1.xpose.msra.mxu0 %v840
    %906 = vmatprep.subr.mxu0 0.0
    %907 = vmatpush1.xpose.msra.mxu0 %v842
    %908 = vmatprep.subr.mxu0 0.0
    %909 = vmatpush1.xpose.msra.mxu0 %v844
    %910 = vmatprep.subr.mxu0 0.0
    %911 = vmatpush1.xpose.msra.mxu0 %v846
    %912 = vmatprep.subr.mxu0 0.0
    %913 = vmatpush1.xpose.msra.mxu0 %v848
    %914 = vmatprep.subr.mxu0 0.0
    %915 = vmatpush1.xpose.msra.mxu0 %v850
    %916 = vmatprep.subr.mxu0 0.0
    %917 = vmatpush1.xpose.msra.mxu0 %v852
    %918 = vmatprep.subr.mxu0 0.0
    %919 = vmatpush1.xpose.msra.mxu0 %v854
    %920 = vmatprep.subr.mxu0 0.0
    %921 = vmatpush1.xpose.msra.mxu0 %v856
    %922 = vmatprep.subr.mxu0 0.0
    %923 = vmatpush1.xpose.msra.mxu0 %v858
    %924 = vmatprep.subr.mxu0 0.0
    %925 = vmatpush1.xpose.msra.mxu0 %v860
    %926 = vmatprep.subr.mxu0 0.0
    %927 = vmatpush1.xpose.msra.mxu0 %v862
    %928 = vmatprep.subr.mxu0 0.0
    %929 = vmatpush1.xpose.msra.mxu0 %v864
    %930 = vmatprep.subr.mxu0 0.0
    %931 = vmatpush1.xpose.msra.mxu0 %v866
    %932 = vmatprep.subr.mxu0 0.0
    %933 = vmatpush1.xpose.msra.mxu0 %v868
    %934 = vmatprep.subr.mxu0 0.0
    %935 = vmatpush1.xpose.msra.mxu0 %v870
    %936 = vmatprep.subr.mxu0 0.0
    %937 = vmatpush1.xpose.msra.mxu0 %v872
    %938 = vmatprep.mubr.f32.mxu0 0.0
    %939 = vmatmul.mubr.f32.gmra.mrb[0].mxu0 %v787
    %v940 = vpop.f32.mrb[0].mxu0
    %v941 = vadd.f32 0.0, %v940
    %v942 = vpop.f32.mrb[0].mxu0
    %v943 = vadd.f32 0.0, %v942
    %944 = vmatprep.mubr.f32.mxu0 0.0
    %945 = vmatmul.mubr.f32.gmra.mrb[0].mxu0 %v790
    %v946 = vpop.f32.mrb[0].mxu0
    %v947 = vadd.f32 0.0, %v946
    %v948 = vpop.f32.mrb[0].mxu0
    %v949 = vadd.f32 0.0, %v948
    %950 = vmatprep.mubr.f32.mxu0 0.0
    %951 = vmatmul.mubr.f32.gmra.mrb[0].mxu0 %v793
    %v952 = vpop.f32.mrb[0].mxu0
    %v953 = vadd.f32 0.0, %v952
    %v954 = vpop.f32.mrb[0].mxu0
    %v955 = vadd.f32 0.0, %v954
    %956 = vmatprep.mubr.f32.mxu0 0.0
    %957 = vmatmul.mubr.f32.gmra.mrb[0].mxu0 %v796
    %v958 = vpop.f32.mrb[0].mxu0
    %v959 = vadd.f32 0.0, %v958
    %v960 = vpop.f32.mrb[0].mxu0
    %v961 = vadd.f32 0.0, %v960
    %962 = vmatprep.mubr.f32.mxu0 0.0
    %963 = vmatmul.mubr.f32.gmra.mrb[0].mxu0 %v799
    %v964 = vpop.f32.mrb[0].mxu0
    %v965 = vadd.f32 0.0, %v964
    %v966 = vpop.f32.mrb[0].mxu0
    %v967 = vadd.f32 0.0, %v966
    %968 = vmatprep.mubr.f32.mxu0 0.0
    %969 = vmatmul.mubr.f32.gmra.mrb[0].mxu0 %v802
    %v970 = vpop.f32.mrb[0].mxu0
    %v971 = vadd.f32 0.0, %v970
    %v972 = vpop.f32.mrb[0].mxu0
    %v973 = vadd.f32 0.0, %v972
    %974 = vmatprep.mubr.f32.mxu0 0.0
    %975 = vmatmul.mubr.f32.gmra.mrb[0].mxu0 %v805
    %v976 = vpop.f32.mrb[0].mxu0
    %v977 = vadd.f32 0.0, %v976
    %v978 = vpop.f32.mrb[0].mxu0
    %v979 = vadd.f32 0.0, %v978
    %980 = vmatprep.mubr.f32.mxu0 0.0
    %981 = vmatmul.mubr.f32.gmra.mrb[0].mxu0 %v808
    %v982 = vpop.f32.mrb[0].mxu0
    %v983 = vadd.f32 0.0, %v982
    %v984 = vpop.f32.mrb[0].mxu0
    %v985 = vadd.f32 0.0, %v984
    %986 = vdwg.mxu0
    %v987 = vmul.f32 %v941, 0.5
    %v988 = vmul.f32 %v943, 0.5
    %v989 = vmul.f32 %v947, 0.5
    %v990 = vmul.f32 %v949, 0.5
    %v991 = vmul.f32 %v953, 0.5
    %v992 = vmul.f32 %v955, 0.5
    %v993 = vmul.f32 %v959, 0.5
    %v994 = vmul.f32 %v961, 0.5
    %v995 = vmul.f32 %v965, 0.5
    %v996 = vmul.f32 %v967, 0.5
    %v997 = vmul.f32 %v971, 0.5
    %v998 = vmul.f32 %v973, 0.5
    %v999 = vmul.f32 %v977, 0.5
    %v1000 = vmul.f32 %v979, 0.5
    %v1001 = vmul.f32 %v983, 0.5
    %v1002 = vmul.f32 %v985, 0.5
    %v1003 = vadd.f32 %v987, %v217
    %v1004 = vadd.f32 %v988, %v218
    %v1005 = vadd.f32 %v989, %v219
    %v1006 = vadd.f32 %v990, %v220
    %v1007 = vadd.f32 %v991, %v221
    %v1008 = vadd.f32 %v992, %v222
    %v1009 = vadd.f32 %v993, %v223
    %v1010 = vadd.f32 %v994, %v224
    %v1011 = vadd.f32 %v995, %v225
    %v1012 = vadd.f32 %v996, %v226
    %v1013 = vadd.f32 %v997, %v227
    %v1014 = vadd.f32 %v998, %v228
    %v1015 = vadd.f32 %v999, %v229
    %v1016 = vadd.f32 %v1000, %v230
    %v1017 = vadd.f32 %v1001, %v231
    %v1018 = vadd.f32 %v1002, %v232
    %v1019 = vmax.f32 %v1003, %v1004
    %1020 = vmax.xlane.f32.xlu0 %v1019
    %v1021 = vpop.xlane.xlu0 %1020
    %v1022 = vmax.f32 %v1005, %v1006
    %1023 = vmax.xlane.f32.xlu0 %v1022
    %v1024 = vpop.xlane.xlu0 %1023
    %v1025 = vmax.f32 %v1007, %v1008
    %1026 = vmax.xlane.f32.xlu0 %v1025
    %v1027 = vpop.xlane.xlu0 %1026
    %v1028 = vmax.f32 %v1009, %v1010
    %1029 = vmax.xlane.f32.xlu0 %v1028
    %v1030 = vpop.xlane.xlu0 %1029
    %v1031 = vmax.f32 %v1011, %v1012
    %1032 = vmax.xlane.f32.xlu0 %v1031
    %v1033 = vpop.xlane.xlu0 %1032
    %v1034 = vmax.f32 %v1013, %v1014
    %1035 = vmax.xlane.f32.xlu0 %v1034
    %v1036 = vpop.xlane.xlu0 %1035
    %v1037 = vmax.f32 %v1015, %v1016
    %1038 = vmax.xlane.f32.xlu0 %v1037
    %v1039 = vpop.xlane.xlu0 %1038
    %v1040 = vmax.f32 %v1017, %v1018
    %1041 = vmax.xlane.f32.xlu0 %v1040
    %v1042 = vpop.xlane.xlu0 %1041
    %v1043 = vsub.f32 %v1003, %v1021
    %v1044 = vsub.f32 %v1004, %v1021
    %v1045 = vsub.f32 %v1005, %v1024
    %v1046 = vsub.f32 %v1006, %v1024
    %v1047 = vsub.f32 %v1007, %v1027
    %v1048 = vsub.f32 %v1008, %v1027
    %v1049 = vsub.f32 %v1009, %v1030
    %v1050 = vsub.f32 %v1010, %v1030
    %v1051 = vsub.f32 %v1011, %v1033
    %v1052 = vsub.f32 %v1012, %v1033
    %v1053 = vsub.f32 %v1013, %v1036
    %v1054 = vsub.f32 %v1014, %v1036
    %v1055 = vsub.f32 %v1015, %v1039
    %v1056 = vsub.f32 %v1016, %v1039
    %v1057 = vsub.f32 %v1017, %v1042
    %v1058 = vsub.f32 %v1018, %v1042
    %v1059 = vmul.f32 %v1043, 1.442695
    %v1060 = vpow.pop %v1059
    %v1061 = vmul.f32 %v1044, 1.442695
    %v1062 = vpow.pop %v1061
    %v1063 = vmul.f32 %v1045, 1.442695
    %v1064 = vpow.pop %v1063
    %v1065 = vmul.f32 %v1046, 1.442695
    %v1066 = vpow.pop %v1065
    %v1067 = vmul.f32 %v1047, 1.442695
    %v1068 = vpow.pop %v1067
    %v1069 = vmul.f32 %v1048, 1.442695
    %v1070 = vpow.pop %v1069
    %v1071 = vmul.f32 %v1049, 1.442695
    %v1072 = vpow.pop %v1071
    %v1073 = vmul.f32 %v1050, 1.442695
    %v1074 = vpow.pop %v1073
    %v1075 = vmul.f32 %v1051, 1.442695
    %v1076 = vpow.pop %v1075
    %v1077 = vmul.f32 %v1052, 1.442695
    %v1078 = vpow.pop %v1077
    %v1079 = vmul.f32 %v1053, 1.442695
    %v1080 = vpow.pop %v1079
    %v1081 = vmul.f32 %v1054, 1.442695
    %v1082 = vpow.pop %v1081
    %v1083 = vmul.f32 %v1055, 1.442695
    %v1084 = vpow.pop %v1083
    %v1085 = vmul.f32 %v1056, 1.442695
    %v1086 = vpow.pop %v1085
    %v1087 = vmul.f32 %v1057, 1.442695
    %v1088 = vpow.pop %v1087
    %v1089 = vmul.f32 %v1058, 1.442695
    %v1090 = vpow.pop %v1089
    %1123 = vrot.lane.b32.xlu0 %v658, 96
    %v1124 = vpop.permute.xlu0 %1123
    %1125 = vrot.lane.b32.xlu0 %v659, 96
    %v1126 = vpop.permute.xlu0 %1125
    %1127 = vrot.lane.b32.xlu0 %v660, 96
    %v1128 = vpop.permute.xlu0 %1127
    %1129 = vrot.lane.b32.xlu0 %v661, 96
    %v1130 = vpop.permute.xlu0 %1129
    %1131 = vrot.lane.b32.xlu0 %v662, 96
    %v1132 = vpop.permute.xlu0 %1131
    %1133 = vrot.lane.b32.xlu0 %v663, 96
    %v1134 = vpop.permute.xlu0 %1133
    %1135 = vrot.lane.b32.xlu0 %v664, 96
    %v1136 = vpop.permute.xlu0 %1135
    %1137 = vrot.lane.b32.xlu0 %v665, 96
    %v1138 = vpop.permute.xlu0 %1137
    %1139 = vrot.lane.b32.xlu0 %v666, 96
    %v1140 = vpop.permute.xlu0 %1139
    %1141 = vrot.lane.b32.xlu0 %v667, 96
    %v1142 = vpop.permute.xlu0 %1141
    %1143 = vrot.lane.b32.xlu0 %v668, 96
    %v1144 = vpop.permute.xlu0 %1143
    %1145 = vrot.lane.b32.xlu0 %v669, 96
    %v1146 = vpop.permute.xlu0 %1145
    %1147 = vrot.lane.b32.xlu0 %v670, 96
    %v1148 = vpop.permute.xlu0 %1147
    %1149 = vrot.lane.b32.xlu0 %v671, 96
    %v1150 = vpop.permute.xlu0 %1149
    %1151 = vrot.lane.b32.xlu0 %v672, 96
    %v1152 = vpop.permute.xlu0 %1151
    %1153 = vrot.lane.b32.xlu0 %v673, 96
    %v1154 = vpop.permute.xlu0 %1153
    %1155 = vrot.lane.b32.xlu0 %v674, 96
    %v1156 = vpop.permute.xlu0 %1155
    %1157 = vrot.lane.b32.xlu0 %v675, 96
    %v1158 = vpop.permute.xlu0 %1157
    %1159 = vrot.lane.b32.xlu0 %v676, 96
    %v1160 = vpop.permute.xlu0 %1159
    %1161 = vrot.lane.b32.xlu0 %v677, 96
    %v1162 = vpop.permute.xlu0 %1161
    %1163 = vrot.lane.b32.xlu0 %v678, 96
    %v1164 = vpop.permute.xlu0 %1163
    %1165 = vrot.lane.b32.xlu0 %v679, 96
    %v1166 = vpop.permute.xlu0 %1165
    %1167 = vrot.lane.b32.xlu0 %v680, 96
    %v1168 = vpop.permute.xlu0 %1167
    %1169 = vrot.lane.b32.xlu0 %v681, 96
    %v1170 = vpop.permute.xlu0 %1169
    %1171 = vrot.lane.b32.xlu0 %v682, 96
    %v1172 = vpop.permute.xlu0 %1171
    %1173 = vrot.lane.b32.xlu0 %v683, 96
    %v1174 = vpop.permute.xlu0 %1173
    %1175 = vrot.lane.b32.xlu0 %v684, 96
    %v1176 = vpop.permute.xlu0 %1175
    %1177 = vrot.lane.b32.xlu0 %v685, 96
    %v1178 = vpop.permute.xlu0 %1177
    %1179 = vrot.lane.b32.xlu0 %v686, 96
    %v1180 = vpop.permute.xlu0 %1179
    %1181 = vrot.lane.b32.xlu0 %v687, 96
    %v1182 = vpop.permute.xlu0 %1181
    %1183 = vrot.lane.b32.xlu0 %v688, 96
    %v1184 = vpop.permute.xlu0 %1183
    %1185 = vrot.lane.b32.xlu0 %v689, 96
    %v1186 = vpop.permute.xlu0 %1185
    %v1219 = vsel %vm272, %v1124, %v435
    %v1220 = vsel %vm272, %v1126, %v437
    %v1221 = vsel %vm272, %v1128, %v439
    %v1222 = vsel %vm272, %v1130, %v441
    %v1223 = vsel %vm272, %v1132, %v443
    %v1224 = vsel %vm272, %v1134, %v445
    %v1225 = vsel %vm272, %v1136, %v447
    %v1226 = vsel %vm272, %v1138, %v449
    %v1227 = vsel %vm272, %v1140, %v451
    %v1228 = vsel %vm272, %v1142, %v453
    %v1229 = vsel %vm272, %v1144, %v455
    %v1230 = vsel %vm272, %v1146, %v457
    %v1231 = vsel %vm272, %v1148, %v459
    %v1232 = vsel %vm272, %v1150, %v461
    %v1233 = vsel %vm272, %v1152, %v463
    %v1234 = vsel %vm272, %v1154, %v465
    %v1235 = vsel %vm272, %v1156, %v467
    %v1236 = vsel %vm272, %v1158, %v469
    %v1237 = vsel %vm272, %v1160, %v471
    %v1238 = vsel %vm272, %v1162, %v473
    %v1239 = vsel %vm272, %v1164, %v475
    %v1240 = vsel %vm272, %v1166, %v477
    %v1241 = vsel %vm272, %v1168, %v479
    %v1242 = vsel %vm272, %v1170, %v481
    %v1243 = vsel %vm272, %v1172, %v483
    %v1244 = vsel %vm272, %v1174, %v485
    %v1245 = vsel %vm272, %v1176, %v487
    %v1246 = vsel %vm272, %v1178, %v489
    %v1247 = vsel %vm272, %v1180, %v491
    %v1248 = vsel %vm272, %v1182, %v493
    %v1249 = vsel %vm272, %v1184, %v495
    %v1250 = vsel %vm272, %v1186, %v497
    %1251 = vmatprep.subr.mxu0 0.0
    %1252 = vmatpush1.msra.mxu0 %v1219
    %1253 = vmatprep.subr.mxu0 0.0
    %1254 = vmatpush1.msra.mxu0 %v1220
    %1255 = vmatprep.subr.mxu0 0.0
    %1256 = vmatpush1.msra.mxu0 %v1221
    %1257 = vmatprep.subr.mxu0 0.0
    %1258 = vmatpush1.msra.mxu0 %v1222
    %1259 = vmatprep.subr.mxu0 0.0
    %1260 = vmatpush1.msra.mxu0 %v1223
    %1261 = vmatprep.subr.mxu0 0.0
    %1262 = vmatpush1.msra.mxu0 %v1224
    %1263 = vmatprep.subr.mxu0 0.0
    %1264 = vmatpush1.msra.mxu0 %v1225
    %1265 = vmatprep.subr.mxu0 0.0
    %1266 = vmatpush1.msra.mxu0 %v1226
    %1267 = vmatprep.subr.mxu0 0.0
    %1268 = vmatpush1.msra.mxu0 %v1227
    %1269 = vmatprep.subr.mxu0 0.0
    %1270 = vmatpush1.msra.mxu0 %v1228
    %1271 = vmatprep.subr.mxu0 0.0
    %1272 = vmatpush1.msra.mxu0 %v1229
    %1273 = vmatprep.subr.mxu0 0.0
    %1274 = vmatpush1.msra.mxu0 %v1230
    %1275 = vmatprep.subr.mxu0 0.0
    %1276 = vmatpush1.msra.mxu0 %v1231
    %1277 = vmatprep.subr.mxu0 0.0
    %1278 = vmatpush1.msra.mxu0 %v1232
    %1279 = vmatprep.subr.mxu0 0.0
    %1280 = vmatpush1.msra.mxu0 %v1233
    %1281 = vmatprep.subr.mxu0 0.0
    %1282 = vmatpush1.msra.mxu0 %v1234
    %1283 = vmatprep.subr.mxu0 0.0
    %1284 = vmatpush1.msra.mxu0 %v1235
    %1285 = vmatprep.subr.mxu0 0.0
    %1286 = vmatpush1.msra.mxu0 %v1236
    %1287 = vmatprep.subr.mxu0 0.0
    %1288 = vmatpush1.msra.mxu0 %v1237
    %1289 = vmatprep.subr.mxu0 0.0
    %1290 = vmatpush1.msra.mxu0 %v1238
    %1291 = vmatprep.subr.mxu0 0.0
    %1292 = vmatpush1.msra.mxu0 %v1239
    %1293 = vmatprep.subr.mxu0 0.0
    %1294 = vmatpush1.msra.mxu0 %v1240
    %1295 = vmatprep.subr.mxu0 0.0
    %1296 = vmatpush1.msra.mxu0 %v1241
    %1297 = vmatprep.subr.mxu0 0.0
    %1298 = vmatpush1.msra.mxu0 %v1242
    %1299 = vmatprep.subr.mxu0 0.0
    %1300 = vmatpush1.msra.mxu0 %v1243
    %1301 = vmatprep.subr.mxu0 0.0
    %1302 = vmatpush1.msra.mxu0 %v1244
    %1303 = vmatprep.subr.mxu0 0.0
    %1304 = vmatpush1.msra.mxu0 %v1245
    %1305 = vmatprep.subr.mxu0 0.0
    %1306 = vmatpush1.msra.mxu0 %v1246
    %1307 = vmatprep.subr.mxu0 0.0
    %1308 = vmatpush1.msra.mxu0 %v1247
    %1309 = vmatprep.subr.mxu0 0.0
    %1310 = vmatpush1.msra.mxu0 %v1248
    %1311 = vmatprep.subr.mxu0 0.0
    %1312 = vmatpush1.msra.mxu0 %v1249
    %1313 = vmatprep.subr.mxu0 0.0
    %1314 = vmatpush1.msra.mxu0 %v1250
    %1315 = vmatprep.mubr.f32.mxu0 %v1062
    %1316 = vmatmul.mubr.f32.gmra.mrb[0].mxu0 %v1060
    %v1317 = vpop.f32.mrb[0].mxu0
    %v1318 = vadd.f32 0.0, %v1317
    %v1319 = vpop.f32.mrb[0].mxu0
    %1320 = vmatprep.mubr.f32.mxu0 %v1066
    %1321 = vmatmul.mubr.f32.gmra.mrb[0].mxu0 %v1064
    %v1322 = vpop.f32.mrb[0].mxu0
    %v1323 = vadd.f32 0.0, %v1322
    %v1324 = vpop.f32.mrb[0].mxu0
    %1325 = vmatprep.mubr.f32.mxu0 %v1070
    %1326 = vmatmul.mubr.f32.gmra.mrb[0].mxu0 %v1068
    %v1327 = vpop.f32.mrb[0].mxu0
    %v1328 = vadd.f32 0.0, %v1327
    %v1329 = vpop.f32.mrb[0].mxu0
    %1330 = vmatprep.mubr.f32.mxu0 %v1074
    %1331 = vmatmul.mubr.f32.gmra.mrb[0].mxu0 %v1072
    %v1332 = vpop.f32.mrb[0].mxu0
    %v1333 = vadd.f32 0.0, %v1332
    %v1334 = vpop.f32.mrb[0].mxu0
    %1335 = vmatprep.mubr.f32.mxu0 %v1078
    %1336 = vmatmul.mubr.f32.gmra.mrb[0].mxu0 %v1076
    %v1337 = vpop.f32.mrb[0].mxu0
    %v1338 = vadd.f32 0.0, %v1337
    %v1339 = vpop.f32.mrb[0].mxu0
    %1340 = vmatprep.mubr.f32.mxu0 %v1082
    %1341 = vmatmul.mubr.f32.gmra.mrb[0].mxu0 %v1080
    %v1342 = vpop.f32.mrb[0].mxu0
    %v1343 = vadd.f32 0.0, %v1342
    %v1344 = vpop.f32.mrb[0].mxu0
    %1345 = vmatprep.mubr.f32.mxu0 %v1086
    %1346 = vmatmul.mubr.f32.gmra.mrb[0].mxu0 %v1084
    %v1347 = vpop.f32.mrb[0].mxu0
    %v1348 = vadd.f32 0.0, %v1347
    %v1349 = vpop.f32.mrb[0].mxu0
    %1350 = vmatprep.mubr.f32.mxu0 %v1090
    %1351 = vmatmul.mubr.f32.gmra.mrb[0].mxu0 %v1088
    %v1352 = vpop.f32.mrb[0].mxu0
    %v1353 = vadd.f32 0.0, %v1352
    %v1354 = vpop.f32.mrb[0].mxu0
    %1355 = vdwg.mxu0
    %v1356 = vrcp.pop %v1318
    %v1357 = vrcp.pop %v1323
    %v1358 = vrcp.pop %v1328
    %v1359 = vrcp.pop %v1333
    %v1360 = vrcp.pop %v1338
    %v1361 = vrcp.pop %v1343
    %v1362 = vrcp.pop %v1348
    %v1363 = vrcp.pop %v1353
    %1372 = vrot.lane.b32.xlu0 %v1356, 112
    %v1373 = vpop.permute.xlu0 %1372
    %1374 = vrot.lane.b32.xlu0 %v1357, 112
    %v1375 = vpop.permute.xlu0 %1374
    %1376 = vrot.lane.b32.xlu0 %v1358, 112
    %v1377 = vpop.permute.xlu0 %1376
    %1378 = vrot.lane.b32.xlu0 %v1359, 112
    %v1379 = vpop.permute.xlu0 %1378
    %1380 = vrot.lane.b32.xlu0 %v1360, 112
    %v1381 = vpop.permute.xlu0 %1380
    %1382 = vrot.lane.b32.xlu0 %v1361, 112
    %v1383 = vpop.permute.xlu0 %1382
    %1384 = vrot.lane.b32.xlu0 %v1362, 112
    %v1385 = vpop.permute.xlu0 %1384
    %1386 = vrot.lane.b32.xlu0 %v1363, 112
    %v1387 = vpop.permute.xlu0 %1386
    %v1396 = vmul.f32 %v1318, %v1373
    %v1397 = vmul.f32 %v1323, %v1375
    %v1398 = vmul.f32 %v1328, %v1377
    %v1399 = vmul.f32 %v1333, %v1379
    %v1400 = vmul.f32 %v1338, %v1381
    %v1401 = vmul.f32 %v1343, %v1383
    %v1402 = vmul.f32 %v1348, %v1385
    %v1403 = vmul.f32 %v1353, %v1387
    %v1404 = vld [vmem:[%s4] sm:$0xff]
    %v1405 = vld [vmem:[%s4 + $0x8] sm:$0xff]
    %v1406 = vlaneseq
    %v1407 = vshrl.u32 %v1406, 7
    %v1408 = vsub.s32 1, %v1407
    %v1409 = vrot.slane %v265, %v1408
    %v1411 = vsel %vm272, %v1396, 0
    %v1414 = vsel %vm272, %v1397, 0
    %v1417 = vsel %vm272, %v1398, 0
    %v1420 = vsel %vm272, %v1399, 0
    %v1423 = vsel %vm272, %v1400, 0
    %v1426 = vsel %vm272, %v1401, 0
    %v1429 = vsel %vm272, %v1402, 0
    %v1432 = vsel %vm272, %v1403, 0
    %1434 = vmatprep.subr.mxu0 0.0
    %1435 = vmatpush1.msra.mxu0 %v1404
    %1436 = vmatprep.subr.mxu0 0.0
    %1437 = vmatpush1.msra.mxu0 %v1405
    %1438 = vmatprep.subr.mxu0 0.0
    %1439 = vmatpush1.msra.mxu0 0.0
    %1440 = vmatprep.subr.mxu0 0.0
    %1441 = vmatpush1.msra.mxu0 0.0
    %1442 = vmatprep.subr.mxu0 0.0
    %1443 = vmatpush1.msra.mxu0 0.0
    %1444 = vmatprep.subr.mxu0 0.0
    %1445 = vmatpush1.msra.mxu0 0.0
    %1446 = vmatprep.subr.mxu0 0.0
    %1447 = vmatpush1.msra.mxu0 0.0
    %1448 = vmatprep.subr.mxu0 0.0
    %1449 = vmatpush1.msra.mxu0 0.0
    %1450 = vmatprep.subr.mxu0 0.0
    %1451 = vmatpush1.msra.mxu0 0.0
    %1452 = vmatprep.subr.mxu0 0.0
    %1453 = vmatpush1.msra.mxu0 0.0
    %1454 = vmatprep.subr.mxu0 0.0
    %1455 = vmatpush1.msra.mxu0 0.0
    %1456 = vmatprep.subr.mxu0 0.0
    %1457 = vmatpush1.msra.mxu0 0.0
    %1458 = vmatprep.subr.mxu0 0.0
    %1459 = vmatpush1.msra.mxu0 0.0
    %1460 = vmatprep.subr.mxu0 0.0
    %1461 = vmatpush1.msra.mxu0 0.0
    %1462 = vmatprep.subr.mxu0 0.0
    %1463 = vmatpush1.msra.mxu0 0.0
    %1464 = vmatprep.subr.mxu0 0.0
    %1465 = vmatpush1.msra.mxu0 0.0
    %1466 = vmatprep.subr.mxu0 0.0
    %1467 = vmatpush1.msra.mxu0 0.0
    %1468 = vmatprep.subr.mxu0 0.0
    %1469 = vmatpush1.msra.mxu0 0.0
    %1470 = vmatprep.subr.mxu0 0.0
    %1471 = vmatpush1.msra.mxu0 0.0
    %1472 = vmatprep.subr.mxu0 0.0
    %1473 = vmatpush1.msra.mxu0 0.0
    %1474 = vmatprep.subr.mxu0 0.0
    %1475 = vmatpush1.msra.mxu0 0.0
    %1476 = vmatprep.subr.mxu0 0.0
    %1477 = vmatpush1.msra.mxu0 0.0
    %1478 = vmatprep.subr.mxu0 0.0
    %1479 = vmatpush1.msra.mxu0 0.0
    %1480 = vmatprep.subr.mxu0 0.0
    %1481 = vmatpush1.msra.mxu0 0.0
    %1482 = vmatprep.subr.mxu0 0.0
    %1483 = vmatpush1.msra.mxu0 0.0
    %1484 = vmatprep.subr.mxu0 0.0
    %1485 = vmatpush1.msra.mxu0 0.0
    %1486 = vmatprep.subr.mxu0 0.0
    %1487 = vmatpush1.msra.mxu0 0.0
    %1488 = vmatprep.subr.mxu0 0.0
    %1489 = vmatpush1.msra.mxu0 0.0
    %1490 = vmatprep.subr.mxu0 0.0
    %1491 = vmatpush1.msra.mxu0 0.0
    %1492 = vmatprep.subr.mxu0 0.0
    %1493 = vmatpush1.msra.mxu0 0.0
    %1494 = vmatprep.subr.mxu0 0.0
    %1495 = vmatpush1.msra.mxu0 0.0
    %1496 = vmatprep.subr.mxu0 0.0
    %1497 = vmatpush1.msra.mxu0 0.0
    %1498 = vmatprep.mubr.f32.mxu0 0.0
    %1499 = vmatmul.mubr.f32.gmra.mrb[0].mxu0 %v1411
    %v1500 = vpop.f32.mrb[0].mxu0
    %v1501 = vadd.f32 %v1409, %v1500
    %v1502 = vpop.f32.mrb[0].mxu0
    %1503 = vmatprep.mubr.f32.mxu0 0.0
    %1504 = vmatmul.mubr.f32.gmra.mrb[0].mxu0 %v1414
    %v1505 = vpop.f32.mrb[0].mxu0
    %v1506 = vadd.f32 %v1409, %v1505
    %v1507 = vpop.f32.mrb[0].mxu0
    %1508 = vmatprep.mubr.f32.mxu0 0.0
    %1509 = vmatmul.mubr.f32.gmra.mrb[0].mxu0 %v1417
    %v1510 = vpop.f32.mrb[0].mxu0
    %v1511 = vadd.f32 %v1409, %v1510
    %v1512 = vpop.f32.mrb[0].mxu0
    %1513 = vmatprep.mubr.f32.mxu0 0.0
    %1514 = vmatmul.mubr.f32.gmra.mrb[0].mxu0 %v1420
    %v1515 = vpop.f32.mrb[0].mxu0
    %v1516 = vadd.f32 %v1409, %v1515
    %v1517 = vpop.f32.mrb[0].mxu0
    %1518 = vmatprep.mubr.f32.mxu0 0.0
    %1519 = vmatmul.mubr.f32.gmra.mrb[0].mxu0 %v1423
    %v1520 = vpop.f32.mrb[0].mxu0
    %v1521 = vadd.f32 %v1409, %v1520
    %v1522 = vpop.f32.mrb[0].mxu0
    %1523 = vmatprep.mubr.f32.mxu0 0.0
    %1524 = vmatmul.mubr.f32.gmra.mrb[0].mxu0 %v1426
    %v1525 = vpop.f32.mrb[0].mxu0
    %v1526 = vadd.f32 %v1409, %v1525
    %v1527 = vpop.f32.mrb[0].mxu0
    %1528 = vmatprep.mubr.f32.mxu0 0.0
    %1529 = vmatmul.mubr.f32.gmra.mrb[0].mxu0 %v1429
    %v1530 = vpop.f32.mrb[0].mxu0
    %v1531 = vadd.f32 %v1409, %v1530
    %v1532 = vpop.f32.mrb[0].mxu0
    %1533 = vmatprep.mubr.f32.mxu0 0.0
    %1534 = vmatmul.mubr.f32.gmra.mrb[0].mxu0 %v1432
    %v1535 = vpop.f32.mrb[0].mxu0
    %v1536 = vadd.f32 %v1409, %v1535
    %v1537 = vpop.f32.mrb[0].mxu0
    %1538 = vdwg.mxu0
    %v1539 = vadd.f32 %v179, %v1501
    %v1540 = vadd.f32 %v184, %v1506
    %v1541 = vadd.f32 %v189, %v1511
    %v1542 = vadd.f32 %v194, %v1516
    %v1543 = vadd.f32 %v199, %v1521
    %v1544 = vadd.f32 %v204, %v1526
    %v1545 = vadd.f32 %v209, %v1531
    %v1546 = vadd.f32 %v214, %v1536
    %v1547 = vsel %vm272, %v1539, 0.0
    %1548 = vadd.xlane.f32.xlu0 %v1547
    %v1549 = vpop.xlane.xlu0 %1548
    %v1550 = vsel %vm272, %v1540, 0.0
    %1551 = vadd.xlane.f32.xlu0 %v1550
    %v1552 = vpop.xlane.xlu0 %1551
    %v1553 = vsel %vm272, %v1541, 0.0
    %1554 = vadd.xlane.f32.xlu0 %v1553
    %v1555 = vpop.xlane.xlu0 %1554
    %v1556 = vsel %vm272, %v1542, 0.0
    %1557 = vadd.xlane.f32.xlu0 %v1556
    %v1558 = vpop.xlane.xlu0 %1557
    %v1559 = vsel %vm272, %v1543, 0.0
    %1560 = vadd.xlane.f32.xlu0 %v1559
    %v1561 = vpop.xlane.xlu0 %1560
    %v1562 = vsel %vm272, %v1544, 0.0
    %1563 = vadd.xlane.f32.xlu0 %v1562
    %v1564 = vpop.xlane.xlu0 %1563
    %v1565 = vsel %vm272, %v1545, 0.0
    %1566 = vadd.xlane.f32.xlu0 %v1565
    %v1567 = vpop.xlane.xlu0 %1566
    %v1568 = vsel %vm272, %v1546, 0.0
    %1569 = vadd.xlane.f32.xlu0 %v1568
    %v1570 = vpop.xlane.xlu0 %1569
    %v1571 = vrcp.pop 16.0
    %v1572 = vmul.f32 %v1549, %v1571
    %v1573 = vmul.f32 %v1552, %v1571
    %v1574 = vmul.f32 %v1555, %v1571
    %v1575 = vmul.f32 %v1558, %v1571
    %v1576 = vmul.f32 %v1561, %v1571
    %v1577 = vmul.f32 %v1564, %v1571
    %v1578 = vmul.f32 %v1567, %v1571
    %v1579 = vmul.f32 %v1570, %v1571
    %v1580 = vsub.f32 %v1539, %v1572
    %v1581 = vsub.f32 %v1540, %v1573
    %v1582 = vsub.f32 %v1541, %v1574
    %v1583 = vsub.f32 %v1542, %v1575
    %v1584 = vsub.f32 %v1543, %v1576
    %v1585 = vsub.f32 %v1544, %v1577
    %v1586 = vsub.f32 %v1545, %v1578
    %v1587 = vsub.f32 %v1546, %v1579
    %v1588 = vmul.f32 %v1580, %v1580
    %v1589 = vmul.f32 %v1581, %v1581
    %v1590 = vmul.f32 %v1582, %v1582
    %v1591 = vmul.f32 %v1583, %v1583
    %v1592 = vmul.f32 %v1584, %v1584
    %v1593 = vmul.f32 %v1585, %v1585
    %v1594 = vmul.f32 %v1586, %v1586
    %v1595 = vmul.f32 %v1587, %v1587
    %v1596 = vsel %vm272, %v1588, 0.0
    %1597 = vadd.xlane.f32.xlu0 %v1596
    %v1598 = vpop.xlane.xlu0 %1597
    %v1599 = vsel %vm272, %v1589, 0.0
    %1600 = vadd.xlane.f32.xlu0 %v1599
    %v1601 = vpop.xlane.xlu0 %1600
    %v1602 = vsel %vm272, %v1590, 0.0
    %1603 = vadd.xlane.f32.xlu0 %v1602
    %v1604 = vpop.xlane.xlu0 %1603
    %v1605 = vsel %vm272, %v1591, 0.0
    %1606 = vadd.xlane.f32.xlu0 %v1605
    %v1607 = vpop.xlane.xlu0 %1606
    %v1608 = vsel %vm272, %v1592, 0.0
    %1609 = vadd.xlane.f32.xlu0 %v1608
    %v1610 = vpop.xlane.xlu0 %1609
    %v1611 = vsel %vm272, %v1593, 0.0
    %1612 = vadd.xlane.f32.xlu0 %v1611
    %v1613 = vpop.xlane.xlu0 %1612
    %v1614 = vsel %vm272, %v1594, 0.0
    %1615 = vadd.xlane.f32.xlu0 %v1614
    %v1616 = vpop.xlane.xlu0 %1615
    %v1617 = vsel %vm272, %v1595, 0.0
    %1618 = vadd.xlane.f32.xlu0 %v1617
    %v1619 = vpop.xlane.xlu0 %1618
    %v1620 = vmul.f32 %v1598, %v1571
    %v1621 = vmul.f32 %v1601, %v1571
    %v1622 = vmul.f32 %v1604, %v1571
    %v1623 = vmul.f32 %v1607, %v1571
    %v1624 = vmul.f32 %v1610, %v1571
    %v1625 = vmul.f32 %v1613, %v1571
    %v1626 = vmul.f32 %v1616, %v1571
    %v1627 = vmul.f32 %v1619, %v1571
    %v1628 = vadd.f32 %v1620, 1e-05
    %v1629 = vadd.f32 %v1621, 1e-05
    %v1630 = vadd.f32 %v1622, 1e-05
    %v1631 = vadd.f32 %v1623, 1e-05
    %v1632 = vadd.f32 %v1624, 1e-05
    %v1633 = vadd.f32 %v1625, 1e-05
    %v1634 = vadd.f32 %v1626, 1e-05
    %v1635 = vadd.f32 %v1627, 1e-05
    %v1636 = vrsqrt.pop %v1628
    %v1637 = vrsqrt.pop %v1629
    %v1638 = vrsqrt.pop %v1630
    %v1639 = vrsqrt.pop %v1631
    %v1640 = vrsqrt.pop %v1632
    %v1641 = vrsqrt.pop %v1633
    %v1642 = vrsqrt.pop %v1634
    %v1643 = vrsqrt.pop %v1635
    %v1644 = vmul.f32 %v1580, %v1636
    %v1645 = vmul.f32 %v1581, %v1637
    %v1646 = vmul.f32 %v1582, %v1638
    %v1647 = vmul.f32 %v1583, %v1639
    %v1648 = vmul.f32 %v1584, %v1640
    %v1649 = vmul.f32 %v1585, %v1641
    %v1650 = vmul.f32 %v1586, %v1642
    %v1651 = vmul.f32 %v1587, %v1643
    %v1652 = vlaneseq
    %v1653 = vshrl.u32 %v1652, 7
    %v1654 = vsub.s32 2, %v1653
    %v1655 = vrot.slane %v265, %v1654
    %v1656 = vmul.f32 %v1644, %v1655
    %v1657 = vmul.f32 %v1645, %v1655
    %v1658 = vmul.f32 %v1646, %v1655
    %v1659 = vmul.f32 %v1647, %v1655
    %v1660 = vmul.f32 %v1648, %v1655
    %v1661 = vmul.f32 %v1649, %v1655
    %v1662 = vmul.f32 %v1650, %v1655
    %v1663 = vmul.f32 %v1651, %v1655
    %v1664 = vlaneseq
    %v1665 = vshrl.u32 %v1664, 7
    %v1666 = vsub.s32 3, %v1665
    %v1667 = vrot.slane %v265, %v1666
    %v1668 = vadd.f32 %v1656, %v1667
    %v1669 = vadd.f32 %v1657, %v1667
    %v1670 = vadd.f32 %v1658, %v1667
    %v1671 = vadd.f32 %v1659, %v1667
    %v1672 = vadd.f32 %v1660, %v1667
    %v1673 = vadd.f32 %v1661, %v1667
    %v1674 = vadd.f32 %v1662, %v1667
    %v1675 = vadd.f32 %v1663, %v1667
    %v1676 = vld [vmem:[%s5] sm:$0xff]
    %v1677 = vld [vmem:[%s5 + $0x8] sm:$0xff]
    %v1678 = vlaneseq
    %v1679 = vshrl.u32 %v1678, 7
    %v1680 = vsub.s32 4, %v1679
    %v1681 = vrot.slane %v265, %v1680
    %v1683 = vsel %vm272, %v1668, 0
    %v1686 = vsel %vm272, %v1669, 0
    %v1689 = vsel %vm272, %v1670, 0
    %v1692 = vsel %vm272, %v1671, 0
    %v1695 = vsel %vm272, %v1672, 0
    %v1698 = vsel %vm272, %v1673, 0
    %v1701 = vsel %vm272, %v1674, 0
    %v1704 = vsel %vm272, %v1675, 0
    %1706 = vmatprep.subr.mxu0 0.0
    %1707 = vmatpush1.msra.mxu0 %v1676
    %1708 = vmatprep.subr.mxu0 0.0
    %1709 = vmatpush1.msra.mxu0 %v1677
    %1710 = vmatprep.subr.mxu0 0.0
    %1711 = vmatpush1.msra.mxu0 0.0
    %1712 = vmatprep.subr.mxu0 0.0
    %1713 = vmatpush1.msra.mxu0 0.0
    %1714 = vmatprep.subr.mxu0 0.0
    %1715 = vmatpush1.msra.mxu0 0.0
    %1716 = vmatprep.subr.mxu0 0.0
    %1717 = vmatpush1.msra.mxu0 0.0
    %1718 = vmatprep.subr.mxu0 0.0
    %1719 = vmatpush1.msra.mxu0 0.0
    %1720 = vmatprep.subr.mxu0 0.0
    %1721 = vmatpush1.msra.mxu0 0.0
    %1722 = vmatprep.subr.mxu0 0.0
    %1723 = vmatpush1.msra.mxu0 0.0
    %1724 = vmatprep.subr.mxu0 0.0
    %1725 = vmatpush1.msra.mxu0 0.0
    %1726 = vmatprep.subr.mxu0 0.0
    %1727 = vmatpush1.msra.mxu0 0.0
    %1728 = vmatprep.subr.mxu0 0.0
    %1729 = vmatpush1.msra.mxu0 0.0
    %1730 = vmatprep.subr.mxu0 0.0
    %1731 = vmatpush1.msra.mxu0 0.0
    %1732 = vmatprep.subr.mxu0 0.0
    %1733 = vmatpush1.msra.mxu0 0.0
    %1734 = vmatprep.subr.mxu0 0.0
    %1735 = vmatpush1.msra.mxu0 0.0
    %1736 = vmatprep.subr.mxu0 0.0
    %1737 = vmatpush1.msra.mxu0 0.0
    %1738 = vmatprep.subr.mxu0 0.0
    %1739 = vmatpush1.msra.mxu0 0.0
    %1740 = vmatprep.subr.mxu0 0.0
    %1741 = vmatpush1.msra.mxu0 0.0
    %1742 = vmatprep.subr.mxu0 0.0
    %1743 = vmatpush1.msra.mxu0 0.0
    %1744 = vmatprep.subr.mxu0 0.0
    %1745 = vmatpush1.msra.mxu0 0.0
    %1746 = vmatprep.subr.mxu0 0.0
    %1747 = vmatpush1.msra.mxu0 0.0
    %1748 = vmatprep.subr.mxu0 0.0
    %1749 = vmatpush1.msra.mxu0 0.0
    %1750 = vmatprep.subr.mxu0 0.0
    %1751 = vmatpush1.msra.mxu0 0.0
    %1752 = vmatprep.subr.mxu0 0.0
    %1753 = vmatpush1.msra.mxu0 0.0
    %1754 = vmatprep.subr.mxu0 0.0
    %1755 = vmatpush1.msra.mxu0 0.0
    %1756 = vmatprep.subr.mxu0 0.0
    %1757 = vmatpush1.msra.mxu0 0.0
    %1758 = vmatprep.subr.mxu0 0.0
    %1759 = vmatpush1.msra.mxu0 0.0
    %1760 = vmatprep.subr.mxu0 0.0
    %1761 = vmatpush1.msra.mxu0 0.0
    %1762 = vmatprep.subr.mxu0 0.0
    %1763 = vmatpush1.msra.mxu0 0.0
    %1764 = vmatprep.subr.mxu0 0.0
    %1765 = vmatpush1.msra.mxu0 0.0
    %1766 = vmatprep.subr.mxu0 0.0
    %1767 = vmatpush1.msra.mxu0 0.0
    %1768 = vmatprep.subr.mxu0 0.0
    %1769 = vmatpush1.msra.mxu0 0.0
    %1770 = vmatprep.mubr.f32.mxu0 0.0
    %1771 = vmatmul.mubr.f32.gmra.mrb[0].mxu0 %v1683
    %v1772 = vpop.f32.mrb[0].mxu0
    %v1773 = vadd.f32 %v1681, %v1772
    %v1774 = vpop.f32.mrb[0].mxu0
    %1775 = vmatprep.mubr.f32.mxu0 0.0
    %1776 = vmatmul.mubr.f32.gmra.mrb[0].mxu0 %v1686
    %v1777 = vpop.f32.mrb[0].mxu0
    %v1778 = vadd.f32 %v1681, %v1777
    %v1779 = vpop.f32.mrb[0].mxu0
    %1780 = vmatprep.mubr.f32.mxu0 0.0
    %1781 = vmatmul.mubr.f32.gmra.mrb[0].mxu0 %v1689
    %v1782 = vpop.f32.mrb[0].mxu0
    %v1783 = vadd.f32 %v1681, %v1782
    %v1784 = vpop.f32.mrb[0].mxu0
    %1785 = vmatprep.mubr.f32.mxu0 0.0
    %1786 = vmatmul.mubr.f32.gmra.mrb[0].mxu0 %v1692
    %v1787 = vpop.f32.mrb[0].mxu0
    %v1788 = vadd.f32 %v1681, %v1787
    %v1789 = vpop.f32.mrb[0].mxu0
    %1790 = vmatprep.mubr.f32.mxu0 0.0
    %1791 = vmatmul.mubr.f32.gmra.mrb[0].mxu0 %v1695
    %v1792 = vpop.f32.mrb[0].mxu0
    %v1793 = vadd.f32 %v1681, %v1792
    %v1794 = vpop.f32.mrb[0].mxu0
    %1795 = vmatprep.mubr.f32.mxu0 0.0
    %1796 = vmatmul.mubr.f32.gmra.mrb[0].mxu0 %v1698
    %v1797 = vpop.f32.mrb[0].mxu0
    %v1798 = vadd.f32 %v1681, %v1797
    %v1799 = vpop.f32.mrb[0].mxu0
    %1800 = vmatprep.mubr.f32.mxu0 0.0
    %1801 = vmatmul.mubr.f32.gmra.mrb[0].mxu0 %v1701
    %v1802 = vpop.f32.mrb[0].mxu0
    %v1803 = vadd.f32 %v1681, %v1802
    %v1804 = vpop.f32.mrb[0].mxu0
    %1805 = vmatprep.mubr.f32.mxu0 0.0
    %1806 = vmatmul.mubr.f32.gmra.mrb[0].mxu0 %v1704
    %v1807 = vpop.f32.mrb[0].mxu0
    %v1808 = vadd.f32 %v1681, %v1807
    %v1809 = vpop.f32.mrb[0].mxu0
    %1810 = vdwg.mxu0
    %v1811 = vmul.f32 %v1773, %v1773
    %v1812 = vmul.f32 %v1778, %v1778
    %v1813 = vmul.f32 %v1783, %v1783
    %v1814 = vmul.f32 %v1788, %v1788
    %v1815 = vmul.f32 %v1793, %v1793
    %v1816 = vmul.f32 %v1798, %v1798
    %v1817 = vmul.f32 %v1803, %v1803
    %v1818 = vmul.f32 %v1808, %v1808
    %v1819 = vmul.f32 %v1773, %v1811
    %v1820 = vmul.f32 %v1778, %v1812
    %v1821 = vmul.f32 %v1783, %v1813
    %v1822 = vmul.f32 %v1788, %v1814
    %v1823 = vmul.f32 %v1793, %v1815
    %v1824 = vmul.f32 %v1798, %v1816
    %v1825 = vmul.f32 %v1803, %v1817
    %v1826 = vmul.f32 %v1808, %v1818
    %v1827 = vmul.f32 %v1819, 0.044715
    %v1828 = vmul.f32 %v1820, 0.044715
    %v1829 = vmul.f32 %v1821, 0.044715
    %v1830 = vmul.f32 %v1822, 0.044715
    %v1831 = vmul.f32 %v1823, 0.044715
    %v1832 = vmul.f32 %v1824, 0.044715
    %v1833 = vmul.f32 %v1825, 0.044715
    %v1834 = vmul.f32 %v1826, 0.044715
    %v1835 = vadd.f32 %v1773, %v1827
    %v1836 = vadd.f32 %v1778, %v1828
    %v1837 = vadd.f32 %v1783, %v1829
    %v1838 = vadd.f32 %v1788, %v1830
    %v1839 = vadd.f32 %v1793, %v1831
    %v1840 = vadd.f32 %v1798, %v1832
    %v1841 = vadd.f32 %v1803, %v1833
    %v1842 = vadd.f32 %v1808, %v1834
    %v1843 = vmul.f32 %v1835, 0.7978846
    %v1844 = vmul.f32 %v1836, 0.7978846
    %v1845 = vmul.f32 %v1837, 0.7978846
    %v1846 = vmul.f32 %v1838, 0.7978846
    %v1847 = vmul.f32 %v1839, 0.7978846
    %v1848 = vmul.f32 %v1840, 0.7978846
    %v1849 = vmul.f32 %v1841, 0.7978846
    %v1850 = vmul.f32 %v1842, 0.7978846
    %v1851 = vtanh.pop %v1843
    %v1852 = vtanh.pop %v1844
    %v1853 = vtanh.pop %v1845
    %v1854 = vtanh.pop %v1846
    %v1855 = vtanh.pop %v1847
    %v1856 = vtanh.pop %v1848
    %v1857 = vtanh.pop %v1849
    %v1858 = vtanh.pop %v1850
    %v1859 = vadd.f32 %v1851, 1.0
    %v1860 = vadd.f32 %v1852, 1.0
    %v1861 = vadd.f32 %v1853, 1.0
    %v1862 = vadd.f32 %v1854, 1.0
    %v1863 = vadd.f32 %v1855, 1.0
    %v1864 = vadd.f32 %v1856, 1.0
    %v1865 = vadd.f32 %v1857, 1.0
    %v1866 = vadd.f32 %v1858, 1.0
    %v1867 = vmul.f32 %v1859, 0.5
    %v1868 = vmul.f32 %v1860, 0.5
    %v1869 = vmul.f32 %v1861, 0.5
    %v1870 = vmul.f32 %v1862, 0.5
    %v1871 = vmul.f32 %v1863, 0.5
    %v1872 = vmul.f32 %v1864, 0.5
    %v1873 = vmul.f32 %v1865, 0.5
    %v1874 = vmul.f32 %v1866, 0.5
    %v1875 = vmul.f32 %v1773, %v1867
    %v1876 = vmul.f32 %v1778, %v1868
    %v1877 = vmul.f32 %v1783, %v1869
    %v1878 = vmul.f32 %v1788, %v1870
    %v1879 = vmul.f32 %v1793, %v1871
    %v1880 = vmul.f32 %v1798, %v1872
    %v1881 = vmul.f32 %v1803, %v1873
    %v1882 = vmul.f32 %v1808, %v1874
    %v1883 = vld [vmem:[%s6] sm:$0xff]
    %v1884 = vld [vmem:[%s6 + $0x8] sm:$0xff]
    %v1885 = vld [vmem:[%s6 + $0x10] sm:$0xff]
    %v1886 = vld [vmem:[%s6 + $0x18] sm:$0xff]
    %v1887 = vlaneseq
    %v1888 = vshrl.u32 %v1887, 7
    %v1889 = vsub.s32 5, %v1888
    %v1890 = vrot.slane %v265, %v1889
    %v1892 = vsel %vm43, %v1875, 0
    %v1895 = vsel %vm43, %v1876, 0
    %v1898 = vsel %vm43, %v1877, 0
    %v1901 = vsel %vm43, %v1878, 0
    %v1904 = vsel %vm43, %v1879, 0
    %v1907 = vsel %vm43, %v1880, 0
    %v1910 = vsel %vm43, %v1881, 0
    %v1913 = vsel %vm43, %v1882, 0
    %1915 = vmatprep.subr.mxu0 0.0
    %1916 = vmatpush1.msra.mxu0 %v1883
    %1917 = vmatprep.subr.mxu0 0.0
    %1918 = vmatpush1.msra.mxu0 %v1884
    %1919 = vmatprep.subr.mxu0 0.0
    %1920 = vmatpush1.msra.mxu0 %v1885
    %1921 = vmatprep.subr.mxu0 0.0
    %1922 = vmatpush1.msra.mxu0 %v1886
    %1923 = vmatprep.subr.mxu0 0.0
    %1924 = vmatpush1.msra.mxu0 0.0
    %1925 = vmatprep.subr.mxu0 0.0
    %1926 = vmatpush1.msra.mxu0 0.0
    %1927 = vmatprep.subr.mxu0 0.0
    %1928 = vmatpush1.msra.mxu0 0.0
    %1929 = vmatprep.subr.mxu0 0.0
    %1930 = vmatpush1.msra.mxu0 0.0
    %1931 = vmatprep.subr.mxu0 0.0
    %1932 = vmatpush1.msra.mxu0 0.0
    %1933 = vmatprep.subr.mxu0 0.0
    %1934 = vmatpush1.msra.mxu0 0.0
    %1935 = vmatprep.subr.mxu0 0.0
    %1936 = vmatpush1.msra.mxu0 0.0
    %1937 = vmatprep.subr.mxu0 0.0
    %1938 = vmatpush1.msra.mxu0 0.0
    %1939 = vmatprep.subr.mxu0 0.0
    %1940 = vmatpush1.msra.mxu0 0.0
    %1941 = vmatprep.subr.mxu0 0.0
    %1942 = vmatpush1.msra.mxu0 0.0
    %1943 = vmatprep.subr.mxu0 0.0
    %1944 = vmatpush1.msra.mxu0 0.0
    %1945 = vmatprep.subr.mxu0 0.0
    %1946 = vmatpush1.msra.mxu0 0.0
    %1947 = vmatprep.subr.mxu0 0.0
    %1948 = vmatpush1.msra.mxu0 0.0
    %1949 = vmatprep.subr.mxu0 0.0
    %1950 = vmatpush1.msra.mxu0 0.0
    %1951 = vmatprep.subr.mxu0 0.0
    %1952 = vmatpush1.msra.mxu0 0.0
    %1953 = vmatprep.subr.mxu0 0.0
    %1954 = vmatpush1.msra.mxu0 0.0
    %1955 = vmatprep.subr.mxu0 0.0
    %1956 = vmatpush1.msra.mxu0 0.0
    %1957 = vmatprep.subr.mxu0 0.0
    %1958 = vmatpush1.msra.mxu0 0.0
    %1959 = vmatprep.subr.mxu0 0.0
    %1960 = vmatpush1.msra.mxu0 0.0
    %1961 = vmatprep.subr.mxu0 0.0
    %1962 = vmatpush1.msra.mxu0 0.0
    %1963 = vmatprep.subr.mxu0 0.0
    %1964 = vmatpush1.msra.mxu0 0.0
    %1965 = vmatprep.subr.mxu0 0.0
    %1966 = vmatpush1.msra.mxu0 0.0
    %1967 = vmatprep.subr.mxu0 0.0
    %1968 = vmatpush1.msra.mxu0 0.0
    %1969 = vmatprep.subr.mxu0 0.0
    %1970 = vmatpush1.msra.mxu0 0.0
    %1971 = vmatprep.subr.mxu0 0.0
    %1972 = vmatpush1.msra.mxu0 0.0
    %1973 = vmatprep.subr.mxu0 0.0
    %1974 = vmatpush1.msra.mxu0 0.0
    %1975 = vmatprep.subr.mxu0 0.0
    %1976 = vmatpush1.msra.mxu0 0.0
    %1977 = vmatprep.subr.mxu0 0.0
    %1978 = vmatpush1.msra.mxu0 0.0
    %1979 = vmatprep.mubr.f32.mxu0 0.0
    %1980 = vmatmul.mubr.f32.gmra.mrb[0].mxu0 %v1892
    %v1981 = vpop.f32.mrb[0].mxu0
    %v1982 = vadd.f32 %v1890, %v1981
    %v1983 = vpop.f32.mrb[0].mxu0
    %1984 = vmatprep.mubr.f32.mxu0 0.0
    %1985 = vmatmul.mubr.f32.gmra.mrb[0].mxu0 %v1895
    %v1986 = vpop.f32.mrb[0].mxu0
    %v1987 = vadd.f32 %v1890, %v1986
    %v1988 = vpop.f32.mrb[0].mxu0
    %1989 = vmatprep.mubr.f32.mxu0 0.0
    %1990 = vmatmul.mubr.f32.gmra.mrb[0].mxu0 %v1898
    %v1991 = vpop.f32.mrb[0].mxu0
    %v1992 = vadd.f32 %v1890, %v1991
    %v1993 = vpop.f32.mrb[0].mxu0
    %1994 = vmatprep.mubr.f32.mxu0 0.0
    %1995 = vmatmul.mubr.f32.gmra.mrb[0].mxu0 %v1901
    %v1996 = vpop.f32.mrb[0].mxu0
    %v1997 = vadd.f32 %v1890, %v1996
    %v1998 = vpop.f32.mrb[0].mxu0
    %1999 = vmatprep.mubr.f32.mxu0 0.0
    %2000 = vmatmul.mubr.f32.gmra.mrb[0].mxu0 %v1904
    %v2001 = vpop.f32.mrb[0].mxu0
    %v2002 = vadd.f32 %v1890, %v2001
    %v2003 = vpop.f32.mrb[0].mxu0
    %2004 = vmatprep.mubr.f32.mxu0 0.0
    %2005 = vmatmul.mubr.f32.gmra.mrb[0].mxu0 %v1907
    %v2006 = vpop.f32.mrb[0].mxu0
    %v2007 = vadd.f32 %v1890, %v2006
    %v2008 = vpop.f32.mrb[0].mxu0
    %2009 = vmatprep.mubr.f32.mxu0 0.0
    %2010 = vmatmul.mubr.f32.gmra.mrb[0].mxu0 %v1910
    %v2011 = vpop.f32.mrb[0].mxu0
    %v2012 = vadd.f32 %v1890, %v2011
    %v2013 = vpop.f32.mrb[0].mxu0
    %2014 = vmatprep.mubr.f32.mxu0 0.0
    %2015 = vmatmul.mubr.f32.gmra.mrb[0].mxu0 %v1913
    %v2016 = vpop.f32.mrb[0].mxu0
    %v2017 = vadd.f32 %v1890, %v2016
    %v2018 = vpop.f32.mrb[0].mxu0
    %2019 = vdwg.mxu0
    %v2020 = vadd.f32 %v1668, %v1982
    %v2021 = vadd.f32 %v1669, %v1987
    %v2022 = vadd.f32 %v1670, %v1992
    %v2023 = vadd.f32 %v1671, %v1997
    %v2024 = vadd.f32 %v1672, %v2002
    %v2025 = vadd.f32 %v1673, %v2007
    %v2026 = vadd.f32 %v1674, %v2012
    %v2027 = vadd.f32 %v1675, %v2017
    %v2028 = vsel %vm272, %v2020, 0.0
    %2029 = vadd.xlane.f32.xlu0 %v2028
    %v2030 = vpop.xlane.xlu0 %2029
    %v2031 = vsel %vm272, %v2021, 0.0
    %2032 = vadd.xlane.f32.xlu0 %v2031
    %v2033 = vpop.xlane.xlu0 %2032
    %v2034 = vsel %vm272, %v2022, 0.0
    %2035 = vadd.xlane.f32.xlu0 %v2034
    %v2036 = vpop.xlane.xlu0 %2035
    %v2037 = vsel %vm272, %v2023, 0.0
    %2038 = vadd.xlane.f32.xlu0 %v2037
    %v2039 = vpop.xlane.xlu0 %2038
    %v2040 = vsel %vm272, %v2024, 0.0
    %2041 = vadd.xlane.f32.xlu0 %v2040
    %v2042 = vpop.xlane.xlu0 %2041
    %v2043 = vsel %vm272, %v2025, 0.0
    %2044 = vadd.xlane.f32.xlu0 %v2043
    %v2045 = vpop.xlane.xlu0 %2044
    %v2046 = vsel %vm272, %v2026, 0.0
    %2047 = vadd.xlane.f32.xlu0 %v2046
    %v2048 = vpop.xlane.xlu0 %2047
    %v2049 = vsel %vm272, %v2027, 0.0
    %2050 = vadd.xlane.f32.xlu0 %v2049
    %v2051 = vpop.xlane.xlu0 %2050
    %v2052 = vmul.f32 %v2030, %v1571
    %v2053 = vmul.f32 %v2033, %v1571
    %v2054 = vmul.f32 %v2036, %v1571
    %v2055 = vmul.f32 %v2039, %v1571
    %v2056 = vmul.f32 %v2042, %v1571
    %v2057 = vmul.f32 %v2045, %v1571
    %v2058 = vmul.f32 %v2048, %v1571
    %v2059 = vmul.f32 %v2051, %v1571
    %v2060 = vsub.f32 %v2020, %v2052
    %v2061 = vsub.f32 %v2021, %v2053
    %v2062 = vsub.f32 %v2022, %v2054
    %v2063 = vsub.f32 %v2023, %v2055
    %v2064 = vsub.f32 %v2024, %v2056
    %v2065 = vsub.f32 %v2025, %v2057
    %v2066 = vsub.f32 %v2026, %v2058
    %v2067 = vsub.f32 %v2027, %v2059
    %v2068 = vmul.f32 %v2060, %v2060
    %v2069 = vmul.f32 %v2061, %v2061
    %v2070 = vmul.f32 %v2062, %v2062
    %v2071 = vmul.f32 %v2063, %v2063
    %v2072 = vmul.f32 %v2064, %v2064
    %v2073 = vmul.f32 %v2065, %v2065
    %v2074 = vmul.f32 %v2066, %v2066
    %v2075 = vmul.f32 %v2067, %v2067
    %v2076 = vsel %vm272, %v2068, 0.0
    %2077 = vadd.xlane.f32.xlu0 %v2076
    %v2078 = vpop.xlane.xlu0 %2077
    %v2079 = vsel %vm272, %v2069, 0.0
    %2080 = vadd.xlane.f32.xlu0 %v2079
    %v2081 = vpop.xlane.xlu0 %2080
    %v2082 = vsel %vm272, %v2070, 0.0
    %2083 = vadd.xlane.f32.xlu0 %v2082
    %v2084 = vpop.xlane.xlu0 %2083
    %v2085 = vsel %vm272, %v2071, 0.0
    %2086 = vadd.xlane.f32.xlu0 %v2085
    %v2087 = vpop.xlane.xlu0 %2086
    %v2088 = vsel %vm272, %v2072, 0.0
    %2089 = vadd.xlane.f32.xlu0 %v2088
    %v2090 = vpop.xlane.xlu0 %2089
    %v2091 = vsel %vm272, %v2073, 0.0
    %2092 = vadd.xlane.f32.xlu0 %v2091
    %v2093 = vpop.xlane.xlu0 %2092
    %v2094 = vsel %vm272, %v2074, 0.0
    %2095 = vadd.xlane.f32.xlu0 %v2094
    %v2096 = vpop.xlane.xlu0 %2095
    %v2097 = vsel %vm272, %v2075, 0.0
    %2098 = vadd.xlane.f32.xlu0 %v2097
    %v2099 = vpop.xlane.xlu0 %2098
    %v2100 = vmul.f32 %v2078, %v1571
    %v2101 = vmul.f32 %v2081, %v1571
    %v2102 = vmul.f32 %v2084, %v1571
    %v2103 = vmul.f32 %v2087, %v1571
    %v2104 = vmul.f32 %v2090, %v1571
    %v2105 = vmul.f32 %v2093, %v1571
    %v2106 = vmul.f32 %v2096, %v1571
    %v2107 = vmul.f32 %v2099, %v1571
    %v2108 = vadd.f32 %v2100, 1e-05
    %v2109 = vadd.f32 %v2101, 1e-05
    %v2110 = vadd.f32 %v2102, 1e-05
    %v2111 = vadd.f32 %v2103, 1e-05
    %v2112 = vadd.f32 %v2104, 1e-05
    %v2113 = vadd.f32 %v2105, 1e-05
    %v2114 = vadd.f32 %v2106, 1e-05
    %v2115 = vadd.f32 %v2107, 1e-05
    %v2116 = vrsqrt.pop %v2108
    %v2117 = vrsqrt.pop %v2109
    %v2118 = vrsqrt.pop %v2110
    %v2119 = vrsqrt.pop %v2111
    %v2120 = vrsqrt.pop %v2112
    %v2121 = vrsqrt.pop %v2113
    %v2122 = vrsqrt.pop %v2114
    %v2123 = vrsqrt.pop %v2115
    %v2124 = vmul.f32 %v2060, %v2116
    %v2125 = vmul.f32 %v2061, %v2117
    %v2126 = vmul.f32 %v2062, %v2118
    %v2127 = vmul.f32 %v2063, %v2119
    %v2128 = vmul.f32 %v2064, %v2120
    %v2129 = vmul.f32 %v2065, %v2121
    %v2130 = vmul.f32 %v2066, %v2122
    %v2131 = vmul.f32 %v2067, %v2123
    %v2132 = vlaneseq
    %v2133 = vshrl.u32 %v2132, 7
    %v2134 = vsub.s32 6, %v2133
    %v2135 = vrot.slane %v265, %v2134
    %v2136 = vmul.f32 %v2124, %v2135
    %v2137 = vmul.f32 %v2125, %v2135
    %v2138 = vmul.f32 %v2126, %v2135
    %v2139 = vmul.f32 %v2127, %v2135
    %v2140 = vmul.f32 %v2128, %v2135
    %v2141 = vmul.f32 %v2129, %v2135
    %v2142 = vmul.f32 %v2130, %v2135
    %v2143 = vmul.f32 %v2131, %v2135
    %v2144 = vlaneseq
    %v2145 = vshrl.u32 %v2144, 7
    %v2146 = vsub.s32 7, %v2145
    %v2147 = vrot.slane %v265, %v2146
    %v2148 = vadd.f32 %v2136, %v2147
    %v2149 = vadd.f32 %v2137, %v2147
    %v2150 = vadd.f32 %v2138, %v2147
    %v2151 = vadd.f32 %v2139, %v2147
    %v2152 = vadd.f32 %v2140, %v2147
    %v2153 = vadd.f32 %v2141, %v2147
    %v2154 = vadd.f32 %v2142, %v2147
    %v2155 = vadd.f32 %v2143, %v2147
    %s2156 = scalar_lea.vmem %s7, 8
    %v2157 = vld [vmem:[%s2156] sm:$0xff]
    %s2158 = scalar_lea.vmem %s3, 16
    %v2159 = vld [vmem:[%s2158] sm:$0xff]
    %v2160 = vld [vmem:[%s2158 + $0x8] sm:$0xff]
    %v2161 = vlaneseq
    %v2162 = vshrl.u32 %v2161, 7
    %v2163 = vsub.s32 0, %v2162
    %v2164 = vrot.slane %v2157, %v2163
    %v2166 = vsel %vm272, %v2148, 0
    %v2169 = vsel %vm272, %v2149, 0
    %v2172 = vsel %vm272, %v2150, 0
    %v2175 = vsel %vm272, %v2151, 0
    %v2178 = vsel %vm272, %v2152, 0
    %v2181 = vsel %vm272, %v2153, 0
    %v2184 = vsel %vm272, %v2154, 0
    %v2187 = vsel %vm272, %v2155, 0
    %2189 = vmatprep.subr.mxu0 0.0
    %2190 = vmatpush1.msra.mxu0 %v2159
    %2191 = vmatprep.subr.mxu0 0.0
    %2192 = vmatpush1.msra.mxu0 %v2160
    %2193 = vmatprep.subr.mxu0 0.0
    %2194 = vmatpush1.msra.mxu0 0.0
    %2195 = vmatprep.subr.mxu0 0.0
    %2196 = vmatpush1.msra.mxu0 0.0
    %2197 = vmatprep.subr.mxu0 0.0
    %2198 = vmatpush1.msra.mxu0 0.0
    %2199 = vmatprep.subr.mxu0 0.0
    %2200 = vmatpush1.msra.mxu0 0.0
    %2201 = vmatprep.subr.mxu0 0.0
    %2202 = vmatpush1.msra.mxu0 0.0
    %2203 = vmatprep.subr.mxu0 0.0
    %2204 = vmatpush1.msra.mxu0 0.0
    %2205 = vmatprep.subr.mxu0 0.0
    %2206 = vmatpush1.msra.mxu0 0.0
    %2207 = vmatprep.subr.mxu0 0.0
    %2208 = vmatpush1.msra.mxu0 0.0
    %2209 = vmatprep.subr.mxu0 0.0
    %2210 = vmatpush1.msra.mxu0 0.0
    %2211 = vmatprep.subr.mxu0 0.0
    %2212 = vmatpush1.msra.mxu0 0.0
    %2213 = vmatprep.subr.mxu0 0.0
    %2214 = vmatpush1.msra.mxu0 0.0
    %2215 = vmatprep.subr.mxu0 0.0
    %2216 = vmatpush1.msra.mxu0 0.0
    %2217 = vmatprep.subr.mxu0 0.0
    %2218 = vmatpush1.msra.mxu0 0.0
    %2219 = vmatprep.subr.mxu0 0.0
    %2220 = vmatpush1.msra.mxu0 0.0
    %2221 = vmatprep.subr.mxu0 0.0
    %2222 = vmatpush1.msra.mxu0 0.0
    %2223 = vmatprep.subr.mxu0 0.0
    %2224 = vmatpush1.msra.mxu0 0.0
    %2225 = vmatprep.subr.mxu0 0.0
    %2226 = vmatpush1.msra.mxu0 0.0
    %2227 = vmatprep.subr.mxu0 0.0
    %2228 = vmatpush1.msra.mxu0 0.0
    %2229 = vmatprep.subr.mxu0 0.0
    %2230 = vmatpush1.msra.mxu0 0.0
    %2231 = vmatprep.subr.mxu0 0.0
    %2232 = vmatpush1.msra.mxu0 0.0
    %2233 = vmatprep.subr.mxu0 0.0
    %2234 = vmatpush1.msra.mxu0 0.0
    %2235 = vmatprep.subr.mxu0 0.0
    %2236 = vmatpush1.msra.mxu0 0.0
    %2237 = vmatprep.subr.mxu0 0.0
    %2238 = vmatpush1.msra.mxu0 0.0
    %2239 = vmatprep.subr.mxu0 0.0
    %2240 = vmatpush1.msra.mxu0 0.0
    %2241 = vmatprep.subr.mxu0 0.0
    %2242 = vmatpush1.msra.mxu0 0.0
    %2243 = vmatprep.subr.mxu0 0.0
    %2244 = vmatpush1.msra.mxu0 0.0
    %2245 = vmatprep.subr.mxu0 0.0
    %2246 = vmatpush1.msra.mxu0 0.0
    %2247 = vmatprep.subr.mxu0 0.0
    %2248 = vmatpush1.msra.mxu0 0.0
    %2249 = vmatprep.subr.mxu0 0.0
    %2250 = vmatpush1.msra.mxu0 0.0
    %2251 = vmatprep.subr.mxu0 0.0
    %2252 = vmatpush1.msra.mxu0 0.0
    %2253 = vmatprep.mubr.f32.mxu0 0.0
    %2254 = vmatmul.mubr.f32.gmra.mrb[0].mxu0 %v2166
    %v2255 = vpop.f32.mrb[0].mxu0
    %v2256 = vadd.f32 %v2164, %v2255
    %v2257 = vpop.f32.mrb[0].mxu0
    %2258 = vmatprep.mubr.f32.mxu0 0.0
    %2259 = vmatmul.mubr.f32.gmra.mrb[0].mxu0 %v2169
    %v2260 = vpop.f32.mrb[0].mxu0
    %v2261 = vadd.f32 %v2164, %v2260
    %v2262 = vpop.f32.mrb[0].mxu0
    %2263 = vmatprep.mubr.f32.mxu0 0.0
    %2264 = vmatmul.mubr.f32.gmra.mrb[0].mxu0 %v2172
    %v2265 = vpop.f32.mrb[0].mxu0
    %v2266 = vadd.f32 %v2164, %v2265
    %v2267 = vpop.f32.mrb[0].mxu0
    %2268 = vmatprep.mubr.f32.mxu0 0.0
    %2269 = vmatmul.mubr.f32.gmra.mrb[0].mxu0 %v2175
    %v2270 = vpop.f32.mrb[0].mxu0
    %v2271 = vadd.f32 %v2164, %v2270
    %v2272 = vpop.f32.mrb[0].mxu0
    %2273 = vmatprep.mubr.f32.mxu0 0.0
    %2274 = vmatmul.mubr.f32.gmra.mrb[0].mxu0 %v2178
    %v2275 = vpop.f32.mrb[0].mxu0
    %v2276 = vadd.f32 %v2164, %v2275
    %v2277 = vpop.f32.mrb[0].mxu0
    %2278 = vmatprep.mubr.f32.mxu0 0.0
    %2279 = vmatmul.mubr.f32.gmra.mrb[0].mxu0 %v2181
    %v2280 = vpop.f32.mrb[0].mxu0
    %v2281 = vadd.f32 %v2164, %v2280
    %v2282 = vpop.f32.mrb[0].mxu0
    %2283 = vmatprep.mubr.f32.mxu0 0.0
    %2284 = vmatmul.mubr.f32.gmra.mrb[0].mxu0 %v2184
    %v2285 = vpop.f32.mrb[0].mxu0
    %v2286 = vadd.f32 %v2164, %v2285
    %v2287 = vpop.f32.mrb[0].mxu0
    %2288 = vmatprep.mubr.f32.mxu0 0.0
    %2289 = vmatmul.mubr.f32.gmra.mrb[0].mxu0 %v2187
    %v2290 = vpop.f32.mrb[0].mxu0
    %v2291 = vadd.f32 %v2164, %v2290
    %v2292 = vpop.f32.mrb[0].mxu0
    %2293 = vdwg.mxu0
    %v2294 = vmul.f32 %v2256, %v435
    %v2295 = vmul.f32 %v2261, %v437
    %v2296 = vmul.f32 %v2266, %v439
    %v2297 = vmul.f32 %v2271, %v441
    %v2298 = vmul.f32 %v2276, %v443
    %v2299 = vmul.f32 %v2281, %v445
    %v2300 = vmul.f32 %v2286, %v447
    %v2301 = vmul.f32 %v2291, %v449
    %v2302 = vmul.f32 %v2256, %v451
    %v2303 = vmul.f32 %v2261, %v453
    %v2304 = vmul.f32 %v2266, %v455
    %v2305 = vmul.f32 %v2271, %v457
    %v2306 = vmul.f32 %v2276, %v459
    %v2307 = vmul.f32 %v2281, %v461
    %v2308 = vmul.f32 %v2286, %v463
    %v2309 = vmul.f32 %v2291, %v465
    %v2310 = vmul.f32 %v2256, %v467
    %v2311 = vmul.f32 %v2261, %v469
    %v2312 = vmul.f32 %v2266, %v471
    %v2313 = vmul.f32 %v2271, %v473
    %v2314 = vmul.f32 %v2276, %v475
    %v2315 = vmul.f32 %v2281, %v477
    %v2316 = vmul.f32 %v2286, %v479
    %v2317 = vmul.f32 %v2291, %v481
    %v2318 = vmul.f32 %v2256, %v483
    %v2319 = vmul.f32 %v2261, %v485
    %v2320 = vmul.f32 %v2266, %v487
    %v2321 = vmul.f32 %v2271, %v489
    %v2322 = vmul.f32 %v2276, %v491
    %v2323 = vmul.f32 %v2281, %v493
    %v2324 = vmul.f32 %v2286, %v495
    %v2325 = vmul.f32 %v2291, %v497
    %v2326 = vmul.f32 %v2256, %v563
    %v2327 = vmul.f32 %v2261, %v565
    %v2328 = vmul.f32 %v2266, %v567
    %v2329 = vmul.f32 %v2271, %v569
    %v2330 = vmul.f32 %v2276, %v571
    %v2331 = vmul.f32 %v2281, %v573
    %v2332 = vmul.f32 %v2286, %v575
    %v2333 = vmul.f32 %v2291, %v577
    %v2334 = vmul.f32 %v2256, %v579
    %v2335 = vmul.f32 %v2261, %v581
    %v2336 = vmul.f32 %v2266, %v583
    %v2337 = vmul.f32 %v2271, %v585
    %v2338 = vmul.f32 %v2276, %v587
    %v2339 = vmul.f32 %v2281, %v589
    %v2340 = vmul.f32 %v2286, %v591
    %v2341 = vmul.f32 %v2291, %v593
    %v2342 = vmul.f32 %v2256, %v595
    %v2343 = vmul.f32 %v2261, %v597
    %v2344 = vmul.f32 %v2266, %v599
    %v2345 = vmul.f32 %v2271, %v601
    %v2346 = vmul.f32 %v2276, %v603
    %v2347 = vmul.f32 %v2281, %v605
    %v2348 = vmul.f32 %v2286, %v607
    %v2349 = vmul.f32 %v2291, %v609
    %v2350 = vmul.f32 %v2256, %v611
    %v2351 = vmul.f32 %v2261, %v613
    %v2352 = vmul.f32 %v2266, %v615
    %v2353 = vmul.f32 %v2271, %v617
    %v2354 = vmul.f32 %v2276, %v619
    %v2355 = vmul.f32 %v2281, %v621
    %v2356 = vmul.f32 %v2286, %v623
    %v2357 = vmul.f32 %v2291, %v625
    %2390 = vrot.lane.b32.xlu0 %v2294, 112
    %v2391 = vpop.permute.xlu0 %2390
    %2392 = vrot.lane.b32.xlu0 %v2295, 112
    %v2393 = vpop.permute.xlu0 %2392
    %2394 = vrot.lane.b32.xlu0 %v2296, 112
    %v2395 = vpop.permute.xlu0 %2394
    %2396 = vrot.lane.b32.xlu0 %v2297, 112
    %v2397 = vpop.permute.xlu0 %2396
    %2398 = vrot.lane.b32.xlu0 %v2298, 112
    %v2399 = vpop.permute.xlu0 %2398
    %2400 = vrot.lane.b32.xlu0 %v2299, 112
    %v2401 = vpop.permute.xlu0 %2400
    %2402 = vrot.lane.b32.xlu0 %v2300, 112
    %v2403 = vpop.permute.xlu0 %2402
    %2404 = vrot.lane.b32.xlu0 %v2301, 112
    %v2405 = vpop.permute.xlu0 %2404
    %2406 = vrot.lane.b32.xlu0 %v2302, 112
    %v2407 = vpop.permute.xlu0 %2406
    %2408 = vrot.lane.b32.xlu0 %v2303, 112
    %v2409 = vpop.permute.xlu0 %2408
    %2410 = vrot.lane.b32.xlu0 %v2304, 112
    %v2411 = vpop.permute.xlu0 %2410
    %2412 = vrot.lane.b32.xlu0 %v2305, 112
    %v2413 = vpop.permute.xlu0 %2412
    %2414 = vrot.lane.b32.xlu0 %v2306, 112
    %v2415 = vpop.permute.xlu0 %2414
    %2416 = vrot.lane.b32.xlu0 %v2307, 112
    %v2417 = vpop.permute.xlu0 %2416
    %2418 = vrot.lane.b32.xlu0 %v2308, 112
    %v2419 = vpop.permute.xlu0 %2418
    %2420 = vrot.lane.b32.xlu0 %v2309, 112
    %v2421 = vpop.permute.xlu0 %2420
    %2422 = vrot.lane.b32.xlu0 %v2310, 112
    %v2423 = vpop.permute.xlu0 %2422
    %2424 = vrot.lane.b32.xlu0 %v2311, 112
    %v2425 = vpop.permute.xlu0 %2424
    %2426 = vrot.lane.b32.xlu0 %v2312, 112
    %v2427 = vpop.permute.xlu0 %2426
    %2428 = vrot.lane.b32.xlu0 %v2313, 112
    %v2429 = vpop.permute.xlu0 %2428
    %2430 = vrot.lane.b32.xlu0 %v2314, 112
    %v2431 = vpop.permute.xlu0 %2430
    %2432 = vrot.lane.b32.xlu0 %v2315, 112
    %v2433 = vpop.permute.xlu0 %2432
    %2434 = vrot.lane.b32.xlu0 %v2316, 112
    %v2435 = vpop.permute.xlu0 %2434
    %2436 = vrot.lane.b32.xlu0 %v2317, 112
    %v2437 = vpop.permute.xlu0 %2436
    %2438 = vrot.lane.b32.xlu0 %v2318, 112
    %v2439 = vpop.permute.xlu0 %2438
    %2440 = vrot.lane.b32.xlu0 %v2319, 112
    %v2441 = vpop.permute.xlu0 %2440
    %2442 = vrot.lane.b32.xlu0 %v2320, 112
    %v2443 = vpop.permute.xlu0 %2442
    %2444 = vrot.lane.b32.xlu0 %v2321, 112
    %v2445 = vpop.permute.xlu0 %2444
    %2446 = vrot.lane.b32.xlu0 %v2322, 112
    %v2447 = vpop.permute.xlu0 %2446
    %2448 = vrot.lane.b32.xlu0 %v2323, 112
    %v2449 = vpop.permute.xlu0 %2448
    %2450 = vrot.lane.b32.xlu0 %v2324, 112
    %v2451 = vpop.permute.xlu0 %2450
    %2452 = vrot.lane.b32.xlu0 %v2325, 112
    %v2453 = vpop.permute.xlu0 %2452
    %v2455 = vsel %vm272, %v2256, 0
    %v2458 = vsel %vm272, %v2261, 0
    %v2461 = vsel %vm272, %v2266, 0
    %v2464 = vsel %vm272, %v2271, 0
    %v2467 = vsel %vm272, %v2276, 0
    %v2470 = vsel %vm272, %v2281, 0
    %v2473 = vsel %vm272, %v2286, 0
    %v2476 = vsel %vm272, %v2291, 0
    %v2478 = vsel %vm272, %v2391, 0
    %v2480 = vsel %vm272, %v2393, 0
    %v2482 = vsel %vm272, %v2395, 0
    %v2484 = vsel %vm272, %v2397, 0
    %v2486 = vsel %vm272, %v2399, 0
    %v2488 = vsel %vm272, %v2401, 0
    %v2490 = vsel %vm272, %v2403, 0
    %v2492 = vsel %vm272, %v2405, 0
    %v2494 = vsel %vm272, %v2407, 0
    %v2496 = vsel %vm272, %v2409, 0
    %v2498 = vsel %vm272, %v2411, 0
    %v2500 = vsel %vm272, %v2413, 0
    %v2502 = vsel %vm272, %v2415, 0
    %v2504 = vsel %vm272, %v2417, 0
    %v2506 = vsel %vm272, %v2419, 0
    %v2508 = vsel %vm272, %v2421, 0
    %v2510 = vsel %vm272, %v2423, 0
    %v2512 = vsel %vm272, %v2425, 0
    %v2514 = vsel %vm272, %v2427, 0
    %v2516 = vsel %vm272, %v2429, 0
    %v2518 = vsel %vm272, %v2431, 0
    %v2520 = vsel %vm272, %v2433, 0
    %v2522 = vsel %vm272, %v2435, 0
    %v2524 = vsel %vm272, %v2437, 0
    %v2526 = vsel %vm272, %v2439, 0
    %v2528 = vsel %vm272, %v2441, 0
    %v2530 = vsel %vm272, %v2443, 0
    %v2532 = vsel %vm272, %v2445, 0
    %v2534 = vsel %vm272, %v2447, 0
    %v2536 = vsel %vm272, %v2449, 0
    %v2538 = vsel %vm272, %v2451, 0
    %v2540 = vsel %vm272, %v2453, 0
    %2542 = vmatprep.subr.mxu0 0.0
    %2543 = vmatpush1.xpose.msra.mxu0 %v2478
    %2544 = vmatprep.subr.mxu0 0.0
    %2545 = vmatpush1.xpose.msra.mxu0 %v2480
    %2546 = vmatprep.subr.mxu0 0.0
    %2547 = vmatpush1.xpose.msra.mxu0 %v2482
    %2548 = vmatprep.subr.mxu0 0.0
    %2549 = vmatpush1.xpose.msra.mxu0 %v2484
    %2550 = vmatprep.subr.mxu0 0.0
    %2551 = vmatpush1.xpose.msra.mxu0 %v2486
    %2552 = vmatprep.subr.mxu0 0.0
    %2553 = vmatpush1.xpose.msra.mxu0 %v2488
    %2554 = vmatprep.subr.mxu0 0.0
    %2555 = vmatpush1.xpose.msra.mxu0 %v2490
    %2556 = vmatprep.subr.mxu0 0.0
    %2557 = vmatpush1.xpose.msra.mxu0 %v2492
    %2558 = vmatprep.subr.mxu0 0.0
    %2559 = vmatpush1.xpose.msra.mxu0 %v2494
    %2560 = vmatprep.subr.mxu0 0.0
    %2561 = vmatpush1.xpose.msra.mxu0 %v2496
    %2562 = vmatprep.subr.mxu0 0.0
    %2563 = vmatpush1.xpose.msra.mxu0 %v2498
    %2564 = vmatprep.subr.mxu0 0.0
    %2565 = vmatpush1.xpose.msra.mxu0 %v2500
    %2566 = vmatprep.subr.mxu0 0.0
    %2567 = vmatpush1.xpose.msra.mxu0 %v2502
    %2568 = vmatprep.subr.mxu0 0.0
    %2569 = vmatpush1.xpose.msra.mxu0 %v2504
    %2570 = vmatprep.subr.mxu0 0.0
    %2571 = vmatpush1.xpose.msra.mxu0 %v2506
    %2572 = vmatprep.subr.mxu0 0.0
    %2573 = vmatpush1.xpose.msra.mxu0 %v2508
    %2574 = vmatprep.subr.mxu0 0.0
    %2575 = vmatpush1.xpose.msra.mxu0 %v2510
    %2576 = vmatprep.subr.mxu0 0.0
    %2577 = vmatpush1.xpose.msra.mxu0 %v2512
    %2578 = vmatprep.subr.mxu0 0.0
    %2579 = vmatpush1.xpose.msra.mxu0 %v2514
    %2580 = vmatprep.subr.mxu0 0.0
    %2581 = vmatpush1.xpose.msra.mxu0 %v2516
    %2582 = vmatprep.subr.mxu0 0.0
    %2583 = vmatpush1.xpose.msra.mxu0 %v2518
    %2584 = vmatprep.subr.mxu0 0.0
    %2585 = vmatpush1.xpose.msra.mxu0 %v2520
    %2586 = vmatprep.subr.mxu0 0.0
    %2587 = vmatpush1.xpose.msra.mxu0 %v2522
    %2588 = vmatprep.subr.mxu0 0.0
    %2589 = vmatpush1.xpose.msra.mxu0 %v2524
    %2590 = vmatprep.subr.mxu0 0.0
    %2591 = vmatpush1.xpose.msra.mxu0 %v2526
    %2592 = vmatprep.subr.mxu0 0.0
    %2593 = vmatpush1.xpose.msra.mxu0 %v2528
    %2594 = vmatprep.subr.mxu0 0.0
    %2595 = vmatpush1.xpose.msra.mxu0 %v2530
    %2596 = vmatprep.subr.mxu0 0.0
    %2597 = vmatpush1.xpose.msra.mxu0 %v2532
    %2598 = vmatprep.subr.mxu0 0.0
    %2599 = vmatpush1.xpose.msra.mxu0 %v2534
    %2600 = vmatprep.subr.mxu0 0.0
    %2601 = vmatpush1.xpose.msra.mxu0 %v2536
    %2602 = vmatprep.subr.mxu0 0.0
    %2603 = vmatpush1.xpose.msra.mxu0 %v2538
    %2604 = vmatprep.subr.mxu0 0.0
    %2605 = vmatpush1.xpose.msra.mxu0 %v2540
    %2606 = vmatprep.mubr.f32.mxu0 0.0
    %2607 = vmatmul.mubr.f32.gmra.mrb[0].mxu0 %v2455
    %v2608 = vpop.f32.mrb[0].mxu0
    %v2609 = vadd.f32 0.0, %v2608
    %v2610 = vpop.f32.mrb[0].mxu0
    %v2611 = vadd.f32 0.0, %v2610
    %2612 = vmatprep.mubr.f32.mxu0 0.0
    %2613 = vmatmul.mubr.f32.gmra.mrb[0].mxu0 %v2458
    %v2614 = vpop.f32.mrb[0].mxu0
    %v2615 = vadd.f32 0.0, %v2614
    %v2616 = vpop.f32.mrb[0].mxu0
    %v2617 = vadd.f32 0.0, %v2616
    %2618 = vmatprep.mubr.f32.mxu0 0.0
    %2619 = vmatmul.mubr.f32.gmra.mrb[0].mxu0 %v2461
    %v2620 = vpop.f32.mrb[0].mxu0
    %v2621 = vadd.f32 0.0, %v2620
    %v2622 = vpop.f32.mrb[0].mxu0
    %v2623 = vadd.f32 0.0, %v2622
    %2624 = vmatprep.mubr.f32.mxu0 0.0
    %2625 = vmatmul.mubr.f32.gmra.mrb[0].mxu0 %v2464
    %v2626 = vpop.f32.mrb[0].mxu0
    %v2627 = vadd.f32 0.0, %v2626
    %v2628 = vpop.f32.mrb[0].mxu0
    %v2629 = vadd.f32 0.0, %v2628
    %2630 = vmatprep.mubr.f32.mxu0 0.0
    %2631 = vmatmul.mubr.f32.gmra.mrb[0].mxu0 %v2467
    %v2632 = vpop.f32.mrb[0].mxu0
    %v2633 = vadd.f32 0.0, %v2632
    %v2634 = vpop.f32.mrb[0].mxu0
    %v2635 = vadd.f32 0.0, %v2634
    %2636 = vmatprep.mubr.f32.mxu0 0.0
    %2637 = vmatmul.mubr.f32.gmra.mrb[0].mxu0 %v2470
    %v2638 = vpop.f32.mrb[0].mxu0
    %v2639 = vadd.f32 0.0, %v2638
    %v2640 = vpop.f32.mrb[0].mxu0
    %v2641 = vadd.f32 0.0, %v2640
    %2642 = vmatprep.mubr.f32.mxu0 0.0
    %2643 = vmatmul.mubr.f32.gmra.mrb[0].mxu0 %v2473
    %v2644 = vpop.f32.mrb[0].mxu0
    %v2645 = vadd.f32 0.0, %v2644
    %v2646 = vpop.f32.mrb[0].mxu0
    %v2647 = vadd.f32 0.0, %v2646
    %2648 = vmatprep.mubr.f32.mxu0 0.0
    %2649 = vmatmul.mubr.f32.gmra.mrb[0].mxu0 %v2476
    %v2650 = vpop.f32.mrb[0].mxu0
    %v2651 = vadd.f32 0.0, %v2650
    %v2652 = vpop.f32.mrb[0].mxu0
    %v2653 = vadd.f32 0.0, %v2652
    %2654 = vdwg.mxu0
    %v2655 = vmul.f32 %v2609, 0.5
    %v2656 = vmul.f32 %v2611, 0.5
    %v2657 = vmul.f32 %v2615, 0.5
    %v2658 = vmul.f32 %v2617, 0.5
    %v2659 = vmul.f32 %v2621, 0.5
    %v2660 = vmul.f32 %v2623, 0.5
    %v2661 = vmul.f32 %v2627, 0.5
    %v2662 = vmul.f32 %v2629, 0.5
    %v2663 = vmul.f32 %v2633, 0.5
    %v2664 = vmul.f32 %v2635, 0.5
    %v2665 = vmul.f32 %v2639, 0.5
    %v2666 = vmul.f32 %v2641, 0.5
    %v2667 = vmul.f32 %v2645, 0.5
    %v2668 = vmul.f32 %v2647, 0.5
    %v2669 = vmul.f32 %v2651, 0.5
    %v2670 = vmul.f32 %v2653, 0.5
    %v2671 = vadd.f32 %v2655, %v217
    %v2672 = vadd.f32 %v2656, %v218
    %v2673 = vadd.f32 %v2657, %v219
    %v2674 = vadd.f32 %v2658, %v220
    %v2675 = vadd.f32 %v2659, %v221
    %v2676 = vadd.f32 %v2660, %v222
    %v2677 = vadd.f32 %v2661, %v223
    %v2678 = vadd.f32 %v2662, %v224
    %v2679 = vadd.f32 %v2663, %v225
    %v2680 = vadd.f32 %v2664, %v226
    %v2681 = vadd.f32 %v2665, %v227
    %v2682 = vadd.f32 %v2666, %v228
    %v2683 = vadd.f32 %v2667, %v229
    %v2684 = vadd.f32 %v2668, %v230
    %v2685 = vadd.f32 %v2669, %v231
    %v2686 = vadd.f32 %v2670, %v232
    %v2687 = vmax.f32 %v2671, %v2672
    %2688 = vmax.xlane.f32.xlu0 %v2687
    %v2689 = vpop.xlane.xlu0 %2688
    %v2690 = vmax.f32 %v2673, %v2674
    %2691 = vmax.xlane.f32.xlu0 %v2690
    %v2692 = vpop.xlane.xlu0 %2691
    %v2693 = vmax.f32 %v2675, %v2676
    %2694 = vmax.xlane.f32.xlu0 %v2693
    %v2695 = vpop.xlane.xlu0 %2694
    %v2696 = vmax.f32 %v2677, %v2678
    %2697 = vmax.xlane.f32.xlu0 %v2696
    %v2698 = vpop.xlane.xlu0 %2697
    %v2699 = vmax.f32 %v2679, %v2680
    %2700 = vmax.xlane.f32.xlu0 %v2699
    %v2701 = vpop.xlane.xlu0 %2700
    %v2702 = vmax.f32 %v2681, %v2682
    %2703 = vmax.xlane.f32.xlu0 %v2702
    %v2704 = vpop.xlane.xlu0 %2703
    %v2705 = vmax.f32 %v2683, %v2684
    %2706 = vmax.xlane.f32.xlu0 %v2705
    %v2707 = vpop.xlane.xlu0 %2706
    %v2708 = vmax.f32 %v2685, %v2686
    %2709 = vmax.xlane.f32.xlu0 %v2708
    %v2710 = vpop.xlane.xlu0 %2709
    %v2711 = vsub.f32 %v2671, %v2689
    %v2712 = vsub.f32 %v2672, %v2689
    %v2713 = vsub.f32 %v2673, %v2692
    %v2714 = vsub.f32 %v2674, %v2692
    %v2715 = vsub.f32 %v2675, %v2695
    %v2716 = vsub.f32 %v2676, %v2695
    %v2717 = vsub.f32 %v2677, %v2698
    %v2718 = vsub.f32 %v2678, %v2698
    %v2719 = vsub.f32 %v2679, %v2701
    %v2720 = vsub.f32 %v2680, %v2701
    %v2721 = vsub.f32 %v2681, %v2704
    %v2722 = vsub.f32 %v2682, %v2704
    %v2723 = vsub.f32 %v2683, %v2707
    %v2724 = vsub.f32 %v2684, %v2707
    %v2725 = vsub.f32 %v2685, %v2710
    %v2726 = vsub.f32 %v2686, %v2710
    %v2727 = vmul.f32 %v2711, 1.442695
    %v2728 = vpow.pop %v2727
    %v2729 = vmul.f32 %v2712, 1.442695
    %v2730 = vpow.pop %v2729
    %v2731 = vmul.f32 %v2713, 1.442695
    %v2732 = vpow.pop %v2731
    %v2733 = vmul.f32 %v2714, 1.442695
    %v2734 = vpow.pop %v2733
    %v2735 = vmul.f32 %v2715, 1.442695
    %v2736 = vpow.pop %v2735
    %v2737 = vmul.f32 %v2716, 1.442695
    %v2738 = vpow.pop %v2737
    %v2739 = vmul.f32 %v2717, 1.442695
    %v2740 = vpow.pop %v2739
    %v2741 = vmul.f32 %v2718, 1.442695
    %v2742 = vpow.pop %v2741
    %v2743 = vmul.f32 %v2719, 1.442695
    %v2744 = vpow.pop %v2743
    %v2745 = vmul.f32 %v2720, 1.442695
    %v2746 = vpow.pop %v2745
    %v2747 = vmul.f32 %v2721, 1.442695
    %v2748 = vpow.pop %v2747
    %v2749 = vmul.f32 %v2722, 1.442695
    %v2750 = vpow.pop %v2749
    %v2751 = vmul.f32 %v2723, 1.442695
    %v2752 = vpow.pop %v2751
    %v2753 = vmul.f32 %v2724, 1.442695
    %v2754 = vpow.pop %v2753
    %v2755 = vmul.f32 %v2725, 1.442695
    %v2756 = vpow.pop %v2755
    %v2757 = vmul.f32 %v2726, 1.442695
    %v2758 = vpow.pop %v2757
    %2791 = vrot.lane.b32.xlu0 %v2326, 96
    %v2792 = vpop.permute.xlu0 %2791
    %2793 = vrot.lane.b32.xlu0 %v2327, 96
    %v2794 = vpop.permute.xlu0 %2793
    %2795 = vrot.lane.b32.xlu0 %v2328, 96
    %v2796 = vpop.permute.xlu0 %2795
    %2797 = vrot.lane.b32.xlu0 %v2329, 96
    %v2798 = vpop.permute.xlu0 %2797
    %2799 = vrot.lane.b32.xlu0 %v2330, 96
    %v2800 = vpop.permute.xlu0 %2799
    %2801 = vrot.lane.b32.xlu0 %v2331, 96
    %v2802 = vpop.permute.xlu0 %2801
    %2803 = vrot.lane.b32.xlu0 %v2332, 96
    %v2804 = vpop.permute.xlu0 %2803
    %2805 = vrot.lane.b32.xlu0 %v2333, 96
    %v2806 = vpop.permute.xlu0 %2805
    %2807 = vrot.lane.b32.xlu0 %v2334, 96
    %v2808 = vpop.permute.xlu0 %2807
    %2809 = vrot.lane.b32.xlu0 %v2335, 96
    %v2810 = vpop.permute.xlu0 %2809
    %2811 = vrot.lane.b32.xlu0 %v2336, 96
    %v2812 = vpop.permute.xlu0 %2811
    %2813 = vrot.lane.b32.xlu0 %v2337, 96
    %v2814 = vpop.permute.xlu0 %2813
    %2815 = vrot.lane.b32.xlu0 %v2338, 96
    %v2816 = vpop.permute.xlu0 %2815
    %2817 = vrot.lane.b32.xlu0 %v2339, 96
    %v2818 = vpop.permute.xlu0 %2817
    %2819 = vrot.lane.b32.xlu0 %v2340, 96
    %v2820 = vpop.permute.xlu0 %2819
    %2821 = vrot.lane.b32.xlu0 %v2341, 96
    %v2822 = vpop.permute.xlu0 %2821
    %2823 = vrot.lane.b32.xlu0 %v2342, 96
    %v2824 = vpop.permute.xlu0 %2823
    %2825 = vrot.lane.b32.xlu0 %v2343, 96
    %v2826 = vpop.permute.xlu0 %2825
    %2827 = vrot.lane.b32.xlu0 %v2344, 96
    %v2828 = vpop.permute.xlu0 %2827
    %2829 = vrot.lane.b32.xlu0 %v2345, 96
    %v2830 = vpop.permute.xlu0 %2829
    %2831 = vrot.lane.b32.xlu0 %v2346, 96
    %v2832 = vpop.permute.xlu0 %2831
    %2833 = vrot.lane.b32.xlu0 %v2347, 96
    %v2834 = vpop.permute.xlu0 %2833
    %2835 = vrot.lane.b32.xlu0 %v2348, 96
    %v2836 = vpop.permute.xlu0 %2835
    %2837 = vrot.lane.b32.xlu0 %v2349, 96
    %v2838 = vpop.permute.xlu0 %2837
    %2839 = vrot.lane.b32.xlu0 %v2350, 96
    %v2840 = vpop.permute.xlu0 %2839
    %2841 = vrot.lane.b32.xlu0 %v2351, 96
    %v2842 = vpop.permute.xlu0 %2841
    %2843 = vrot.lane.b32.xlu0 %v2352, 96
    %v2844 = vpop.permute.xlu0 %2843
    %2845 = vrot.lane.b32.xlu0 %v2353, 96
    %v2846 = vpop.permute.xlu0 %2845
    %2847 = vrot.lane.b32.xlu0 %v2354, 96
    %v2848 = vpop.permute.xlu0 %2847
    %2849 = vrot.lane.b32.xlu0 %v2355, 96
    %v2850 = vpop.permute.xlu0 %2849
    %2851 = vrot.lane.b32.xlu0 %v2356, 96
    %v2852 = vpop.permute.xlu0 %2851
    %2853 = vrot.lane.b32.xlu0 %v2357, 96
    %v2854 = vpop.permute.xlu0 %2853
    %v2887 = vsel %vm272, %v2792, %v435
    %v2888 = vsel %vm272, %v2794, %v437
    %v2889 = vsel %vm272, %v2796, %v439
    %v2890 = vsel %vm272, %v2798, %v441
    %v2891 = vsel %vm272, %v2800, %v443
    %v2892 = vsel %vm272, %v2802, %v445
    %v2893 = vsel %vm272, %v2804, %v447
    %v2894 = vsel %vm272, %v2806, %v449
    %v2895 = vsel %vm272, %v2808, %v451
    %v2896 = vsel %vm272, %v2810, %v453
    %v2897 = vsel %vm272, %v2812, %v455
    %v2898 = vsel %vm272, %v2814, %v457
    %v2899 = vsel %vm272, %v2816, %v459
    %v2900 = vsel %vm272, %v2818, %v461
    %v2901 = vsel %vm272, %v2820, %v463
    %v2902 = vsel %vm272, %v2822, %v465
    %v2903 = vsel %vm272, %v2824, %v467
    %v2904 = vsel %vm272, %v2826, %v469
    %v2905 = vsel %vm272, %v2828, %v471
    %v2906 = vsel %vm272, %v2830, %v473
    %v2907 = vsel %vm272, %v2832, %v475
    %v2908 = vsel %vm272, %v2834, %v477
    %v2909 = vsel %vm272, %v2836, %v479
    %v2910 = vsel %vm272, %v2838, %v481
    %v2911 = vsel %vm272, %v2840, %v483
    %v2912 = vsel %vm272, %v2842, %v485
    %v2913 = vsel %vm272, %v2844, %v487
    %v2914 = vsel %vm272, %v2846, %v489
    %v2915 = vsel %vm272, %v2848, %v491
    %v2916 = vsel %vm272, %v2850, %v493
    %v2917 = vsel %vm272, %v2852, %v495
    %v2918 = vsel %vm272, %v2854, %v497
    %2919 = vmatprep.subr.mxu0 0.0
    %2920 = vmatpush1.msra.mxu0 %v2887
    %2921 = vmatprep.subr.mxu0 0.0
    %2922 = vmatpush1.msra.mxu0 %v2888
    %2923 = vmatprep.subr.mxu0 0.0
    %2924 = vmatpush1.msra.mxu0 %v2889
    %2925 = vmatprep.subr.mxu0 0.0
    %2926 = vmatpush1.msra.mxu0 %v2890
    %2927 = vmatprep.subr.mxu0 0.0
    %2928 = vmatpush1.msra.mxu0 %v2891
    %2929 = vmatprep.subr.mxu0 0.0
    %2930 = vmatpush1.msra.mxu0 %v2892
    %2931 = vmatprep.subr.mxu0 0.0
    %2932 = vmatpush1.msra.mxu0 %v2893
    %2933 = vmatprep.subr.mxu0 0.0
    %2934 = vmatpush1.msra.mxu0 %v2894
    %2935 = vmatprep.subr.mxu0 0.0
    %2936 = vmatpush1.msra.mxu0 %v2895
    %2937 = vmatprep.subr.mxu0 0.0
    %2938 = vmatpush1.msra.mxu0 %v2896
    %2939 = vmatprep.subr.mxu0 0.0
    %2940 = vmatpush1.msra.mxu0 %v2897
    %2941 = vmatprep.subr.mxu0 0.0
    %2942 = vmatpush1.msra.mxu0 %v2898
    %2943 = vmatprep.subr.mxu0 0.0
    %2944 = vmatpush1.msra.mxu0 %v2899
    %2945 = vmatprep.subr.mxu0 0.0
    %2946 = vmatpush1.msra.mxu0 %v2900
    %2947 = vmatprep.subr.mxu0 0.0
    %2948 = vmatpush1.msra.mxu0 %v2901
    %2949 = vmatprep.subr.mxu0 0.0
    %2950 = vmatpush1.msra.mxu0 %v2902
    %2951 = vmatprep.subr.mxu0 0.0
    %2952 = vmatpush1.msra.mxu0 %v2903
    %2953 = vmatprep.subr.mxu0 0.0
    %2954 = vmatpush1.msra.mxu0 %v2904
    %2955 = vmatprep.subr.mxu0 0.0
    %2956 = vmatpush1.msra.mxu0 %v2905
    %2957 = vmatprep.subr.mxu0 0.0
    %2958 = vmatpush1.msra.mxu0 %v2906
    %2959 = vmatprep.subr.mxu0 0.0
    %2960 = vmatpush1.msra.mxu0 %v2907
    %2961 = vmatprep.subr.mxu0 0.0
    %2962 = vmatpush1.msra.mxu0 %v2908
    %2963 = vmatprep.subr.mxu0 0.0
    %2964 = vmatpush1.msra.mxu0 %v2909
    %2965 = vmatprep.subr.mxu0 0.0
    %2966 = vmatpush1.msra.mxu0 %v2910
    %2967 = vmatprep.subr.mxu0 0.0
    %2968 = vmatpush1.msra.mxu0 %v2911
    %2969 = vmatprep.subr.mxu0 0.0
    %2970 = vmatpush1.msra.mxu0 %v2912
    %2971 = vmatprep.subr.mxu0 0.0
    %2972 = vmatpush1.msra.mxu0 %v2913
    %2973 = vmatprep.subr.mxu0 0.0
    %2974 = vmatpush1.msra.mxu0 %v2914
    %2975 = vmatprep.subr.mxu0 0.0
    %2976 = vmatpush1.msra.mxu0 %v2915
    %2977 = vmatprep.subr.mxu0 0.0
    %2978 = vmatpush1.msra.mxu0 %v2916
    %2979 = vmatprep.subr.mxu0 0.0
    %2980 = vmatpush1.msra.mxu0 %v2917
    %2981 = vmatprep.subr.mxu0 0.0
    %2982 = vmatpush1.msra.mxu0 %v2918
    %2983 = vmatprep.mubr.f32.mxu0 %v2730
    %2984 = vmatmul.mubr.f32.gmra.mrb[0].mxu0 %v2728
    %v2985 = vpop.f32.mrb[0].mxu0
    %v2986 = vadd.f32 0.0, %v2985
    %v2987 = vpop.f32.mrb[0].mxu0
    %2988 = vmatprep.mubr.f32.mxu0 %v2734
    %2989 = vmatmul.mubr.f32.gmra.mrb[0].mxu0 %v2732
    %v2990 = vpop.f32.mrb[0].mxu0
    %v2991 = vadd.f32 0.0, %v2990
    %v2992 = vpop.f32.mrb[0].mxu0
    %2993 = vmatprep.mubr.f32.mxu0 %v2738
    %2994 = vmatmul.mubr.f32.gmra.mrb[0].mxu0 %v2736
    %v2995 = vpop.f32.mrb[0].mxu0
    %v2996 = vadd.f32 0.0, %v2995
    %v2997 = vpop.f32.mrb[0].mxu0
    %2998 = vmatprep.mubr.f32.mxu0 %v2742
    %2999 = vmatmul.mubr.f32.gmra.mrb[0].mxu0 %v2740
    %v3000 = vpop.f32.mrb[0].mxu0
    %v3001 = vadd.f32 0.0, %v3000
    %v3002 = vpop.f32.mrb[0].mxu0
    %3003 = vmatprep.mubr.f32.mxu0 %v2746
    %3004 = vmatmul.mubr.f32.gmra.mrb[0].mxu0 %v2744
    %v3005 = vpop.f32.mrb[0].mxu0
    %v3006 = vadd.f32 0.0, %v3005
    %v3007 = vpop.f32.mrb[0].mxu0
    %3008 = vmatprep.mubr.f32.mxu0 %v2750
    %3009 = vmatmul.mubr.f32.gmra.mrb[0].mxu0 %v2748
    %v3010 = vpop.f32.mrb[0].mxu0
    %v3011 = vadd.f32 0.0, %v3010
    %v3012 = vpop.f32.mrb[0].mxu0
    %3013 = vmatprep.mubr.f32.mxu0 %v2754
    %3014 = vmatmul.mubr.f32.gmra.mrb[0].mxu0 %v2752
    %v3015 = vpop.f32.mrb[0].mxu0
    %v3016 = vadd.f32 0.0, %v3015
    %v3017 = vpop.f32.mrb[0].mxu0
    %3018 = vmatprep.mubr.f32.mxu0 %v2758
    %3019 = vmatmul.mubr.f32.gmra.mrb[0].mxu0 %v2756
    %v3020 = vpop.f32.mrb[0].mxu0
    %v3021 = vadd.f32 0.0, %v3020
    %v3022 = vpop.f32.mrb[0].mxu0
    %3023 = vdwg.mxu0
    %v3024 = vrcp.pop %v2986
    %v3025 = vrcp.pop %v2991
    %v3026 = vrcp.pop %v2996
    %v3027 = vrcp.pop %v3001
    %v3028 = vrcp.pop %v3006
    %v3029 = vrcp.pop %v3011
    %v3030 = vrcp.pop %v3016
    %v3031 = vrcp.pop %v3021
    %3040 = vrot.lane.b32.xlu0 %v3024, 112
    %v3041 = vpop.permute.xlu0 %3040
    %3042 = vrot.lane.b32.xlu0 %v3025, 112
    %v3043 = vpop.permute.xlu0 %3042
    %3044 = vrot.lane.b32.xlu0 %v3026, 112
    %v3045 = vpop.permute.xlu0 %3044
    %3046 = vrot.lane.b32.xlu0 %v3027, 112
    %v3047 = vpop.permute.xlu0 %3046
    %3048 = vrot.lane.b32.xlu0 %v3028, 112
    %v3049 = vpop.permute.xlu0 %3048
    %3050 = vrot.lane.b32.xlu0 %v3029, 112
    %v3051 = vpop.permute.xlu0 %3050
    %3052 = vrot.lane.b32.xlu0 %v3030, 112
    %v3053 = vpop.permute.xlu0 %3052
    %3054 = vrot.lane.b32.xlu0 %v3031, 112
    %v3055 = vpop.permute.xlu0 %3054
    %v3064 = vmul.f32 %v2986, %v3041
    %v3065 = vmul.f32 %v2991, %v3043
    %v3066 = vmul.f32 %v2996, %v3045
    %v3067 = vmul.f32 %v3001, %v3047
    %v3068 = vmul.f32 %v3006, %v3049
    %v3069 = vmul.f32 %v3011, %v3051
    %v3070 = vmul.f32 %v3016, %v3053
    %v3071 = vmul.f32 %v3021, %v3055
    %s3072 = scalar_lea.vmem %s4, 16
    %v3073 = vld [vmem:[%s3072] sm:$0xff]
    %v3074 = vld [vmem:[%s3072 + $0x8] sm:$0xff]
    %v3075 = vlaneseq
    %v3076 = vshrl.u32 %v3075, 7
    %v3077 = vsub.s32 1, %v3076
    %v3078 = vrot.slane %v2157, %v3077
    %v3080 = vsel %vm272, %v3064, 0
    %v3083 = vsel %vm272, %v3065, 0
    %v3086 = vsel %vm272, %v3066, 0
    %v3089 = vsel %vm272, %v3067, 0
    %v3092 = vsel %vm272, %v3068, 0
    %v3095 = vsel %vm272, %v3069, 0
    %v3098 = vsel %vm272, %v3070, 0
    %v3101 = vsel %vm272, %v3071, 0
    %3103 = vmatprep.subr.mxu0 0.0
    %3104 = vmatpush1.msra.mxu0 %v3073
    %3105 = vmatprep.subr.mxu0 0.0
    %3106 = vmatpush1.msra.mxu0 %v3074
    %3107 = vmatprep.subr.mxu0 0.0
    %3108 = vmatpush1.msra.mxu0 0.0
    %3109 = vmatprep.subr.mxu0 0.0
    %3110 = vmatpush1.msra.mxu0 0.0
    %3111 = vmatprep.subr.mxu0 0.0
    %3112 = vmatpush1.msra.mxu0 0.0
    %3113 = vmatprep.subr.mxu0 0.0
    %3114 = vmatpush1.msra.mxu0 0.0
    %3115 = vmatprep.subr.mxu0 0.0
    %3116 = vmatpush1.msra.mxu0 0.0
    %3117 = vmatprep.subr.mxu0 0.0
    %3118 = vmatpush1.msra.mxu0 0.0
    %3119 = vmatprep.subr.mxu0 0.0
    %3120 = vmatpush1.msra.mxu0 0.0
    %3121 = vmatprep.subr.mxu0 0.0
    %3122 = vmatpush1.msra.mxu0 0.0
    %3123 = vmatprep.subr.mxu0 0.0
    %3124 = vmatpush1.msra.mxu0 0.0
    %3125 = vmatprep.subr.mxu0 0.0
    %3126 = vmatpush1.msra.mxu0 0.0
    %3127 = vmatprep.subr.mxu0 0.0
    %3128 = vmatpush1.msra.mxu0 0.0
    %3129 = vmatprep.subr.mxu0 0.0
    %3130 = vmatpush1.msra.mxu0 0.0
    %3131 = vmatprep.subr.mxu0 0.0
    %3132 = vmatpush1.msra.mxu0 0.0
    %3133 = vmatprep.subr.mxu0 0.0
    %3134 = vmatpush1.msra.mxu0 0.0
    %3135 = vmatprep.subr.mxu0 0.0
    %3136 = vmatpush1.msra.mxu0 0.0
    %3137 = vmatprep.subr.mxu0 0.0
    %3138 = vmatpush1.msra.mxu0 0.0
    %3139 = vmatprep.subr.mxu0 0.0
    %3140 = vmatpush1.msra.mxu0 0.0
    %3141 = vmatprep.subr.mxu0 0.0
    %3142 = vmatpush1.msra.mxu0 0.0
    %3143 = vmatprep.subr.mxu0 0.0
    %3144 = vmatpush1.msra.mxu0 0.0
    %3145 = vmatprep.subr.mxu0 0.0
    %3146 = vmatpush1.msra.mxu0 0.0
    %3147 = vmatprep.subr.mxu0 0.0
    %3148 = vmatpush1.msra.mxu0 0.0
    %3149 = vmatprep.subr.mxu0 0.0
    %3150 = vmatpush1.msra.mxu0 0.0
    %3151 = vmatprep.subr.mxu0 0.0
    %3152 = vmatpush1.msra.mxu0 0.0
    %3153 = vmatprep.subr.mxu0 0.0
    %3154 = vmatpush1.msra.mxu0 0.0
    %3155 = vmatprep.subr.mxu0 0.0
    %3156 = vmatpush1.msra.mxu0 0.0
    %3157 = vmatprep.subr.mxu0 0.0
    %3158 = vmatpush1.msra.mxu0 0.0
    %3159 = vmatprep.subr.mxu0 0.0
    %3160 = vmatpush1.msra.mxu0 0.0
    %3161 = vmatprep.subr.mxu0 0.0
    %3162 = vmatpush1.msra.mxu0 0.0
    %3163 = vmatprep.subr.mxu0 0.0
    %3164 = vmatpush1.msra.mxu0 0.0
    %3165 = vmatprep.subr.mxu0 0.0
    %3166 = vmatpush1.msra.mxu0 0.0
    %3167 = vmatprep.mubr.f32.mxu0 0.0
    %3168 = vmatmul.mubr.f32.gmra.mrb[0].mxu0 %v3080
    %v3169 = vpop.f32.mrb[0].mxu0
    %v3170 = vadd.f32 %v3078, %v3169
    %v3171 = vpop.f32.mrb[0].mxu0
    %3172 = vmatprep.mubr.f32.mxu0 0.0
    %3173 = vmatmul.mubr.f32.gmra.mrb[0].mxu0 %v3083
    %v3174 = vpop.f32.mrb[0].mxu0
    %v3175 = vadd.f32 %v3078, %v3174
    %v3176 = vpop.f32.mrb[0].mxu0
    %3177 = vmatprep.mubr.f32.mxu0 0.0
    %3178 = vmatmul.mubr.f32.gmra.mrb[0].mxu0 %v3086
    %v3179 = vpop.f32.mrb[0].mxu0
    %v3180 = vadd.f32 %v3078, %v3179
    %v3181 = vpop.f32.mrb[0].mxu0
    %3182 = vmatprep.mubr.f32.mxu0 0.0
    %3183 = vmatmul.mubr.f32.gmra.mrb[0].mxu0 %v3089
    %v3184 = vpop.f32.mrb[0].mxu0
    %v3185 = vadd.f32 %v3078, %v3184
    %v3186 = vpop.f32.mrb[0].mxu0
    %3187 = vmatprep.mubr.f32.mxu0 0.0
    %3188 = vmatmul.mubr.f32.gmra.mrb[0].mxu0 %v3092
    %v3189 = vpop.f32.mrb[0].mxu0
    %v3190 = vadd.f32 %v3078, %v3189
    %v3191 = vpop.f32.mrb[0].mxu0
    %3192 = vmatprep.mubr.f32.mxu0 0.0
    %3193 = vmatmul.mubr.f32.gmra.mrb[0].mxu0 %v3095
    %v3194 = vpop.f32.mrb[0].mxu0
    %v3195 = vadd.f32 %v3078, %v3194
    %v3196 = vpop.f32.mrb[0].mxu0
    %3197 = vmatprep.mubr.f32.mxu0 0.0
    %3198 = vmatmul.mubr.f32.gmra.mrb[0].mxu0 %v3098
    %v3199 = vpop.f32.mrb[0].mxu0
    %v3200 = vadd.f32 %v3078, %v3199
    %v3201 = vpop.f32.mrb[0].mxu0
    %3202 = vmatprep.mubr.f32.mxu0 0.0
    %3203 = vmatmul.mubr.f32.gmra.mrb[0].mxu0 %v3101
    %v3204 = vpop.f32.mrb[0].mxu0
    %v3205 = vadd.f32 %v3078, %v3204
    %v3206 = vpop.f32.mrb[0].mxu0
    %3207 = vdwg.mxu0
    %v3208 = vadd.f32 %v2148, %v3170
    %v3209 = vadd.f32 %v2149, %v3175
    %v3210 = vadd.f32 %v2150, %v3180
    %v3211 = vadd.f32 %v2151, %v3185
    %v3212 = vadd.f32 %v2152, %v3190
    %v3213 = vadd.f32 %v2153, %v3195
    %v3214 = vadd.f32 %v2154, %v3200
    %v3215 = vadd.f32 %v2155, %v3205
    %v3216 = vsel %vm272, %v3208, 0.0
    %3217 = vadd.xlane.f32.xlu0 %v3216
    %v3218 = vpop.xlane.xlu0 %3217
    %v3219 = vsel %vm272, %v3209, 0.0
    %3220 = vadd.xlane.f32.xlu0 %v3219
    %v3221 = vpop.xlane.xlu0 %3220
    %v3222 = vsel %vm272, %v3210, 0.0
    %3223 = vadd.xlane.f32.xlu0 %v3222
    %v3224 = vpop.xlane.xlu0 %3223
    %v3225 = vsel %vm272, %v3211, 0.0
    %3226 = vadd.xlane.f32.xlu0 %v3225
    %v3227 = vpop.xlane.xlu0 %3226
    %v3228 = vsel %vm272, %v3212, 0.0
    %3229 = vadd.xlane.f32.xlu0 %v3228
    %v3230 = vpop.xlane.xlu0 %3229
    %v3231 = vsel %vm272, %v3213, 0.0
    %3232 = vadd.xlane.f32.xlu0 %v3231
    %v3233 = vpop.xlane.xlu0 %3232
    %v3234 = vsel %vm272, %v3214, 0.0
    %3235 = vadd.xlane.f32.xlu0 %v3234
    %v3236 = vpop.xlane.xlu0 %3235
    %v3237 = vsel %vm272, %v3215, 0.0
    %3238 = vadd.xlane.f32.xlu0 %v3237
    %v3239 = vpop.xlane.xlu0 %3238
    %v3240 = vmul.f32 %v3218, %v1571
    %v3241 = vmul.f32 %v3221, %v1571
    %v3242 = vmul.f32 %v3224, %v1571
    %v3243 = vmul.f32 %v3227, %v1571
    %v3244 = vmul.f32 %v3230, %v1571
    %v3245 = vmul.f32 %v3233, %v1571
    %v3246 = vmul.f32 %v3236, %v1571
    %v3247 = vmul.f32 %v3239, %v1571
    %v3248 = vsub.f32 %v3208, %v3240
    %v3249 = vsub.f32 %v3209, %v3241
    %v3250 = vsub.f32 %v3210, %v3242
    %v3251 = vsub.f32 %v3211, %v3243
    %v3252 = vsub.f32 %v3212, %v3244
    %v3253 = vsub.f32 %v3213, %v3245
    %v3254 = vsub.f32 %v3214, %v3246
    %v3255 = vsub.f32 %v3215, %v3247
    %v3256 = vmul.f32 %v3248, %v3248
    %v3257 = vmul.f32 %v3249, %v3249
    %v3258 = vmul.f32 %v3250, %v3250
    %v3259 = vmul.f32 %v3251, %v3251
    %v3260 = vmul.f32 %v3252, %v3252
    %v3261 = vmul.f32 %v3253, %v3253
    %v3262 = vmul.f32 %v3254, %v3254
    %v3263 = vmul.f32 %v3255, %v3255
    %v3264 = vsel %vm272, %v3256, 0.0
    %3265 = vadd.xlane.f32.xlu0 %v3264
    %v3266 = vpop.xlane.xlu0 %3265
    %v3267 = vsel %vm272, %v3257, 0.0
    %3268 = vadd.xlane.f32.xlu0 %v3267
    %v3269 = vpop.xlane.xlu0 %3268
    %v3270 = vsel %vm272, %v3258, 0.0
    %3271 = vadd.xlane.f32.xlu0 %v3270
    %v3272 = vpop.xlane.xlu0 %3271
    %v3273 = vsel %vm272, %v3259, 0.0
    %3274 = vadd.xlane.f32.xlu0 %v3273
    %v3275 = vpop.xlane.xlu0 %3274
    %v3276 = vsel %vm272, %v3260, 0.0
    %3277 = vadd.xlane.f32.xlu0 %v3276
    %v3278 = vpop.xlane.xlu0 %3277
    %v3279 = vsel %vm272, %v3261, 0.0
    %3280 = vadd.xlane.f32.xlu0 %v3279
    %v3281 = vpop.xlane.xlu0 %3280
    %v3282 = vsel %vm272, %v3262, 0.0
    %3283 = vadd.xlane.f32.xlu0 %v3282
    %v3284 = vpop.xlane.xlu0 %3283
    %v3285 = vsel %vm272, %v3263, 0.0
    %3286 = vadd.xlane.f32.xlu0 %v3285
    %v3287 = vpop.xlane.xlu0 %3286
    %v3288 = vmul.f32 %v3266, %v1571
    %v3289 = vmul.f32 %v3269, %v1571
    %v3290 = vmul.f32 %v3272, %v1571
    %v3291 = vmul.f32 %v3275, %v1571
    %v3292 = vmul.f32 %v3278, %v1571
    %v3293 = vmul.f32 %v3281, %v1571
    %v3294 = vmul.f32 %v3284, %v1571
    %v3295 = vmul.f32 %v3287, %v1571
    %v3296 = vadd.f32 %v3288, 1e-05
    %v3297 = vadd.f32 %v3289, 1e-05
    %v3298 = vadd.f32 %v3290, 1e-05
    %v3299 = vadd.f32 %v3291, 1e-05
    %v3300 = vadd.f32 %v3292, 1e-05
    %v3301 = vadd.f32 %v3293, 1e-05
    %v3302 = vadd.f32 %v3294, 1e-05
    %v3303 = vadd.f32 %v3295, 1e-05
    %v3304 = vrsqrt.pop %v3296
    %v3305 = vrsqrt.pop %v3297
    %v3306 = vrsqrt.pop %v3298
    %v3307 = vrsqrt.pop %v3299
    %v3308 = vrsqrt.pop %v3300
    %v3309 = vrsqrt.pop %v3301
    %v3310 = vrsqrt.pop %v3302
    %v3311 = vrsqrt.pop %v3303
    %v3312 = vmul.f32 %v3248, %v3304
    %v3313 = vmul.f32 %v3249, %v3305
    %v3314 = vmul.f32 %v3250, %v3306
    %v3315 = vmul.f32 %v3251, %v3307
    %v3316 = vmul.f32 %v3252, %v3308
    %v3317 = vmul.f32 %v3253, %v3309
    %v3318 = vmul.f32 %v3254, %v3310
    %v3319 = vmul.f32 %v3255, %v3311
    %v3320 = vlaneseq
    %v3321 = vshrl.u32 %v3320, 7
    %v3322 = vsub.s32 2, %v3321
    %v3323 = vrot.slane %v2157, %v3322
    %v3324 = vmul.f32 %v3312, %v3323
    %v3325 = vmul.f32 %v3313, %v3323
    %v3326 = vmul.f32 %v3314, %v3323
    %v3327 = vmul.f32 %v3315, %v3323
    %v3328 = vmul.f32 %v3316, %v3323
    %v3329 = vmul.f32 %v3317, %v3323
    %v3330 = vmul.f32 %v3318, %v3323
    %v3331 = vmul.f32 %v3319, %v3323
    %v3332 = vlaneseq
    %v3333 = vshrl.u32 %v3332, 7
    %v3334 = vsub.s32 3, %v3333
    %v3335 = vrot.slane %v2157, %v3334
    %v3336 = vadd.f32 %v3324, %v3335
    %v3337 = vadd.f32 %v3325, %v3335
    %v3338 = vadd.f32 %v3326, %v3335
    %v3339 = vadd.f32 %v3327, %v3335
    %v3340 = vadd.f32 %v3328, %v3335
    %v3341 = vadd.f32 %v3329, %v3335
    %v3342 = vadd.f32 %v3330, %v3335
    %v3343 = vadd.f32 %v3331, %v3335
    %s3344 = scalar_lea.vmem %s5, 16
    %v3345 = vld [vmem:[%s3344] sm:$0xff]
    %v3346 = vld [vmem:[%s3344 + $0x8] sm:$0xff]
    %v3347 = vlaneseq
    %v3348 = vshrl.u32 %v3347, 7
    %v3349 = vsub.s32 4, %v3348
    %v3350 = vrot.slane %v2157, %v3349
    %v3352 = vsel %vm272, %v3336, 0
    %v3355 = vsel %vm272, %v3337, 0
    %v3358 = vsel %vm272, %v3338, 0
    %v3361 = vsel %vm272, %v3339, 0
    %v3364 = vsel %vm272, %v3340, 0
    %v3367 = vsel %vm272, %v3341, 0
    %v3370 = vsel %vm272, %v3342, 0
    %v3373 = vsel %vm272, %v3343, 0
    %3375 = vmatprep.subr.mxu0 0.0
    %3376 = vmatpush1.msra.mxu0 %v3345
    %3377 = vmatprep.subr.mxu0 0.0
    %3378 = vmatpush1.msra.mxu0 %v3346
    %3379 = vmatprep.subr.mxu0 0.0
    %3380 = vmatpush1.msra.mxu0 0.0
    %3381 = vmatprep.subr.mxu0 0.0
    %3382 = vmatpush1.msra.mxu0 0.0
    %3383 = vmatprep.subr.mxu0 0.0
    %3384 = vmatpush1.msra.mxu0 0.0
    %3385 = vmatprep.subr.mxu0 0.0
    %3386 = vmatpush1.msra.mxu0 0.0
    %3387 = vmatprep.subr.mxu0 0.0
    %3388 = vmatpush1.msra.mxu0 0.0
    %3389 = vmatprep.subr.mxu0 0.0
    %3390 = vmatpush1.msra.mxu0 0.0
    %3391 = vmatprep.subr.mxu0 0.0
    %3392 = vmatpush1.msra.mxu0 0.0
    %3393 = vmatprep.subr.mxu0 0.0
    %3394 = vmatpush1.msra.mxu0 0.0
    %3395 = vmatprep.subr.mxu0 0.0
    %3396 = vmatpush1.msra.mxu0 0.0
    %3397 = vmatprep.subr.mxu0 0.0
    %3398 = vmatpush1.msra.mxu0 0.0
    %3399 = vmatprep.subr.mxu0 0.0
    %3400 = vmatpush1.msra.mxu0 0.0
    %3401 = vmatprep.subr.mxu0 0.0
    %3402 = vmatpush1.msra.mxu0 0.0
    %3403 = vmatprep.subr.mxu0 0.0
    %3404 = vmatpush1.msra.mxu0 0.0
    %3405 = vmatprep.subr.mxu0 0.0
    %3406 = vmatpush1.msra.mxu0 0.0
    %3407 = vmatprep.subr.mxu0 0.0
    %3408 = vmatpush1.msra.mxu0 0.0
    %3409 = vmatprep.subr.mxu0 0.0
    %3410 = vmatpush1.msra.mxu0 0.0
    %3411 = vmatprep.subr.mxu0 0.0
    %3412 = vmatpush1.msra.mxu0 0.0
    %3413 = vmatprep.subr.mxu0 0.0
    %3414 = vmatpush1.msra.mxu0 0.0
    %3415 = vmatprep.subr.mxu0 0.0
    %3416 = vmatpush1.msra.mxu0 0.0
    %3417 = vmatprep.subr.mxu0 0.0
    %3418 = vmatpush1.msra.mxu0 0.0
    %3419 = vmatprep.subr.mxu0 0.0
    %3420 = vmatpush1.msra.mxu0 0.0
    %3421 = vmatprep.subr.mxu0 0.0
    %3422 = vmatpush1.msra.mxu0 0.0
    %3423 = vmatprep.subr.mxu0 0.0
    %3424 = vmatpush1.msra.mxu0 0.0
    %3425 = vmatprep.subr.mxu0 0.0
    %3426 = vmatpush1.msra.mxu0 0.0
    %3427 = vmatprep.subr.mxu0 0.0
    %3428 = vmatpush1.msra.mxu0 0.0
    %3429 = vmatprep.subr.mxu0 0.0
    %3430 = vmatpush1.msra.mxu0 0.0
    %3431 = vmatprep.subr.mxu0 0.0
    %3432 = vmatpush1.msra.mxu0 0.0
    %3433 = vmatprep.subr.mxu0 0.0
    %3434 = vmatpush1.msra.mxu0 0.0
    %3435 = vmatprep.subr.mxu0 0.0
    %3436 = vmatpush1.msra.mxu0 0.0
    %3437 = vmatprep.subr.mxu0 0.0
    %3438 = vmatpush1.msra.mxu0 0.0
    %3439 = vmatprep.mubr.f32.mxu0 0.0
    %3440 = vmatmul.mubr.f32.gmra.mrb[0].mxu0 %v3352
    %v3441 = vpop.f32.mrb[0].mxu0
    %v3442 = vadd.f32 %v3350, %v3441
    %v3443 = vpop.f32.mrb[0].mxu0
    %3444 = vmatprep.mubr.f32.mxu0 0.0
    %3445 = vmatmul.mubr.f32.gmra.mrb[0].mxu0 %v3355
    %v3446 = vpop.f32.mrb[0].mxu0
    %v3447 = vadd.f32 %v3350, %v3446
    %v3448 = vpop.f32.mrb[0].mxu0
    %3449 = vmatprep.mubr.f32.mxu0 0.0
    %3450 = vmatmul.mubr.f32.gmra.mrb[0].mxu0 %v3358
    %v3451 = vpop.f32.mrb[0].mxu0
    %v3452 = vadd.f32 %v3350, %v3451
    %v3453 = vpop.f32.mrb[0].mxu0
    %3454 = vmatprep.mubr.f32.mxu0 0.0
    %3455 = vmatmul.mubr.f32.gmra.mrb[0].mxu0 %v3361
    %v3456 = vpop.f32.mrb[0].mxu0
    %v3457 = vadd.f32 %v3350, %v3456
    %v3458 = vpop.f32.mrb[0].mxu0
    %3459 = vmatprep.mubr.f32.mxu0 0.0
    %3460 = vmatmul.mubr.f32.gmra.mrb[0].mxu0 %v3364
    %v3461 = vpop.f32.mrb[0].mxu0
    %v3462 = vadd.f32 %v3350, %v3461
    %v3463 = vpop.f32.mrb[0].mxu0
    %3464 = vmatprep.mubr.f32.mxu0 0.0
    %3465 = vmatmul.mubr.f32.gmra.mrb[0].mxu0 %v3367
    %v3466 = vpop.f32.mrb[0].mxu0
    %v3467 = vadd.f32 %v3350, %v3466
    %v3468 = vpop.f32.mrb[0].mxu0
    %3469 = vmatprep.mubr.f32.mxu0 0.0
    %3470 = vmatmul.mubr.f32.gmra.mrb[0].mxu0 %v3370
    %v3471 = vpop.f32.mrb[0].mxu0
    %v3472 = vadd.f32 %v3350, %v3471
    %v3473 = vpop.f32.mrb[0].mxu0
    %3474 = vmatprep.mubr.f32.mxu0 0.0
    %3475 = vmatmul.mubr.f32.gmra.mrb[0].mxu0 %v3373
    %v3476 = vpop.f32.mrb[0].mxu0
    %v3477 = vadd.f32 %v3350, %v3476
    %v3478 = vpop.f32.mrb[0].mxu0
    %3479 = vdwg.mxu0
    %v3480 = vmul.f32 %v3442, %v3442
    %v3481 = vmul.f32 %v3447, %v3447
    %v3482 = vmul.f32 %v3452, %v3452
    %v3483 = vmul.f32 %v3457, %v3457
    %v3484 = vmul.f32 %v3462, %v3462
    %v3485 = vmul.f32 %v3467, %v3467
    %v3486 = vmul.f32 %v3472, %v3472
    %v3487 = vmul.f32 %v3477, %v3477
    %v3488 = vmul.f32 %v3442, %v3480
    %v3489 = vmul.f32 %v3447, %v3481
    %v3490 = vmul.f32 %v3452, %v3482
    %v3491 = vmul.f32 %v3457, %v3483
    %v3492 = vmul.f32 %v3462, %v3484
    %v3493 = vmul.f32 %v3467, %v3485
    %v3494 = vmul.f32 %v3472, %v3486
    %v3495 = vmul.f32 %v3477, %v3487
    %v3496 = vmul.f32 %v3488, 0.044715
    %v3497 = vmul.f32 %v3489, 0.044715
    %v3498 = vmul.f32 %v3490, 0.044715
    %v3499 = vmul.f32 %v3491, 0.044715
    %v3500 = vmul.f32 %v3492, 0.044715
    %v3501 = vmul.f32 %v3493, 0.044715
    %v3502 = vmul.f32 %v3494, 0.044715
    %v3503 = vmul.f32 %v3495, 0.044715
    %v3504 = vadd.f32 %v3442, %v3496
    %v3505 = vadd.f32 %v3447, %v3497
    %v3506 = vadd.f32 %v3452, %v3498
    %v3507 = vadd.f32 %v3457, %v3499
    %v3508 = vadd.f32 %v3462, %v3500
    %v3509 = vadd.f32 %v3467, %v3501
    %v3510 = vadd.f32 %v3472, %v3502
    %v3511 = vadd.f32 %v3477, %v3503
    %v3512 = vmul.f32 %v3504, 0.7978846
    %v3513 = vmul.f32 %v3505, 0.7978846
    %v3514 = vmul.f32 %v3506, 0.7978846
    %v3515 = vmul.f32 %v3507, 0.7978846
    %v3516 = vmul.f32 %v3508, 0.7978846
    %v3517 = vmul.f32 %v3509, 0.7978846
    %v3518 = vmul.f32 %v3510, 0.7978846
    %v3519 = vmul.f32 %v3511, 0.7978846
    %v3520 = vtanh.pop %v3512
    %v3521 = vtanh.pop %v3513
    %v3522 = vtanh.pop %v3514
    %v3523 = vtanh.pop %v3515
    %v3524 = vtanh.pop %v3516
    %v3525 = vtanh.pop %v3517
    %v3526 = vtanh.pop %v3518
    %v3527 = vtanh.pop %v3519
    %v3528 = vadd.f32 %v3520, 1.0
    %v3529 = vadd.f32 %v3521, 1.0
    %v3530 = vadd.f32 %v3522, 1.0
    %v3531 = vadd.f32 %v3523, 1.0
    %v3532 = vadd.f32 %v3524, 1.0
    %v3533 = vadd.f32 %v3525, 1.0
    %v3534 = vadd.f32 %v3526, 1.0
    %v3535 = vadd.f32 %v3527, 1.0
    %v3536 = vmul.f32 %v3528, 0.5
    %v3537 = vmul.f32 %v3529, 0.5
    %v3538 = vmul.f32 %v3530, 0.5
    %v3539 = vmul.f32 %v3531, 0.5
    %v3540 = vmul.f32 %v3532, 0.5
    %v3541 = vmul.f32 %v3533, 0.5
    %v3542 = vmul.f32 %v3534, 0.5
    %v3543 = vmul.f32 %v3535, 0.5
    %v3544 = vmul.f32 %v3442, %v3536
    %v3545 = vmul.f32 %v3447, %v3537
    %v3546 = vmul.f32 %v3452, %v3538
    %v3547 = vmul.f32 %v3457, %v3539
    %v3548 = vmul.f32 %v3462, %v3540
    %v3549 = vmul.f32 %v3467, %v3541
    %v3550 = vmul.f32 %v3472, %v3542
    %v3551 = vmul.f32 %v3477, %v3543
    %s3552 = scalar_lea.vmem %s6, 32
    %v3553 = vld [vmem:[%s3552] sm:$0xff]
    %v3554 = vld [vmem:[%s3552 + $0x8] sm:$0xff]
    %v3555 = vld [vmem:[%s3552 + $0x10] sm:$0xff]
    %v3556 = vld [vmem:[%s3552 + $0x18] sm:$0xff]
    %v3557 = vlaneseq
    %v3558 = vshrl.u32 %v3557, 7
    %v3559 = vsub.s32 5, %v3558
    %v3560 = vrot.slane %v2157, %v3559
    %v3562 = vsel %vm43, %v3544, 0
    %v3565 = vsel %vm43, %v3545, 0
    %v3568 = vsel %vm43, %v3546, 0
    %v3571 = vsel %vm43, %v3547, 0
    %v3574 = vsel %vm43, %v3548, 0
    %v3577 = vsel %vm43, %v3549, 0
    %v3580 = vsel %vm43, %v3550, 0
    %v3583 = vsel %vm43, %v3551, 0
    %3585 = vmatprep.subr.mxu0 0.0
    %3586 = vmatpush1.msra.mxu0 %v3553
    %3587 = vmatprep.subr.mxu0 0.0
    %3588 = vmatpush1.msra.mxu0 %v3554
    %3589 = vmatprep.subr.mxu0 0.0
    %3590 = vmatpush1.msra.mxu0 %v3555
    %3591 = vmatprep.subr.mxu0 0.0
    %3592 = vmatpush1.msra.mxu0 %v3556
    %3593 = vmatprep.subr.mxu0 0.0
    %3594 = vmatpush1.msra.mxu0 0.0
    %3595 = vmatprep.subr.mxu0 0.0
    %3596 = vmatpush1.msra.mxu0 0.0
    %3597 = vmatprep.subr.mxu0 0.0
    %3598 = vmatpush1.msra.mxu0 0.0
    %3599 = vmatprep.subr.mxu0 0.0
    %3600 = vmatpush1.msra.mxu0 0.0
    %3601 = vmatprep.subr.mxu0 0.0
    %3602 = vmatpush1.msra.mxu0 0.0
    %3603 = vmatprep.subr.mxu0 0.0
    %3604 = vmatpush1.msra.mxu0 0.0
    %3605 = vmatprep.subr.mxu0 0.0
    %3606 = vmatpush1.msra.mxu0 0.0
    %3607 = vmatprep.subr.mxu0 0.0
    %3608 = vmatpush1.msra.mxu0 0.0
    %3609 = vmatprep.subr.mxu0 0.0
    %3610 = vmatpush1.msra.mxu0 0.0
    %3611 = vmatprep.subr.mxu0 0.0
    %3612 = vmatpush1.msra.mxu0 0.0
    %3613 = vmatprep.subr.mxu0 0.0
    %3614 = vmatpush1.msra.mxu0 0.0
    %3615 = vmatprep.subr.mxu0 0.0
    %3616 = vmatpush1.msra.mxu0 0.0
    %3617 = vmatprep.subr.mxu0 0.0
    %3618 = vmatpush1.msra.mxu0 0.0
    %3619 = vmatprep.subr.mxu0 0.0
    %3620 = vmatpush1.msra.mxu0 0.0
    %3621 = vmatprep.subr.mxu0 0.0
    %3622 = vmatpush1.msra.mxu0 0.0
    %3623 = vmatprep.subr.mxu0 0.0
    %3624 = vmatpush1.msra.mxu0 0.0
    %3625 = vmatprep.subr.mxu0 0.0
    %3626 = vmatpush1.msra.mxu0 0.0
    %3627 = vmatprep.subr.mxu0 0.0
    %3628 = vmatpush1.msra.mxu0 0.0
    %3629 = vmatprep.subr.mxu0 0.0
    %3630 = vmatpush1.msra.mxu0 0.0
    %3631 = vmatprep.subr.mxu0 0.0
    %3632 = vmatpush1.msra.mxu0 0.0
    %3633 = vmatprep.subr.mxu0 0.0
    %3634 = vmatpush1.msra.mxu0 0.0
    %3635 = vmatprep.subr.mxu0 0.0
    %3636 = vmatpush1.msra.mxu0 0.0
    %3637 = vmatprep.subr.mxu0 0.0
    %3638 = vmatpush1.msra.mxu0 0.0
    %3639 = vmatprep.subr.mxu0 0.0
    %3640 = vmatpush1.msra.mxu0 0.0
    %3641 = vmatprep.subr.mxu0 0.0
    %3642 = vmatpush1.msra.mxu0 0.0
    %3643 = vmatprep.subr.mxu0 0.0
    %3644 = vmatpush1.msra.mxu0 0.0
    %3645 = vmatprep.subr.mxu0 0.0
    %3646 = vmatpush1.msra.mxu0 0.0
    %3647 = vmatprep.subr.mxu0 0.0
    %3648 = vmatpush1.msra.mxu0 0.0
    %3649 = vmatprep.mubr.f32.mxu0 0.0
    %3650 = vmatmul.mubr.f32.gmra.mrb[0].mxu0 %v3562
    %v3651 = vpop.f32.mrb[0].mxu0
    %v3652 = vadd.f32 %v3560, %v3651
    %v3653 = vpop.f32.mrb[0].mxu0
    %3654 = vmatprep.mubr.f32.mxu0 0.0
    %3655 = vmatmul.mubr.f32.gmra.mrb[0].mxu0 %v3565
    %v3656 = vpop.f32.mrb[0].mxu0
    %v3657 = vadd.f32 %v3560, %v3656
    %v3658 = vpop.f32.mrb[0].mxu0
    %3659 = vmatprep.mubr.f32.mxu0 0.0
    %3660 = vmatmul.mubr.f32.gmra.mrb[0].mxu0 %v3568
    %v3661 = vpop.f32.mrb[0].mxu0
    %v3662 = vadd.f32 %v3560, %v3661
    %v3663 = vpop.f32.mrb[0].mxu0
    %3664 = vmatprep.mubr.f32.mxu0 0.0
    %3665 = vmatmul.mubr.f32.gmra.mrb[0].mxu0 %v3571
    %v3666 = vpop.f32.mrb[0].mxu0
    %v3667 = vadd.f32 %v3560, %v3666
    %v3668 = vpop.f32.mrb[0].mxu0
    %3669 = vmatprep.mubr.f32.mxu0 0.0
    %3670 = vmatmul.mubr.f32.gmra.mrb[0].mxu0 %v3574
    %v3671 = vpop.f32.mrb[0].mxu0
    %v3672 = vadd.f32 %v3560, %v3671
    %v3673 = vpop.f32.mrb[0].mxu0
    %3674 = vmatprep.mubr.f32.mxu0 0.0
    %3675 = vmatmul.mubr.f32.gmra.mrb[0].mxu0 %v3577
    %v3676 = vpop.f32.mrb[0].mxu0
    %v3677 = vadd.f32 %v3560, %v3676
    %v3678 = vpop.f32.mrb[0].mxu0
    %3679 = vmatprep.mubr.f32.mxu0 0.0
    %3680 = vmatmul.mubr.f32.gmra.mrb[0].mxu0 %v3580
    %v3681 = vpop.f32.mrb[0].mxu0
    %v3682 = vadd.f32 %v3560, %v3681
    %v3683 = vpop.f32.mrb[0].mxu0
    %3684 = vmatprep.mubr.f32.mxu0 0.0
    %3685 = vmatmul.mubr.f32.gmra.mrb[0].mxu0 %v3583
    %v3686 = vpop.f32.mrb[0].mxu0
    %v3687 = vadd.f32 %v3560, %v3686
    %v3688 = vpop.f32.mrb[0].mxu0
    %3689 = vdwg.mxu0
    %v3690 = vadd.f32 %v3336, %v3652
    %v3691 = vadd.f32 %v3337, %v3657
    %v3692 = vadd.f32 %v3338, %v3662
    %v3693 = vadd.f32 %v3339, %v3667
    %v3694 = vadd.f32 %v3340, %v3672
    %v3695 = vadd.f32 %v3341, %v3677
    %v3696 = vadd.f32 %v3342, %v3682
    %v3697 = vadd.f32 %v3343, %v3687
    %v3698 = vsel %vm272, %v3690, 0.0
    %3699 = vadd.xlane.f32.xlu0 %v3698
    %v3700 = vpop.xlane.xlu0 %3699
    %v3701 = vsel %vm272, %v3691, 0.0
    %3702 = vadd.xlane.f32.xlu0 %v3701
    %v3703 = vpop.xlane.xlu0 %3702
    %v3704 = vsel %vm272, %v3692, 0.0
    %3705 = vadd.xlane.f32.xlu0 %v3704
    %v3706 = vpop.xlane.xlu0 %3705
    %v3707 = vsel %vm272, %v3693, 0.0
    %3708 = vadd.xlane.f32.xlu0 %v3707
    %v3709 = vpop.xlane.xlu0 %3708
    %v3710 = vsel %vm272, %v3694, 0.0
    %3711 = vadd.xlane.f32.xlu0 %v3710
    %v3712 = vpop.xlane.xlu0 %3711
    %v3713 = vsel %vm272, %v3695, 0.0
    %3714 = vadd.xlane.f32.xlu0 %v3713
    %v3715 = vpop.xlane.xlu0 %3714
    %v3716 = vsel %vm272, %v3696, 0.0
    %3717 = vadd.xlane.f32.xlu0 %v3716
    %v3718 = vpop.xlane.xlu0 %3717
    %v3719 = vsel %vm272, %v3697, 0.0
    %3720 = vadd.xlane.f32.xlu0 %v3719
    %v3721 = vpop.xlane.xlu0 %3720
    %v3722 = vmul.f32 %v3700, %v1571
    %v3723 = vmul.f32 %v3703, %v1571
    %v3724 = vmul.f32 %v3706, %v1571
    %v3725 = vmul.f32 %v3709, %v1571
    %v3726 = vmul.f32 %v3712, %v1571
    %v3727 = vmul.f32 %v3715, %v1571
    %v3728 = vmul.f32 %v3718, %v1571
    %v3729 = vmul.f32 %v3721, %v1571
    %v3730 = vsub.f32 %v3690, %v3722
    %v3731 = vsub.f32 %v3691, %v3723
    %v3732 = vsub.f32 %v3692, %v3724
    %v3733 = vsub.f32 %v3693, %v3725
    %v3734 = vsub.f32 %v3694, %v3726
    %v3735 = vsub.f32 %v3695, %v3727
    %v3736 = vsub.f32 %v3696, %v3728
    %v3737 = vsub.f32 %v3697, %v3729
    %v3738 = vmul.f32 %v3730, %v3730
    %v3739 = vmul.f32 %v3731, %v3731
    %v3740 = vmul.f32 %v3732, %v3732
    %v3741 = vmul.f32 %v3733, %v3733
    %v3742 = vmul.f32 %v3734, %v3734
    %v3743 = vmul.f32 %v3735, %v3735
    %v3744 = vmul.f32 %v3736, %v3736
    %v3745 = vmul.f32 %v3737, %v3737
    %v3746 = vsel %vm272, %v3738, 0.0
    %3747 = vadd.xlane.f32.xlu0 %v3746
    %v3748 = vpop.xlane.xlu0 %3747
    %v3749 = vsel %vm272, %v3739, 0.0
    %3750 = vadd.xlane.f32.xlu0 %v3749
    %v3751 = vpop.xlane.xlu0 %3750
    %v3752 = vsel %vm272, %v3740, 0.0
    %3753 = vadd.xlane.f32.xlu0 %v3752
    %v3754 = vpop.xlane.xlu0 %3753
    %v3755 = vsel %vm272, %v3741, 0.0
    %3756 = vadd.xlane.f32.xlu0 %v3755
    %v3757 = vpop.xlane.xlu0 %3756
    %v3758 = vsel %vm272, %v3742, 0.0
    %3759 = vadd.xlane.f32.xlu0 %v3758
    %v3760 = vpop.xlane.xlu0 %3759
    %v3761 = vsel %vm272, %v3743, 0.0
    %3762 = vadd.xlane.f32.xlu0 %v3761
    %v3763 = vpop.xlane.xlu0 %3762
    %v3764 = vsel %vm272, %v3744, 0.0
    %3765 = vadd.xlane.f32.xlu0 %v3764
    %v3766 = vpop.xlane.xlu0 %3765
    %v3767 = vsel %vm272, %v3745, 0.0
    %3768 = vadd.xlane.f32.xlu0 %v3767
    %v3769 = vpop.xlane.xlu0 %3768
    %v3770 = vmul.f32 %v3748, %v1571
    %v3771 = vmul.f32 %v3751, %v1571
    %v3772 = vmul.f32 %v3754, %v1571
    %v3773 = vmul.f32 %v3757, %v1571
    %v3774 = vmul.f32 %v3760, %v1571
    %v3775 = vmul.f32 %v3763, %v1571
    %v3776 = vmul.f32 %v3766, %v1571
    %v3777 = vmul.f32 %v3769, %v1571
    %v3778 = vadd.f32 %v3770, 1e-05
    %v3779 = vadd.f32 %v3771, 1e-05
    %v3780 = vadd.f32 %v3772, 1e-05
    %v3781 = vadd.f32 %v3773, 1e-05
    %v3782 = vadd.f32 %v3774, 1e-05
    %v3783 = vadd.f32 %v3775, 1e-05
    %v3784 = vadd.f32 %v3776, 1e-05
    %v3785 = vadd.f32 %v3777, 1e-05
    %v3786 = vrsqrt.pop %v3778
    %v3787 = vrsqrt.pop %v3779
    %v3788 = vrsqrt.pop %v3780
    %v3789 = vrsqrt.pop %v3781
    %v3790 = vrsqrt.pop %v3782
    %v3791 = vrsqrt.pop %v3783
    %v3792 = vrsqrt.pop %v3784
    %v3793 = vrsqrt.pop %v3785
    %v3794 = vmul.f32 %v3730, %v3786
    %v3795 = vmul.f32 %v3731, %v3787
    %v3796 = vmul.f32 %v3732, %v3788
    %v3797 = vmul.f32 %v3733, %v3789
    %v3798 = vmul.f32 %v3734, %v3790
    %v3799 = vmul.f32 %v3735, %v3791
    %v3800 = vmul.f32 %v3736, %v3792
    %v3801 = vmul.f32 %v3737, %v3793
    %v3802 = vlaneseq
    %v3803 = vshrl.u32 %v3802, 7
    %v3804 = vsub.s32 6, %v3803
    %v3805 = vrot.slane %v2157, %v3804
    %v3806 = vmul.f32 %v3794, %v3805
    %v3807 = vmul.f32 %v3795, %v3805
    %v3808 = vmul.f32 %v3796, %v3805
    %v3809 = vmul.f32 %v3797, %v3805
    %v3810 = vmul.f32 %v3798, %v3805
    %v3811 = vmul.f32 %v3799, %v3805
    %v3812 = vmul.f32 %v3800, %v3805
    %v3813 = vmul.f32 %v3801, %v3805
    %v3814 = vlaneseq
    %v3815 = vshrl.u32 %v3814, 7
    %v3816 = vsub.s32 7, %v3815
    %v3817 = vrot.slane %v2157, %v3816
    %v3818 = vadd.f32 %v3806, %v3817
    %v3819 = vadd.f32 %v3807, %v3817
    %v3820 = vadd.f32 %v3808, %v3817
    %v3821 = vadd.f32 %v3809, %v3817
    %v3822 = vadd.f32 %v3810, %v3817
    %v3823 = vadd.f32 %v3811, %v3817
    %v3824 = vadd.f32 %v3812, %v3817
    %v3825 = vadd.f32 %v3813, %v3817
    %3827 = vrot.lane.b32.xlu0 %v3819, 16
    %v3828 = vpop.permute.xlu0 %3827
    %3831 = vrot.lane.b32.xlu0 %v3820, 32
    %v3832 = vpop.permute.xlu0 %3831
    %3835 = vrot.lane.b32.xlu0 %v3821, 48
    %v3836 = vpop.permute.xlu0 %3835
    %3839 = vrot.lane.b32.xlu0 %v3822, 64
    %v3840 = vpop.permute.xlu0 %3839
    %3843 = vrot.lane.b32.xlu0 %v3823, 80
    %v3844 = vpop.permute.xlu0 %3843
    %3847 = vrot.lane.b32.xlu0 %v3824, 96
    %v3848 = vpop.permute.xlu0 %3847
    %3851 = vrot.lane.b32.xlu0 %v3825, 112
    %v3852 = vpop.permute.xlu0 %3851
    %v3854 = vsel %vm272, %v3818, %v3828
    %v3855 = vsel %vm43, %v3854, %v3832
    %vm3856 = vcmask 392192
    %v3857 = vsel %vm3856, %v3855, %v3836
    %vm3858 = vcmask 523264
    %v3859 = vsel %vm3858, %v3857, %v3840
    %vm3860 = vcmask 654336
    %v3861 = vsel %vm3860, %v3859, %v3844
    %vm3862 = vcmask 785408
    %v3863 = vsel %vm3862, %v3861, %v3848
    %vm3864 = vcmask 916480
    %v3865 = vsel %vm3864, %v3863, %v3852
    %v3866 = vld [vmem:[%s8] sm:$0xff]
    %v3867 = vld [vmem:[%s8 + $0x8] sm:$0xff]
    %v3868 = vld [vmem:[%s8 + $0x10] sm:$0xff]
    %v3869 = vld [vmem:[%s8 + $0x18] sm:$0xff]
    %v3870 = vld [vmem:[%s8 + $0x20] sm:$0xff]
    %v3871 = vld [vmem:[%s8 + $0x28] sm:$0xff]
    %v3872 = vld [vmem:[%s8 + $0x30] sm:$0xff]
    %v3873 = vld [vmem:[%s8 + $0x38] sm:$0xff]
    %v3874 = vld [vmem:[%s8 + $0x40] sm:$0xff]
    %v3875 = vld [vmem:[%s8 + $0x48] sm:$0xff]
    %v3876 = vld [vmem:[%s8 + $0x50] sm:$0xff]
    %v3877 = vld [vmem:[%s8 + $0x58] sm:$0xff]
    %v3878 = vld [vmem:[%s8 + $0x60] sm:$0xff]
    %v3879 = vld [vmem:[%s8 + $0x68] sm:$0xff]
    %v3880 = vld [vmem:[%s8 + $0x70] sm:$0xff]
    %v3881 = vld [vmem:[%s8 + $0x78] sm:$0xff]
    %v3882 = vld [vmem:[%s9] sm:$0x1]
    %v3884 = vlaneseq
    %v3885 = vshrl.u32 %v3884, 7
    %v3886 = vsub.s32 0, %v3885
    %v3887 = vrot.slane %v3882, %v3886
    %3889 = vmatprep.subr.mxu0 0.0
    %3890 = vmatpush1.msra.mxu0 %v3866
    %3891 = vmatprep.subr.mxu0 0.0
    %3892 = vmatpush1.msra.mxu0 %v3867
    %3893 = vmatprep.subr.mxu0 0.0
    %3894 = vmatpush1.msra.mxu0 %v3868
    %3895 = vmatprep.subr.mxu0 0.0
    %3896 = vmatpush1.msra.mxu0 %v3869
    %3897 = vmatprep.subr.mxu0 0.0
    %3898 = vmatpush1.msra.mxu0 %v3870
    %3899 = vmatprep.subr.mxu0 0.0
    %3900 = vmatpush1.msra.mxu0 %v3871
    %3901 = vmatprep.subr.mxu0 0.0
    %3902 = vmatpush1.msra.mxu0 %v3872
    %3903 = vmatprep.subr.mxu0 0.0
    %3904 = vmatpush1.msra.mxu0 %v3873
    %3905 = vmatprep.subr.mxu0 0.0
    %3906 = vmatpush1.msra.mxu0 %v3874
    %3907 = vmatprep.subr.mxu0 0.0
    %3908 = vmatpush1.msra.mxu0 %v3875
    %3909 = vmatprep.subr.mxu0 0.0
    %3910 = vmatpush1.msra.mxu0 %v3876
    %3911 = vmatprep.subr.mxu0 0.0
    %3912 = vmatpush1.msra.mxu0 %v3877
    %3913 = vmatprep.subr.mxu0 0.0
    %3914 = vmatpush1.msra.mxu0 %v3878
    %3915 = vmatprep.subr.mxu0 0.0
    %3916 = vmatpush1.msra.mxu0 %v3879
    %3917 = vmatprep.subr.mxu0 0.0
    %3918 = vmatpush1.msra.mxu0 %v3880
    %3919 = vmatprep.subr.mxu0 0.0
    %3920 = vmatpush1.msra.mxu0 %v3881
    %3921 = vmatprep.subr.mxu0 0.0
    %3922 = vmatpush1.msra.mxu0 0.0
    %3923 = vmatprep.subr.mxu0 0.0
    %3924 = vmatpush1.msra.mxu0 0.0
    %3925 = vmatprep.subr.mxu0 0.0
    %3926 = vmatpush1.msra.mxu0 0.0
    %3927 = vmatprep.subr.mxu0 0.0
    %3928 = vmatpush1.msra.mxu0 0.0
    %3929 = vmatprep.subr.mxu0 0.0
    %3930 = vmatpush1.msra.mxu0 0.0
    %3931 = vmatprep.subr.mxu0 0.0
    %3932 = vmatpush1.msra.mxu0 0.0
    %3933 = vmatprep.subr.mxu0 0.0
    %3934 = vmatpush1.msra.mxu0 0.0
    %3935 = vmatprep.subr.mxu0 0.0
    %3936 = vmatpush1.msra.mxu0 0.0
    %3937 = vmatprep.subr.mxu0 0.0
    %3938 = vmatpush1.msra.mxu0 0.0
    %3939 = vmatprep.subr.mxu0 0.0
    %3940 = vmatpush1.msra.mxu0 0.0
    %3941 = vmatprep.subr.mxu0 0.0
    %3942 = vmatpush1.msra.mxu0 0.0
    %3943 = vmatprep.subr.mxu0 0.0
    %3944 = vmatpush1.msra.mxu0 0.0
    %3945 = vmatprep.subr.mxu0 0.0
    %3946 = vmatpush1.msra.mxu0 0.0
    %3947 = vmatprep.subr.mxu0 0.0
    %3948 = vmatpush1.msra.mxu0 0.0
    %3949 = vmatprep.subr.mxu0 0.0
    %3950 = vmatpush1.msra.mxu0 0.0
    %3951 = vmatprep.subr.mxu0 0.0
    %3952 = vmatpush1.msra.mxu0 0.0
    %3953 = vmatprep.mubr.f32.mxu0 0.0
    %3954 = vmatmul.mubr.f32.gmra.mrb[0].mxu0 %v3865
    %v3955 = vpop.f32.mrb[0].mxu0
    %v3956 = vadd.f32 %v3887, %v3955
    %v3957 = vpop.f32.mrb[0].mxu0
    %3958 = vdwg.mxu0
    %v3959 = vmul.f32 %v3956, %v62
    %v3960 = vadd.f32 %v3959, %v48
    %3961 = vst.msk [vmem:[#allocation2] sm:$0xff] %vm95, %v3960
    // Predicated region
    $region50: #{forward.1} parent=1 // pred_check
      _
    $region51: #{forward.1} parent=1 // pred_check_branch
      %3963 = sbr.rel (0) target = $region53
    $region52: #{forward.1} parent=1 // pred_region
      %s3965 = ssub.s32 128, 128
      %3966 = vsyncadd [#allocation3], %s3965
      %s3968 = sshll.u32 [#allocation2], 4
      %s3969 = int_to_ptr.vmem [resolvable:$true] %s3968
      %3971 = dma.vmem_to_hbm [thread:$0]  %s3969, 128, %s12, [#allocation3]
    $region53: #{forward.1} parent=1 // pred_fallthru
      _
    // Predicated region
    $region54: #{forward.1} parent=1 // pred_check
      _
    $region55: #{forward.1} parent=1 // pred_check_branch
      %3973 = sbr.rel (0) target = $region57
    $region56: #{forward.1} parent=1 // pred_region
      %3974 = dma.done [#allocation3], 128
    $region57: #{forward.1} parent=1 // pred_fallthru
      _
    %3975 = vsyncpa [#allocation3], 1

</llo_original>
